<compile_context>
chip_gen: v7x
topology: tpu7x:2x2x1
jax: 0.10.0
libtpu: 0.0.40
codegen_flags: <defaults>
</compile_context>

<pallas_src>
import numpy as np

import jax
import jax.numpy as jnp
from jax.experimental import pallas as pl
from jax.experimental.pallas import tpu as pltpu

# ----------------------------- model hyper-params -----------------------------
B = 2            # batch
IN_CHANS = 3     # swin in_chans=3
IMG = 16         # input spatial size
PATCH = 4        # patch size -> 4x4 token grid
HP = WP = IMG // PATCH
L = HP * WP      # 16 tokens
C = 32           # embed dim == backbone.num_features
NH = 2           # attention heads
HD = C // NH     # head dim
WS = 2           # window size -> 2x2 tokens per window
SHIFT = WS // 2  # shift for the second (SW-MSA) block
NW = (HP // WS) * (WP // WS)   # windows per image
T = WS * WS                    # tokens per window
MLP_HID = 4 * C                # mlp ratio 4
OUT_DIM = 8                    # cfg.model.output_dim
SCALE = HD ** -0.5
PATCH_DIM = IN_CHANS * PATCH * PATCH   # 48

SLAB_W = 128     # lane width of both packed parameter slabs


# ---------------- static full-sequence attention-bias index tables ----------------
def _build_pair_tables():
    """For each block, maps token-pair (p, p') -> rel-pos-table index + additive mask."""
    coords = [(i, j) for i in range(HP) for j in range(WP)]

    # relative position index within a window (matches timm flattening order)
    wcoords = [(a, b) for a in range(WS) for b in range(WS)]
    rel_idx = np.zeros((T, T), dtype=np.int32)
    for t1, (a1, b1) in enumerate(wcoords):
        for t2, (a2, b2) in enumerate(wcoords):
            rel_idx[t1, t2] = (a1 - a2 + WS - 1) * (2 * WS - 1) + (b1 - b2 + WS - 1)

    # region labels (timm img_mask) on the rolled grid, for the SW-MSA block
    img_mask = np.zeros((HP, WP), dtype=np.int32)
    cnt = 0
    for hs in (slice(0, HP - WS), slice(HP - WS, HP - SHIFT), slice(HP - SHIFT, HP)):
        for ws_ in (slice(0, WP - WS), slice(WP - WS, WP - SHIFT), slice(WP - SHIFT, WP)):
            img_mask[hs, ws_] = cnt
            cnt += 1

    def tables(shift):
        pair_idx = np.zeros((L, L), dtype=np.int32)
        mask = np.zeros((L, L), dtype=np.float32)
        info = []
        for (i, j) in coords:
            ii, jj = (i - shift) % HP, (j - shift) % WP          # coords after roll(-shift)
            w = (ii // WS) * (WP // WS) + (jj // WS)             # window id
            t = (ii % WS) * WS + (jj % WS)                       # pos within window
            info.append((w, t, img_mask[ii, jj]))
        for p in range(L):
            wp_, tp, rp = info[p]
            for q in range(L):
                wq, tq, rq = info[q]
                if wp_ != wq:
                    mask[p, q] = -1e9                            # never attend across windows
                else:
                    pair_idx[p, q] = rel_idx[tp, tq]
                    if shift > 0 and rp != rq:
                        mask[p, q] = -100.0                      # SW-MSA region mask (as in timm)
        return jnp.asarray(pair_idx), jnp.asarray(mask)

    pi0, m0 = tables(0)
    pi1, m1 = tables(SHIFT)
    return pi0, m0, pi1, m1


PAIR_IDX0, MASK0, PAIR_IDX1, MASK1 = _build_pair_tables()


# ---------------- packed-slab layouts (static row offsets, shared by packer & kernel) -------------
def _build_layouts():
    woff, wr = {}, 0

    def addw(name, rows):
        nonlocal wr
        woff[name] = wr
        wr += rows

    addw('patch_w', PATCH_DIM)                       # [48, C]
    for i in range(2):
        for h in range(NH):                          # per-head, per-{q,k,v} weights [C, HD]
            addw(f'b{i}_wq{h}', C)
            addw(f'b{i}_wk{h}', C)
            addw(f'b{i}_wv{h}', C)
        for h in range(NH):                          # per-head output-projection rows [HD, C]
            addw(f'b{i}_proj{h}', HD)
        addw(f'b{i}_fc1', C)                         # [C, MLP_HID]
        addw(f'b{i}_fc2', MLP_HID)                   # [MLP_HID, C]
    addw('fc_head', C)                               # [C, OUT_DIM] padded to [C, C]

    boff, br = {}, 0

    def addb(name):
        nonlocal br
        boff[name] = br
        br += 1

    for nm in ('patch_b', 'pe_g', 'pe_b'):
        addb(nm)
    for i in range(2):
        addb(f'b{i}_n1g'); addb(f'b{i}_n1b')
        for h in range(NH):
            addb(f'b{i}_bq{h}'); addb(f'b{i}_bk{h}'); addb(f'b{i}_bv{h}')
        addb(f'b{i}_projb'); addb(f'b{i}_n2g'); addb(f'b{i}_n2b')
        addb(f'b{i}_fc1b'); addb(f'b{i}_fc2b')
    for nm in ('norm_g', 'norm_b', 'fc_b'):
        addb(nm)

    return woff, wr, boff, br


WOFF, WROWS, BOFF, BROWS = _build_layouts()          # WROWS = 848, BROWS = 32 (all offsets mult-16)


# ------------------------------- fused Pallas kernel -------------------------------
def _make_kernel(nb):
    """Fused forward kernel; `nb` = batch size (static)."""

    def kernel(patches_ref, wslab_ref, bslab_ref, abias_ref, out_ref):

        def w(name, rows, cols):                     # static row slice at lane offset 0 (no rotate)
            r = WOFF[name]
            return wslab_ref[r:r + rows, :cols]

        def brow(name, cols):                        # one f32 bias/LN row, [1, cols]
            r = BOFF[name]
            return bslab_ref[r:r + 1, :cols]

        def mm(x_bf, name, rows, cols):              # bf16 MXU matmul, f32 accumulation
            return jnp.dot(x_bf, w(name, rows, cols), preferred_element_type=jnp.float32)

        def ln(x, gname, bname):                     # LayerNorm in f32 (v5e-safe)
            mean = jnp.mean(x, axis=-1, keepdims=True)
            xc = x - mean
            var = jnp.mean(xc * xc, axis=-1, keepdims=True)
            return xc * jax.lax.rsqrt(var + 1e-5) * brow(gname, C) + brow(bname, C)

        def block(x, i):
            pre = f'b{i}_'
            # ---- (shifted-)window MHA as masked full-L attention, per-head (rank-3 einsums) ----
            xn = ln(x, pre + 'n1g', pre + 'n1b').astype(jnp.bfloat16)        # [nb*L, C] bf16
            parts = []
            for h in range(NH):                                              # static unroll, NH=2
                # per-head Q/K/V straight from the MXU (weights pre-split at init, SCALE folded)
                q = (mm(xn, pre + f'wq{h}', C, HD) + brow(pre + f'bq{h}', HD)
                     ).astype(jnp.bfloat16).reshape(nb, L, HD)
                k = (mm(xn, pre + f'wk{h}', C, HD) + brow(pre + f'bk{h}', HD)
                     ).astype(jnp.bfloat16).reshape(nb, L, HD)
                v = (mm(xn, pre + f'wv{h}', C, HD) + brow(pre + f'bv{h}', HD)
                     ).astype(jnp.bfloat16).reshape(nb, L, HD)
                s = jnp.einsum('bqd,bkd->bqk', q, k,
                               preferred_element_type=jnp.float32)           # [nb, L, L] f32
                s = s + abias_ref[i * NH + h][None, :, :]                    # rel-pos + window mask
                p = jnp.exp(s)                                               # logits bounded; no max-sub
                p = p * pl.reciprocal(jnp.sum(p, axis=-1, keepdims=True), approx=True)
                o = jnp.einsum('bqk,bkd->bqd', p.astype(jnp.bfloat16), v,
                               preferred_element_type=jnp.float32)           # [nb, L, HD]
                # head merge folded into the projection: no lane-dim concat of activations
                parts.append(mm(o.reshape(nb * L, HD).astype(jnp.bfloat16),
                                pre + f'proj{h}', HD, C))
            attn = parts[0]
            for p_ in parts[1:]:
                attn = attn + p_
            x = x + attn + brow(pre + 'projb', C)

            # ---- MLP ----
            xn2 = ln(x, pre + 'n2g', pre + 'n2b').astype(jnp.bfloat16)
            h1 = mm(xn2, pre + 'fc1', C, MLP_HID) + brow(pre + 'fc1b', MLP_HID)
            # TODO(synk): timm Swin uses exact erf-GELU; tanh-approx used for TPU lowering friendliness.
            h1 = jax.nn.gelu(h1, approximate=True).astype(jnp.bfloat16)
            return x + mm(h1, pre + 'fc2', MLP_HID, C) + brow(pre + 'fc2b', C)

        # patch embedding (Conv2d(3, C, k=4, s=4) as a matmul over pre-extracted patches)
        tokens = mm(patches_ref[...], 'patch_w', PATCH_DIM, C) + brow('patch_b', C)   # [nb*L, C]
        tokens = ln(tokens, 'pe_g', 'pe_b')
        tokens = block(tokens, 0)                    # W-MSA block
        tokens = block(tokens, 1)                    # SW-MSA block
        tokens = ln(tokens, 'norm_g', 'norm_b')
        pooled = jnp.mean(tokens.reshape(nb, L, C), axis=1).astype(jnp.bfloat16)      # [nb, C]
        head = mm(pooled, 'fc_head', C, C) + brow('fc_b', C)   # Dropout(0.5) identity in eval
        out_ref[...] = head[:, :OUT_DIM]

    return kernel


# ------------------------------------ wrapper ------------------------------------
def swin_forward(params, x):
    nb = x.shape[0]
    # patch extraction: NCHW -> [nb*L, 3*4*4] bf16 (pure layout plumbing, done once in the wrapper)
    patches = x.reshape(nb, IN_CHANS, HP, PATCH, WP, PATCH)
    patches = patches.transpose(0, 2, 4, 1, 3, 5).reshape(nb * L, PATCH_DIM)
    patches = patches.astype(jnp.bfloat16)

    vmem = pl.BlockSpec(memory_space=pltpu.MemorySpace.VMEM)   # whole-array VMEM blocks, no grid
    # NOTE: for serving batches (nb*L >= 128/256) add a leading "parallel" batch grid axis
    # (2x throughput on v7x's two TensorCores); at nb=2 a single no-grid call is optimal.
    return pl.pallas_call(
        _make_kernel(nb),
        out_shape=jax.ShapeDtypeStruct((nb, OUT_DIM), jnp.float32),
        in_specs=[vmem] * 4,
        out_specs=vmem,
    )(patches, params['wslab'], params['bslab'], params['attn_bias'])


# ------------------------------------ init / packing ------------------------------------
def init_params(key):
    keys = iter(jax.random.split(key, 16))

    def nrm(shape, std=0.02):
        return jax.random.normal(next(keys), shape, jnp.float32) * std

    # raw (PyTorch-layout) synthetic weights
    patch_w = nrm((PATCH_DIM, C))
    fc_w = nrm((C, OUT_DIM))
    blocks = []
    for _ in range(2):
        blocks.append(dict(
            qkv_w=nrm((C, 3 * C)), qkv_b=jnp.zeros((3 * C,), jnp.float32),
            rel_table=nrm(((2 * WS - 1) ** 2, NH)),
            proj_w=nrm((C, C)), proj_b=jnp.zeros((C,), jnp.float32),
            fc1_w=nrm((C, MLP_HID)), fc1_b=jnp.zeros((MLP_HID,), jnp.float32),
            fc2_w=nrm((MLP_HID, C)), fc2_b=jnp.zeros((C,), jnp.float32),
        ))

    # ---- pack ALL matmul weights into one bf16 slab (single DMA) ----
    wslab = jnp.zeros((WROWS, SLAB_W), jnp.float32)

    def putw(slab, name, mat):
        r = WOFF[name]
        rows, cols = mat.shape
        return slab.at[r:r + rows, :cols].set(mat)

    wslab = putw(wslab, 'patch_w', patch_w)
    for i, bp in enumerate(blocks):
        qkv_w = bp['qkv_w']
        for h in range(NH):
            # SCALE (= head_dim**-0.5) folded into the Q weights at init time
            wslab = putw(wslab, f'b{i}_wq{h}', qkv_w[:, h * HD:(h + 1) * HD] * SCALE)
            wslab = putw(wslab, f'b{i}_wk{h}', qkv_w[:, C + h * HD:C + (h + 1) * HD])
            wslab = putw(wslab, f'b{i}_wv{h}', qkv_w[:, 2 * C + h * HD:2 * C + (h + 1) * HD])
        for h in range(NH):
            wslab = putw(wslab, f'b{i}_proj{h}', bp['proj_w'][h * HD:(h + 1) * HD, :])
        wslab = putw(wslab, f'b{i}_fc1', bp['fc1_w'])
        wslab = putw(wslab, f'b{i}_fc2', bp['fc2_w'])
    wslab = putw(wslab, 'fc_head', fc_w)             # [C, OUT_DIM] lands in lanes 0:OUT_DIM
    wslab = wslab.astype(jnp.bfloat16)

    # ---- pack all LayerNorm params / biases into one f32 slab (single DMA) ----
    bslab = jnp.zeros((BROWS, SLAB_W), jnp.float32)

    def putb(slab, name, vec):
        r = BOFF[name]
        return slab.at[r, :vec.shape[0]].set(vec)

    ones_c = jnp.ones((C,), jnp.float32)
    zeros_c = jnp.zeros((C,), jnp.float32)
    bslab = putb(bslab, 'patch_b', zeros_c)
    bslab = putb(bslab, 'pe_g', ones_c)
    bslab = putb(bslab, 'pe_b', zeros_c)
    for i, bp in enumerate(blocks):
        bslab = putb(bslab, f'b{i}_n1g', ones_c)
        bslab = putb(bslab, f'b{i}_n1b', zeros_c)
        qkv_b = bp['qkv_b']
        for h in range(NH):
            bslab = putb(bslab, f'b{i}_bq{h}', qkv_b[h * HD:(h + 1) * HD] * SCALE)
            bslab = putb(bslab, f'b{i}_bk{h}', qkv_b[C + h * HD:C + (h + 1) * HD])
            bslab = putb(bslab, f'b{i}_bv{h}', qkv_b[2 * C + h * HD:2 * C + (h + 1) * HD])
        bslab = putb(bslab, f'b{i}_projb', bp['proj_b'])
        bslab = putb(bslab, f'b{i}_n2g', ones_c)
        bslab = putb(bslab, f'b{i}_n2b', zeros_c)
        bslab = putb(bslab, f'b{i}_fc1b', bp['fc1_b'])
        bslab = putb(bslab, f'b{i}_fc2b', bp['fc2_b'])
    bslab = putb(bslab, 'norm_g', ones_c)
    bslab = putb(bslab, 'norm_b', zeros_c)
    bslab = putb(bslab, 'fc_b', jnp.zeros((OUT_DIM,), jnp.float32))

    # ---- combined per-block [NH, L, L] attention bias, precomputed ONCE and cached ----
    def comb(rel_table, pair_idx, mask):
        return jnp.transpose(rel_table[pair_idx], (2, 0, 1)) + mask          # [NH, L, L]

    attn_bias = jnp.concatenate(
        [comb(blocks[0]['rel_table'], PAIR_IDX0, MASK0),
         comb(blocks[1]['rel_table'], PAIR_IDX1, MASK1)], axis=0)            # [2*NH, L, L]

    return {'wslab': wslab, 'bslab': bslab, 'attn_bias': attn_bias}


if __name__ == "__main__":
    key = jax.random.PRNGKey(0)
    pkey, xkey = jax.random.split(key)
    params = init_params(pkey)
    x = jax.random.normal(xkey, (B, IN_CHANS, IMG, IMG), jnp.float32)

    out = jax.jit(swin_forward)(params, x)
    out = jax.block_until_ready(out)
    assert out.shape == (B, OUT_DIM), out.shape
    assert bool(jnp.all(jnp.isfinite(out)))
    print("KERNEL_OK")
</pallas_src>

<mosaic_0001>
module attributes {stable_mosaic.version = 11 : i64} {
  func.func @kernel(%arg0: memref<32x48xbf16, #tpu.memory_space<vmem>>, %arg1: memref<848x128xbf16, #tpu.memory_space<vmem>>, %arg2: memref<32x128xf32, #tpu.memory_space<vmem>>, %arg3: memref<4x16x16xf32, #tpu.memory_space<vmem>>, %arg4: memref<2x8xf32, #tpu.memory_space<vmem>>) attributes {dimension_semantics = [], scalar_prefetch = 0 : i64, scratch_operands = 0 : i64, tpu.core_type = #tpu.core_type<tc>} {
    %c0 = arith.constant 0 : index
    %c0_0 = arith.constant 0 : index
    %0 = vector.load %arg0[%c0, %c0_0] : memref<32x48xbf16, #tpu.memory_space<vmem>>, vector<32x48xbf16>
    %c0_1 = arith.constant 0 : index
    %c0_2 = arith.constant 0 : index
    %1 = vector.load %arg1[%c0_1, %c0_2] : memref<848x128xbf16, #tpu.memory_space<vmem>>, vector<48x32xbf16>
    %cst = arith.constant dense<0.000000e+00> : vector<32x32xf32>
    %2 = tpu.matmul %0, %1, %cst {dimension_numbers = #tpu.dot_dimension_numbers<[1], [0], [0], [1], [0, 0, 1, 1], [], []>} : vector<32x48xbf16>, vector<48x32xbf16>, vector<32x32xf32> -> vector<32x32xf32>
    %c0_3 = arith.constant 0 : index
    %c0_4 = arith.constant 0 : index
    %3 = vector.load %arg2[%c0_3, %c0_4] : memref<32x128xf32, #tpu.memory_space<vmem>>, vector<1x32xf32>
    %4 = vector.broadcast %3 : vector<1x32xf32> to vector<32x32xf32>
    %5 = arith.addf %2, %4 : vector<32x32xf32>
    %cst_5 = arith.constant dense<0.000000e+00> : vector<32xf32>
    %6 = vector.multi_reduction <add>, %5, %cst_5 [1] : vector<32x32xf32> to vector<32xf32>
    %7 = vector.shape_cast %6 : vector<32xf32> to vector<32x1xf32>
    %cst_6 = arith.constant 3.200000e+01 : f32
    %8 = vector.broadcast %cst_6 : f32 to vector<32x1xf32>
    %9 = arith.divf %7, %8 : vector<32x1xf32>
    %10 = vector.broadcast %9 : vector<32x1xf32> to vector<32x32xf32>
    %11 = arith.subf %5, %10 : vector<32x32xf32>
    %12 = arith.mulf %11, %11 : vector<32x32xf32>
    %cst_7 = arith.constant dense<0.000000e+00> : vector<32xf32>
    %13 = vector.multi_reduction <add>, %12, %cst_7 [1] : vector<32x32xf32> to vector<32xf32>
    %14 = vector.shape_cast %13 : vector<32xf32> to vector<32x1xf32>
    %cst_8 = arith.constant 3.200000e+01 : f32
    %15 = vector.broadcast %cst_8 : f32 to vector<32x1xf32>
    %16 = arith.divf %14, %15 : vector<32x1xf32>
    %cst_9 = arith.constant 9.99999974E-6 : f32
    %17 = vector.broadcast %cst_9 : f32 to vector<32x1xf32>
    %18 = arith.addf %16, %17 : vector<32x1xf32>
    %19 = math.rsqrt %18 : vector<32x1xf32>
    %20 = vector.broadcast %19 : vector<32x1xf32> to vector<32x32xf32>
    %21 = arith.mulf %11, %20 : vector<32x32xf32>
    %c1 = arith.constant 1 : index
    %c0_10 = arith.constant 0 : index
    %22 = vector.load %arg2[%c1, %c0_10] : memref<32x128xf32, #tpu.memory_space<vmem>>, vector<1x32xf32>
    %23 = vector.broadcast %22 : vector<1x32xf32> to vector<32x32xf32>
    %24 = arith.mulf %21, %23 : vector<32x32xf32>
    %c2 = arith.constant 2 : index
    %c0_11 = arith.constant 0 : index
    %25 = vector.load %arg2[%c2, %c0_11] : memref<32x128xf32, #tpu.memory_space<vmem>>, vector<1x32xf32>
    %26 = vector.broadcast %25 : vector<1x32xf32> to vector<32x32xf32>
    %27 = arith.addf %24, %26 : vector<32x32xf32>
    %cst_12 = arith.constant dense<0.000000e+00> : vector<32xf32>
    %28 = vector.multi_reduction <add>, %27, %cst_12 [1] : vector<32x32xf32> to vector<32xf32>
    %29 = vector.shape_cast %28 : vector<32xf32> to vector<32x1xf32>
    %cst_13 = arith.constant 3.200000e+01 : f32
    %30 = vector.broadcast %cst_13 : f32 to vector<32x1xf32>
    %31 = arith.divf %29, %30 : vector<32x1xf32>
    %32 = vector.broadcast %31 : vector<32x1xf32> to vector<32x32xf32>
    %33 = arith.subf %27, %32 : vector<32x32xf32>
    %34 = arith.mulf %33, %33 : vector<32x32xf32>
    %cst_14 = arith.constant dense<0.000000e+00> : vector<32xf32>
    %35 = vector.multi_reduction <add>, %34, %cst_14 [1] : vector<32x32xf32> to vector<32xf32>
    %36 = vector.shape_cast %35 : vector<32xf32> to vector<32x1xf32>
    %cst_15 = arith.constant 3.200000e+01 : f32
    %37 = vector.broadcast %cst_15 : f32 to vector<32x1xf32>
    %38 = arith.divf %36, %37 : vector<32x1xf32>
    %cst_16 = arith.constant 9.99999974E-6 : f32
    %39 = vector.broadcast %cst_16 : f32 to vector<32x1xf32>
    %40 = arith.addf %38, %39 : vector<32x1xf32>
    %41 = math.rsqrt %40 : vector<32x1xf32>
    %42 = vector.broadcast %41 : vector<32x1xf32> to vector<32x32xf32>
    %43 = arith.mulf %33, %42 : vector<32x32xf32>
    %c3 = arith.constant 3 : index
    %c0_17 = arith.constant 0 : index
    %44 = vector.load %arg2[%c3, %c0_17] : memref<32x128xf32, #tpu.memory_space<vmem>>, vector<1x32xf32>
    %45 = vector.broadcast %44 : vector<1x32xf32> to vector<32x32xf32>
    %46 = arith.mulf %43, %45 : vector<32x32xf32>
    %c4 = arith.constant 4 : index
    %c0_18 = arith.constant 0 : index
    %47 = vector.load %arg2[%c4, %c0_18] : memref<32x128xf32, #tpu.memory_space<vmem>>, vector<1x32xf32>
    %48 = vector.broadcast %47 : vector<1x32xf32> to vector<32x32xf32>
    %49 = arith.addf %46, %48 : vector<32x32xf32>
    %50 = arith.truncf %49 : vector<32x32xf32> to vector<32x32xbf16>
    %c48 = arith.constant 48 : index
    %c0_19 = arith.constant 0 : index
    %51 = vector.load %arg1[%c48, %c0_19] : memref<848x128xbf16, #tpu.memory_space<vmem>>, vector<32x16xbf16>
    %cst_20 = arith.constant dense<0.000000e+00> : vector<32x16xf32>
    %52 = tpu.matmul %50, %51, %cst_20 {dimension_numbers = #tpu.dot_dimension_numbers<[1], [0], [0], [1], [0, 0, 1, 1], [], []>} : vector<32x32xbf16>, vector<32x16xbf16>, vector<32x16xf32> -> vector<32x16xf32>
    %c5 = arith.constant 5 : index
    %c0_21 = arith.constant 0 : index
    %53 = vector.load %arg2[%c5, %c0_21] : memref<32x128xf32, #tpu.memory_space<vmem>>, vector<1x16xf32>
    %54 = vector.broadcast %53 : vector<1x16xf32> to vector<32x16xf32>
    %55 = arith.addf %52, %54 : vector<32x16xf32>
    %56 = arith.truncf %55 : vector<32x16xf32> to vector<32x16xbf16>
    %57 = vector.shape_cast %56 : vector<32x16xbf16> to vector<2x16x16xbf16>
    %c80 = arith.constant 80 : index
    %c0_22 = arith.constant 0 : index
    %58 = vector.load %arg1[%c80, %c0_22] : memref<848x128xbf16, #tpu.memory_space<vmem>>, vector<32x16xbf16>
    %cst_23 = arith.constant dense<0.000000e+00> : vector<32x16xf32>
    %59 = tpu.matmul %50, %58, %cst_23 {dimension_numbers = #tpu.dot_dimension_numbers<[1], [0], [0], [1], [0, 0, 1, 1], [], []>} : vector<32x32xbf16>, vector<32x16xbf16>, vector<32x16xf32> -> vector<32x16xf32>
    %c6 = arith.constant 6 : index
    %c0_24 = arith.constant 0 : index
    %60 = vector.load %arg2[%c6, %c0_24] : memref<32x128xf32, #tpu.memory_space<vmem>>, vector<1x16xf32>
    %61 = vector.broadcast %60 : vector<1x16xf32> to vector<32x16xf32>
    %62 = arith.addf %59, %61 : vector<32x16xf32>
    %63 = arith.truncf %62 : vector<32x16xf32> to vector<32x16xbf16>
    %64 = vector.shape_cast %63 : vector<32x16xbf16> to vector<2x16x16xbf16>
    %c112 = arith.constant 112 : index
    %c0_25 = arith.constant 0 : index
    %65 = vector.load %arg1[%c112, %c0_25] : memref<848x128xbf16, #tpu.memory_space<vmem>>, vector<32x16xbf16>
    %cst_26 = arith.constant dense<0.000000e+00> : vector<32x16xf32>
    %66 = tpu.matmul %50, %65, %cst_26 {dimension_numbers = #tpu.dot_dimension_numbers<[1], [0], [0], [1], [0, 0, 1, 1], [], []>} : vector<32x32xbf16>, vector<32x16xbf16>, vector<32x16xf32> -> vector<32x16xf32>
    %c7 = arith.constant 7 : index
    %c0_27 = arith.constant 0 : index
    %67 = vector.load %arg2[%c7, %c0_27] : memref<32x128xf32, #tpu.memory_space<vmem>>, vector<1x16xf32>
    %68 = vector.broadcast %67 : vector<1x16xf32> to vector<32x16xf32>
    %69 = arith.addf %66, %68 : vector<32x16xf32>
    %70 = arith.truncf %69 : vector<32x16xf32> to vector<32x16xbf16>
    %71 = vector.shape_cast %70 : vector<32x16xbf16> to vector<2x16x16xbf16>
    "tpu.trace_start"() <{level = 10 : i32, message = "bqd,bkd->bqk"}> : () -> ()
    %cst_28 = arith.constant dense<0.000000e+00> : vector<2x16x16xf32>
    %72 = tpu.matmul %57, %64, %cst_28 {dimension_numbers = #tpu.dot_dimension_numbers<[2], [2], [1], [1], [0, 0, 0, 1, 1, 1], [0], [0]>} : vector<2x16x16xbf16>, vector<2x16x16xbf16>, vector<2x16x16xf32> -> vector<2x16x16xf32>
    "tpu.trace_stop"() : () -> ()
    %c0_29 = arith.constant 0 : index
    %c0_30 = arith.constant 0 : index
    %c0_31 = arith.constant 0 : index
    %73 = vector.load %arg3[%c0_29, %c0_30, %c0_31] : memref<4x16x16xf32, #tpu.memory_space<vmem>>, vector<1x16x16xf32>
    %74 = vector.shape_cast %73 : vector<1x16x16xf32> to vector<16x16xf32>
    %75 = vector.shape_cast %74 : vector<16x16xf32> to vector<1x16x16xf32>
    %76 = vector.broadcast %75 : vector<1x16x16xf32> to vector<2x16x16xf32>
    %77 = arith.addf %72, %76 : vector<2x16x16xf32>
    %78 = math.exp %77 : vector<2x16x16xf32>
    %cst_32 = arith.constant dense<0.000000e+00> : vector<2x16xf32>
    %79 = vector.multi_reduction <add>, %78, %cst_32 [2] : vector<2x16x16xf32> to vector<2x16xf32>
    %80 = vector.shape_cast %79 : vector<2x16xf32> to vector<2x16x1xf32>
    %81 = tpu.reciprocal %80 {approx = true} : vector<2x16x1xf32> -> vector<2x16x1xf32>
    %82 = vector.broadcast %81 : vector<2x16x1xf32> to vector<2x16x16xf32>
    %83 = arith.mulf %78, %82 : vector<2x16x16xf32>
    %84 = arith.truncf %83 : vector<2x16x16xf32> to vector<2x16x16xbf16>
    "tpu.trace_start"() <{level = 10 : i32, message = "bqk,bkd->bqd"}> : () -> ()
    %cst_33 = arith.constant dense<0.000000e+00> : vector<2x16x16xf32>
    %85 = tpu.matmul %84, %71, %cst_33 {dimension_numbers = #tpu.dot_dimension_numbers<[2], [1], [1], [2], [0, 0, 0, 1, 1, 2], [0], [0]>} : vector<2x16x16xbf16>, vector<2x16x16xbf16>, vector<2x16x16xf32> -> vector<2x16x16xf32>
    "tpu.trace_stop"() : () -> ()
    %86 = vector.shape_cast %85 : vector<2x16x16xf32> to vector<32x16xf32>
    %87 = arith.truncf %86 : vector<32x16xf32> to vector<32x16xbf16>
    %c240 = arith.constant 240 : index
    %c0_34 = arith.constant 0 : index
    %88 = vector.load %arg1[%c240, %c0_34] : memref<848x128xbf16, #tpu.memory_space<vmem>>, vector<16x32xbf16>
    %cst_35 = arith.constant dense<0.000000e+00> : vector<32x32xf32>
    %89 = tpu.matmul %87, %88, %cst_35 {dimension_numbers = #tpu.dot_dimension_numbers<[1], [0], [0], [1], [0, 0, 1, 1], [], []>} : vector<32x16xbf16>, vector<16x32xbf16>, vector<32x32xf32> -> vector<32x32xf32>
    %c144 = arith.constant 144 : index
    %c0_36 = arith.constant 0 : index
    %90 = vector.load %arg1[%c144, %c0_36] : memref<848x128xbf16, #tpu.memory_space<vmem>>, vector<32x16xbf16>
    %cst_37 = arith.constant dense<0.000000e+00> : vector<32x16xf32>
    %91 = tpu.matmul %50, %90, %cst_37 {dimension_numbers = #tpu.dot_dimension_numbers<[1], [0], [0], [1], [0, 0, 1, 1], [], []>} : vector<32x32xbf16>, vector<32x16xbf16>, vector<32x16xf32> -> vector<32x16xf32>
    %c8 = arith.constant 8 : index
    %c0_38 = arith.constant 0 : index
    %92 = vector.load %arg2[%c8, %c0_38] : memref<32x128xf32, #tpu.memory_space<vmem>>, vector<1x16xf32>
    %93 = vector.broadcast %92 : vector<1x16xf32> to vector<32x16xf32>
    %94 = arith.addf %91, %93 : vector<32x16xf32>
    %95 = arith.truncf %94 : vector<32x16xf32> to vector<32x16xbf16>
    %96 = vector.shape_cast %95 : vector<32x16xbf16> to vector<2x16x16xbf16>
    %c176 = arith.constant 176 : index
    %c0_39 = arith.constant 0 : index
    %97 = vector.load %arg1[%c176, %c0_39] : memref<848x128xbf16, #tpu.memory_space<vmem>>, vector<32x16xbf16>
    %cst_40 = arith.constant dense<0.000000e+00> : vector<32x16xf32>
    %98 = tpu.matmul %50, %97, %cst_40 {dimension_numbers = #tpu.dot_dimension_numbers<[1], [0], [0], [1], [0, 0, 1, 1], [], []>} : vector<32x32xbf16>, vector<32x16xbf16>, vector<32x16xf32> -> vector<32x16xf32>
    %c9 = arith.constant 9 : index
    %c0_41 = arith.constant 0 : index
    %99 = vector.load %arg2[%c9, %c0_41] : memref<32x128xf32, #tpu.memory_space<vmem>>, vector<1x16xf32>
    %100 = vector.broadcast %99 : vector<1x16xf32> to vector<32x16xf32>
    %101 = arith.addf %98, %100 : vector<32x16xf32>
    %102 = arith.truncf %101 : vector<32x16xf32> to vector<32x16xbf16>
    %103 = vector.shape_cast %102 : vector<32x16xbf16> to vector<2x16x16xbf16>
    %c208 = arith.constant 208 : index
    %c0_42 = arith.constant 0 : index
    %104 = vector.load %arg1[%c208, %c0_42] : memref<848x128xbf16, #tpu.memory_space<vmem>>, vector<32x16xbf16>
    %cst_43 = arith.constant dense<0.000000e+00> : vector<32x16xf32>
    %105 = tpu.matmul %50, %104, %cst_43 {dimension_numbers = #tpu.dot_dimension_numbers<[1], [0], [0], [1], [0, 0, 1, 1], [], []>} : vector<32x32xbf16>, vector<32x16xbf16>, vector<32x16xf32> -> vector<32x16xf32>
    %c10 = arith.constant 10 : index
    %c0_44 = arith.constant 0 : index
    %106 = vector.load %arg2[%c10, %c0_44] : memref<32x128xf32, #tpu.memory_space<vmem>>, vector<1x16xf32>
    %107 = vector.broadcast %106 : vector<1x16xf32> to vector<32x16xf32>
    %108 = arith.addf %105, %107 : vector<32x16xf32>
    %109 = arith.truncf %108 : vector<32x16xf32> to vector<32x16xbf16>
    %110 = vector.shape_cast %109 : vector<32x16xbf16> to vector<2x16x16xbf16>
    "tpu.trace_start"() <{level = 10 : i32, message = "bqd,bkd->bqk"}> : () -> ()
    %cst_45 = arith.constant dense<0.000000e+00> : vector<2x16x16xf32>
    %111 = tpu.matmul %96, %103, %cst_45 {dimension_numbers = #tpu.dot_dimension_numbers<[2], [2], [1], [1], [0, 0, 0, 1, 1, 1], [0], [0]>} : vector<2x16x16xbf16>, vector<2x16x16xbf16>, vector<2x16x16xf32> -> vector<2x16x16xf32>
    "tpu.trace_stop"() : () -> ()
    %c1_46 = arith.constant 1 : index
    %c0_47 = arith.constant 0 : index
    %c0_48 = arith.constant 0 : index
    %112 = vector.load %arg3[%c1_46, %c0_47, %c0_48] : memref<4x16x16xf32, #tpu.memory_space<vmem>>, vector<1x16x16xf32>
    %113 = vector.shape_cast %112 : vector<1x16x16xf32> to vector<16x16xf32>
    %114 = vector.shape_cast %113 : vector<16x16xf32> to vector<1x16x16xf32>
    %115 = vector.broadcast %114 : vector<1x16x16xf32> to vector<2x16x16xf32>
    %116 = arith.addf %111, %115 : vector<2x16x16xf32>
    %117 = math.exp %116 : vector<2x16x16xf32>
    %cst_49 = arith.constant dense<0.000000e+00> : vector<2x16xf32>
    %118 = vector.multi_reduction <add>, %117, %cst_49 [2] : vector<2x16x16xf32> to vector<2x16xf32>
    %119 = vector.shape_cast %118 : vector<2x16xf32> to vector<2x16x1xf32>
    %120 = tpu.reciprocal %119 {approx = true} : vector<2x16x1xf32> -> vector<2x16x1xf32>
    %121 = vector.broadcast %120 : vector<2x16x1xf32> to vector<2x16x16xf32>
    %122 = arith.mulf %117, %121 : vector<2x16x16xf32>
    %123 = arith.truncf %122 : vector<2x16x16xf32> to vector<2x16x16xbf16>
    "tpu.trace_start"() <{level = 10 : i32, message = "bqk,bkd->bqd"}> : () -> ()
    %cst_50 = arith.constant dense<0.000000e+00> : vector<2x16x16xf32>
    %124 = tpu.matmul %123, %110, %cst_50 {dimension_numbers = #tpu.dot_dimension_numbers<[2], [1], [1], [2], [0, 0, 0, 1, 1, 2], [0], [0]>} : vector<2x16x16xbf16>, vector<2x16x16xbf16>, vector<2x16x16xf32> -> vector<2x16x16xf32>
    "tpu.trace_stop"() : () -> ()
    %125 = vector.shape_cast %124 : vector<2x16x16xf32> to vector<32x16xf32>
    %126 = arith.truncf %125 : vector<32x16xf32> to vector<32x16xbf16>
    %c256 = arith.constant 256 : index
    %c0_51 = arith.constant 0 : index
    %127 = vector.load %arg1[%c256, %c0_51] : memref<848x128xbf16, #tpu.memory_space<vmem>>, vector<16x32xbf16>
    %cst_52 = arith.constant dense<0.000000e+00> : vector<32x32xf32>
    %128 = tpu.matmul %126, %127, %cst_52 {dimension_numbers = #tpu.dot_dimension_numbers<[1], [0], [0], [1], [0, 0, 1, 1], [], []>} : vector<32x16xbf16>, vector<16x32xbf16>, vector<32x32xf32> -> vector<32x32xf32>
    %129 = arith.addf %89, %128 : vector<32x32xf32>
    %130 = arith.addf %27, %129 : vector<32x32xf32>
    %c11 = arith.constant 11 : index
    %c0_53 = arith.constant 0 : index
    %131 = vector.load %arg2[%c11, %c0_53] : memref<32x128xf32, #tpu.memory_space<vmem>>, vector<1x32xf32>
    %132 = vector.broadcast %131 : vector<1x32xf32> to vector<32x32xf32>
    %133 = arith.addf %130, %132 : vector<32x32xf32>
    %cst_54 = arith.constant dense<0.000000e+00> : vector<32xf32>
    %134 = vector.multi_reduction <add>, %133, %cst_54 [1] : vector<32x32xf32> to vector<32xf32>
    %135 = vector.shape_cast %134 : vector<32xf32> to vector<32x1xf32>
    %cst_55 = arith.constant 3.200000e+01 : f32
    %136 = vector.broadcast %cst_55 : f32 to vector<32x1xf32>
    %137 = arith.divf %135, %136 : vector<32x1xf32>
    %138 = vector.broadcast %137 : vector<32x1xf32> to vector<32x32xf32>
    %139 = arith.subf %133, %138 : vector<32x32xf32>
    %140 = arith.mulf %139, %139 : vector<32x32xf32>
    %cst_56 = arith.constant dense<0.000000e+00> : vector<32xf32>
    %141 = vector.multi_reduction <add>, %140, %cst_56 [1] : vector<32x32xf32> to vector<32xf32>
    %142 = vector.shape_cast %141 : vector<32xf32> to vector<32x1xf32>
    %cst_57 = arith.constant 3.200000e+01 : f32
    %143 = vector.broadcast %cst_57 : f32 to vector<32x1xf32>
    %144 = arith.divf %142, %143 : vector<32x1xf32>
    %cst_58 = arith.constant 9.99999974E-6 : f32
    %145 = vector.broadcast %cst_58 : f32 to vector<32x1xf32>
    %146 = arith.addf %144, %145 : vector<32x1xf32>
    %147 = math.rsqrt %146 : vector<32x1xf32>
    %148 = vector.broadcast %147 : vector<32x1xf32> to vector<32x32xf32>
    %149 = arith.mulf %139, %148 : vector<32x32xf32>
    %c12 = arith.constant 12 : index
    %c0_59 = arith.constant 0 : index
    %150 = vector.load %arg2[%c12, %c0_59] : memref<32x128xf32, #tpu.memory_space<vmem>>, vector<1x32xf32>
    %151 = vector.broadcast %150 : vector<1x32xf32> to vector<32x32xf32>
    %152 = arith.mulf %149, %151 : vector<32x32xf32>
    %c13 = arith.constant 13 : index
    %c0_60 = arith.constant 0 : index
    %153 = vector.load %arg2[%c13, %c0_60] : memref<32x128xf32, #tpu.memory_space<vmem>>, vector<1x32xf32>
    %154 = vector.broadcast %153 : vector<1x32xf32> to vector<32x32xf32>
    %155 = arith.addf %152, %154 : vector<32x32xf32>
    %156 = arith.truncf %155 : vector<32x32xf32> to vector<32x32xbf16>
    %c272 = arith.constant 272 : index
    %c0_61 = arith.constant 0 : index
    %157 = vector.load %arg1[%c272, %c0_61] : memref<848x128xbf16, #tpu.memory_space<vmem>>, vector<32x128xbf16>
    %cst_62 = arith.constant dense<0.000000e+00> : vector<32x128xf32>
    %158 = tpu.matmul %156, %157, %cst_62 {dimension_numbers = #tpu.dot_dimension_numbers<[1], [0], [0], [1], [0, 0, 1, 1], [], []>} : vector<32x32xbf16>, vector<32x128xbf16>, vector<32x128xf32> -> vector<32x128xf32>
    %c14 = arith.constant 14 : index
    %c0_63 = arith.constant 0 : index
    %159 = vector.load %arg2[%c14, %c0_63] : memref<32x128xf32, #tpu.memory_space<vmem>>, vector<1x128xf32>
    %160 = vector.broadcast %159 : vector<1x128xf32> to vector<32x128xf32>
    %161 = arith.addf %158, %160 : vector<32x128xf32>
    %162 = arith.mulf %161, %161 : vector<32x128xf32>
    %163 = arith.mulf %161, %162 : vector<32x128xf32>
    %cst_64 = arith.constant 4.471500e-02 : f32
    %164 = vector.broadcast %cst_64 : f32 to vector<32x128xf32>
    %165 = arith.mulf %164, %163 : vector<32x128xf32>
    %166 = arith.addf %161, %165 : vector<32x128xf32>
    %cst_65 = arith.constant 0.797884583 : f32
    %167 = vector.broadcast %cst_65 : f32 to vector<32x128xf32>
    %168 = arith.mulf %167, %166 : vector<32x128xf32>
    %169 = math.tanh %168 : vector<32x128xf32>
    %cst_66 = arith.constant 1.000000e+00 : f32
    %170 = vector.broadcast %cst_66 : f32 to vector<32x128xf32>
    %171 = arith.addf %170, %169 : vector<32x128xf32>
    %cst_67 = arith.constant 5.000000e-01 : f32
    %172 = vector.broadcast %cst_67 : f32 to vector<32x128xf32>
    %173 = arith.mulf %172, %171 : vector<32x128xf32>
    %174 = arith.mulf %161, %173 : vector<32x128xf32>
    %175 = arith.truncf %174 : vector<32x128xf32> to vector<32x128xbf16>
    %c304 = arith.constant 304 : index
    %c0_68 = arith.constant 0 : index
    %176 = vector.load %arg1[%c304, %c0_68] : memref<848x128xbf16, #tpu.memory_space<vmem>>, vector<128x32xbf16>
    %cst_69 = arith.constant dense<0.000000e+00> : vector<32x32xf32>
    %177 = tpu.matmul %175, %176, %cst_69 {dimension_numbers = #tpu.dot_dimension_numbers<[1], [0], [0], [1], [0, 0, 1, 1], [], []>} : vector<32x128xbf16>, vector<128x32xbf16>, vector<32x32xf32> -> vector<32x32xf32>
    %178 = arith.addf %133, %177 : vector<32x32xf32>
    %c15 = arith.constant 15 : index
    %c0_70 = arith.constant 0 : index
    %179 = vector.load %arg2[%c15, %c0_70] : memref<32x128xf32, #tpu.memory_space<vmem>>, vector<1x32xf32>
    %180 = vector.broadcast %179 : vector<1x32xf32> to vector<32x32xf32>
    %181 = arith.addf %178, %180 : vector<32x32xf32>
    %cst_71 = arith.constant dense<0.000000e+00> : vector<32xf32>
    %182 = vector.multi_reduction <add>, %181, %cst_71 [1] : vector<32x32xf32> to vector<32xf32>
    %183 = vector.shape_cast %182 : vector<32xf32> to vector<32x1xf32>
    %cst_72 = arith.constant 3.200000e+01 : f32
    %184 = vector.broadcast %cst_72 : f32 to vector<32x1xf32>
    %185 = arith.divf %183, %184 : vector<32x1xf32>
    %186 = vector.broadcast %185 : vector<32x1xf32> to vector<32x32xf32>
    %187 = arith.subf %181, %186 : vector<32x32xf32>
    %188 = arith.mulf %187, %187 : vector<32x32xf32>
    %cst_73 = arith.constant dense<0.000000e+00> : vector<32xf32>
    %189 = vector.multi_reduction <add>, %188, %cst_73 [1] : vector<32x32xf32> to vector<32xf32>
    %190 = vector.shape_cast %189 : vector<32xf32> to vector<32x1xf32>
    %cst_74 = arith.constant 3.200000e+01 : f32
    %191 = vector.broadcast %cst_74 : f32 to vector<32x1xf32>
    %192 = arith.divf %190, %191 : vector<32x1xf32>
    %cst_75 = arith.constant 9.99999974E-6 : f32
    %193 = vector.broadcast %cst_75 : f32 to vector<32x1xf32>
    %194 = arith.addf %192, %193 : vector<32x1xf32>
    %195 = math.rsqrt %194 : vector<32x1xf32>
    %196 = vector.broadcast %195 : vector<32x1xf32> to vector<32x32xf32>
    %197 = arith.mulf %187, %196 : vector<32x32xf32>
    %c16 = arith.constant 16 : index
    %c0_76 = arith.constant 0 : index
    %198 = vector.load %arg2[%c16, %c0_76] : memref<32x128xf32, #tpu.memory_space<vmem>>, vector<1x32xf32>
    %199 = vector.broadcast %198 : vector<1x32xf32> to vector<32x32xf32>
    %200 = arith.mulf %197, %199 : vector<32x32xf32>
    %c17 = arith.constant 17 : index
    %c0_77 = arith.constant 0 : index
    %201 = vector.load %arg2[%c17, %c0_77] : memref<32x128xf32, #tpu.memory_space<vmem>>, vector<1x32xf32>
    %202 = vector.broadcast %201 : vector<1x32xf32> to vector<32x32xf32>
    %203 = arith.addf %200, %202 : vector<32x32xf32>
    %204 = arith.truncf %203 : vector<32x32xf32> to vector<32x32xbf16>
    %c432 = arith.constant 432 : index
    %c0_78 = arith.constant 0 : index
    %205 = vector.load %arg1[%c432, %c0_78] : memref<848x128xbf16, #tpu.memory_space<vmem>>, vector<32x16xbf16>
    %cst_79 = arith.constant dense<0.000000e+00> : vector<32x16xf32>
    %206 = tpu.matmul %204, %205, %cst_79 {dimension_numbers = #tpu.dot_dimension_numbers<[1], [0], [0], [1], [0, 0, 1, 1], [], []>} : vector<32x32xbf16>, vector<32x16xbf16>, vector<32x16xf32> -> vector<32x16xf32>
    %c18 = arith.constant 18 : index
    %c0_80 = arith.constant 0 : index
    %207 = vector.load %arg2[%c18, %c0_80] : memref<32x128xf32, #tpu.memory_space<vmem>>, vector<1x16xf32>
    %208 = vector.broadcast %207 : vector<1x16xf32> to vector<32x16xf32>
    %209 = arith.addf %206, %208 : vector<32x16xf32>
    %210 = arith.truncf %209 : vector<32x16xf32> to vector<32x16xbf16>
    %211 = vector.shape_cast %210 : vector<32x16xbf16> to vector<2x16x16xbf16>
    %c464 = arith.constant 464 : index
    %c0_81 = arith.constant 0 : index
    %212 = vector.load %arg1[%c464, %c0_81] : memref<848x128xbf16, #tpu.memory_space<vmem>>, vector<32x16xbf16>
    %cst_82 = arith.constant dense<0.000000e+00> : vector<32x16xf32>
    %213 = tpu.matmul %204, %212, %cst_82 {dimension_numbers = #tpu.dot_dimension_numbers<[1], [0], [0], [1], [0, 0, 1, 1], [], []>} : vector<32x32xbf16>, vector<32x16xbf16>, vector<32x16xf32> -> vector<32x16xf32>
    %c19 = arith.constant 19 : index
    %c0_83 = arith.constant 0 : index
    %214 = vector.load %arg2[%c19, %c0_83] : memref<32x128xf32, #tpu.memory_space<vmem>>, vector<1x16xf32>
    %215 = vector.broadcast %214 : vector<1x16xf32> to vector<32x16xf32>
    %216 = arith.addf %213, %215 : vector<32x16xf32>
    %217 = arith.truncf %216 : vector<32x16xf32> to vector<32x16xbf16>
    %218 = vector.shape_cast %217 : vector<32x16xbf16> to vector<2x16x16xbf16>
    %c496 = arith.constant 496 : index
    %c0_84 = arith.constant 0 : index
    %219 = vector.load %arg1[%c496, %c0_84] : memref<848x128xbf16, #tpu.memory_space<vmem>>, vector<32x16xbf16>
    %cst_85 = arith.constant dense<0.000000e+00> : vector<32x16xf32>
    %220 = tpu.matmul %204, %219, %cst_85 {dimension_numbers = #tpu.dot_dimension_numbers<[1], [0], [0], [1], [0, 0, 1, 1], [], []>} : vector<32x32xbf16>, vector<32x16xbf16>, vector<32x16xf32> -> vector<32x16xf32>
    %c20 = arith.constant 20 : index
    %c0_86 = arith.constant 0 : index
    %221 = vector.load %arg2[%c20, %c0_86] : memref<32x128xf32, #tpu.memory_space<vmem>>, vector<1x16xf32>
    %222 = vector.broadcast %221 : vector<1x16xf32> to vector<32x16xf32>
    %223 = arith.addf %220, %222 : vector<32x16xf32>
    %224 = arith.truncf %223 : vector<32x16xf32> to vector<32x16xbf16>
    %225 = vector.shape_cast %224 : vector<32x16xbf16> to vector<2x16x16xbf16>
    "tpu.trace_start"() <{level = 10 : i32, message = "bqd,bkd->bqk"}> : () -> ()
    %cst_87 = arith.constant dense<0.000000e+00> : vector<2x16x16xf32>
    %226 = tpu.matmul %211, %218, %cst_87 {dimension_numbers = #tpu.dot_dimension_numbers<[2], [2], [1], [1], [0, 0, 0, 1, 1, 1], [0], [0]>} : vector<2x16x16xbf16>, vector<2x16x16xbf16>, vector<2x16x16xf32> -> vector<2x16x16xf32>
    "tpu.trace_stop"() : () -> ()
    %c2_88 = arith.constant 2 : index
    %c0_89 = arith.constant 0 : index
    %c0_90 = arith.constant 0 : index
    %227 = vector.load %arg3[%c2_88, %c0_89, %c0_90] : memref<4x16x16xf32, #tpu.memory_space<vmem>>, vector<1x16x16xf32>
    %228 = vector.shape_cast %227 : vector<1x16x16xf32> to vector<16x16xf32>
    %229 = vector.shape_cast %228 : vector<16x16xf32> to vector<1x16x16xf32>
    %230 = vector.broadcast %229 : vector<1x16x16xf32> to vector<2x16x16xf32>
    %231 = arith.addf %226, %230 : vector<2x16x16xf32>
    %232 = math.exp %231 : vector<2x16x16xf32>
    %cst_91 = arith.constant dense<0.000000e+00> : vector<2x16xf32>
    %233 = vector.multi_reduction <add>, %232, %cst_91 [2] : vector<2x16x16xf32> to vector<2x16xf32>
    %234 = vector.shape_cast %233 : vector<2x16xf32> to vector<2x16x1xf32>
    %235 = tpu.reciprocal %234 {approx = true} : vector<2x16x1xf32> -> vector<2x16x1xf32>
    %236 = vector.broadcast %235 : vector<2x16x1xf32> to vector<2x16x16xf32>
    %237 = arith.mulf %232, %236 : vector<2x16x16xf32>
    %238 = arith.truncf %237 : vector<2x16x16xf32> to vector<2x16x16xbf16>
    "tpu.trace_start"() <{level = 10 : i32, message = "bqk,bkd->bqd"}> : () -> ()
    %cst_92 = arith.constant dense<0.000000e+00> : vector<2x16x16xf32>
    %239 = tpu.matmul %238, %225, %cst_92 {dimension_numbers = #tpu.dot_dimension_numbers<[2], [1], [1], [2], [0, 0, 0, 1, 1, 2], [0], [0]>} : vector<2x16x16xbf16>, vector<2x16x16xbf16>, vector<2x16x16xf32> -> vector<2x16x16xf32>
    "tpu.trace_stop"() : () -> ()
    %240 = vector.shape_cast %239 : vector<2x16x16xf32> to vector<32x16xf32>
    %241 = arith.truncf %240 : vector<32x16xf32> to vector<32x16xbf16>
    %c624 = arith.constant 624 : index
    %c0_93 = arith.constant 0 : index
    %242 = vector.load %arg1[%c624, %c0_93] : memref<848x128xbf16, #tpu.memory_space<vmem>>, vector<16x32xbf16>
    %cst_94 = arith.constant dense<0.000000e+00> : vector<32x32xf32>
    %243 = tpu.matmul %241, %242, %cst_94 {dimension_numbers = #tpu.dot_dimension_numbers<[1], [0], [0], [1], [0, 0, 1, 1], [], []>} : vector<32x16xbf16>, vector<16x32xbf16>, vector<32x32xf32> -> vector<32x32xf32>
    %c528 = arith.constant 528 : index
    %c0_95 = arith.constant 0 : index
    %244 = vector.load %arg1[%c528, %c0_95] : memref<848x128xbf16, #tpu.memory_space<vmem>>, vector<32x16xbf16>
    %cst_96 = arith.constant dense<0.000000e+00> : vector<32x16xf32>
    %245 = tpu.matmul %204, %244, %cst_96 {dimension_numbers = #tpu.dot_dimension_numbers<[1], [0], [0], [1], [0, 0, 1, 1], [], []>} : vector<32x32xbf16>, vector<32x16xbf16>, vector<32x16xf32> -> vector<32x16xf32>
    %c21 = arith.constant 21 : index
    %c0_97 = arith.constant 0 : index
    %246 = vector.load %arg2[%c21, %c0_97] : memref<32x128xf32, #tpu.memory_space<vmem>>, vector<1x16xf32>
    %247 = vector.broadcast %246 : vector<1x16xf32> to vector<32x16xf32>
    %248 = arith.addf %245, %247 : vector<32x16xf32>
    %249 = arith.truncf %248 : vector<32x16xf32> to vector<32x16xbf16>
    %250 = vector.shape_cast %249 : vector<32x16xbf16> to vector<2x16x16xbf16>
    %c560 = arith.constant 560 : index
    %c0_98 = arith.constant 0 : index
    %251 = vector.load %arg1[%c560, %c0_98] : memref<848x128xbf16, #tpu.memory_space<vmem>>, vector<32x16xbf16>
    %cst_99 = arith.constant dense<0.000000e+00> : vector<32x16xf32>
    %252 = tpu.matmul %204, %251, %cst_99 {dimension_numbers = #tpu.dot_dimension_numbers<[1], [0], [0], [1], [0, 0, 1, 1], [], []>} : vector<32x32xbf16>, vector<32x16xbf16>, vector<32x16xf32> -> vector<32x16xf32>
    %c22 = arith.constant 22 : index
    %c0_100 = arith.constant 0 : index
    %253 = vector.load %arg2[%c22, %c0_100] : memref<32x128xf32, #tpu.memory_space<vmem>>, vector<1x16xf32>
    %254 = vector.broadcast %253 : vector<1x16xf32> to vector<32x16xf32>
    %255 = arith.addf %252, %254 : vector<32x16xf32>
    %256 = arith.truncf %255 : vector<32x16xf32> to vector<32x16xbf16>
    %257 = vector.shape_cast %256 : vector<32x16xbf16> to vector<2x16x16xbf16>
    %c592 = arith.constant 592 : index
    %c0_101 = arith.constant 0 : index
    %258 = vector.load %arg1[%c592, %c0_101] : memref<848x128xbf16, #tpu.memory_space<vmem>>, vector<32x16xbf16>
    %cst_102 = arith.constant dense<0.000000e+00> : vector<32x16xf32>
    %259 = tpu.matmul %204, %258, %cst_102 {dimension_numbers = #tpu.dot_dimension_numbers<[1], [0], [0], [1], [0, 0, 1, 1], [], []>} : vector<32x32xbf16>, vector<32x16xbf16>, vector<32x16xf32> -> vector<32x16xf32>
    %c23 = arith.constant 23 : index
    %c0_103 = arith.constant 0 : index
    %260 = vector.load %arg2[%c23, %c0_103] : memref<32x128xf32, #tpu.memory_space<vmem>>, vector<1x16xf32>
    %261 = vector.broadcast %260 : vector<1x16xf32> to vector<32x16xf32>
    %262 = arith.addf %259, %261 : vector<32x16xf32>
    %263 = arith.truncf %262 : vector<32x16xf32> to vector<32x16xbf16>
    %264 = vector.shape_cast %263 : vector<32x16xbf16> to vector<2x16x16xbf16>
    "tpu.trace_start"() <{level = 10 : i32, message = "bqd,bkd->bqk"}> : () -> ()
    %cst_104 = arith.constant dense<0.000000e+00> : vector<2x16x16xf32>
    %265 = tpu.matmul %250, %257, %cst_104 {dimension_numbers = #tpu.dot_dimension_numbers<[2], [2], [1], [1], [0, 0, 0, 1, 1, 1], [0], [0]>} : vector<2x16x16xbf16>, vector<2x16x16xbf16>, vector<2x16x16xf32> -> vector<2x16x16xf32>
    "tpu.trace_stop"() : () -> ()
    %c3_105 = arith.constant 3 : index
    %c0_106 = arith.constant 0 : index
    %c0_107 = arith.constant 0 : index
    %266 = vector.load %arg3[%c3_105, %c0_106, %c0_107] : memref<4x16x16xf32, #tpu.memory_space<vmem>>, vector<1x16x16xf32>
    %267 = vector.shape_cast %266 : vector<1x16x16xf32> to vector<16x16xf32>
    %268 = vector.shape_cast %267 : vector<16x16xf32> to vector<1x16x16xf32>
    %269 = vector.broadcast %268 : vector<1x16x16xf32> to vector<2x16x16xf32>
    %270 = arith.addf %265, %269 : vector<2x16x16xf32>
    %271 = math.exp %270 : vector<2x16x16xf32>
    %cst_108 = arith.constant dense<0.000000e+00> : vector<2x16xf32>
    %272 = vector.multi_reduction <add>, %271, %cst_108 [2] : vector<2x16x16xf32> to vector<2x16xf32>
    %273 = vector.shape_cast %272 : vector<2x16xf32> to vector<2x16x1xf32>
    %274 = tpu.reciprocal %273 {approx = true} : vector<2x16x1xf32> -> vector<2x16x1xf32>
    %275 = vector.broadcast %274 : vector<2x16x1xf32> to vector<2x16x16xf32>
    %276 = arith.mulf %271, %275 : vector<2x16x16xf32>
    %277 = arith.truncf %276 : vector<2x16x16xf32> to vector<2x16x16xbf16>
    "tpu.trace_start"() <{level = 10 : i32, message = "bqk,bkd->bqd"}> : () -> ()
    %cst_109 = arith.constant dense<0.000000e+00> : vector<2x16x16xf32>
    %278 = tpu.matmul %277, %264, %cst_109 {dimension_numbers = #tpu.dot_dimension_numbers<[2], [1], [1], [2], [0, 0, 0, 1, 1, 2], [0], [0]>} : vector<2x16x16xbf16>, vector<2x16x16xbf16>, vector<2x16x16xf32> -> vector<2x16x16xf32>
    "tpu.trace_stop"() : () -> ()
    %279 = vector.shape_cast %278 : vector<2x16x16xf32> to vector<32x16xf32>
    %280 = arith.truncf %279 : vector<32x16xf32> to vector<32x16xbf16>
    %c640 = arith.constant 640 : index
    %c0_110 = arith.constant 0 : index
    %281 = vector.load %arg1[%c640, %c0_110] : memref<848x128xbf16, #tpu.memory_space<vmem>>, vector<16x32xbf16>
    %cst_111 = arith.constant dense<0.000000e+00> : vector<32x32xf32>
    %282 = tpu.matmul %280, %281, %cst_111 {dimension_numbers = #tpu.dot_dimension_numbers<[1], [0], [0], [1], [0, 0, 1, 1], [], []>} : vector<32x16xbf16>, vector<16x32xbf16>, vector<32x32xf32> -> vector<32x32xf32>
    %283 = arith.addf %243, %282 : vector<32x32xf32>
    %284 = arith.addf %181, %283 : vector<32x32xf32>
    %c24 = arith.constant 24 : index
    %c0_112 = arith.constant 0 : index
    %285 = vector.load %arg2[%c24, %c0_112] : memref<32x128xf32, #tpu.memory_space<vmem>>, vector<1x32xf32>
    %286 = vector.broadcast %285 : vector<1x32xf32> to vector<32x32xf32>
    %287 = arith.addf %284, %286 : vector<32x32xf32>
    %cst_113 = arith.constant dense<0.000000e+00> : vector<32xf32>
    %288 = vector.multi_reduction <add>, %287, %cst_113 [1] : vector<32x32xf32> to vector<32xf32>
    %289 = vector.shape_cast %288 : vector<32xf32> to vector<32x1xf32>
    %cst_114 = arith.constant 3.200000e+01 : f32
    %290 = vector.broadcast %cst_114 : f32 to vector<32x1xf32>
    %291 = arith.divf %289, %290 : vector<32x1xf32>
    %292 = vector.broadcast %291 : vector<32x1xf32> to vector<32x32xf32>
    %293 = arith.subf %287, %292 : vector<32x32xf32>
    %294 = arith.mulf %293, %293 : vector<32x32xf32>
    %cst_115 = arith.constant dense<0.000000e+00> : vector<32xf32>
    %295 = vector.multi_reduction <add>, %294, %cst_115 [1] : vector<32x32xf32> to vector<32xf32>
    %296 = vector.shape_cast %295 : vector<32xf32> to vector<32x1xf32>
    %cst_116 = arith.constant 3.200000e+01 : f32
    %297 = vector.broadcast %cst_116 : f32 to vector<32x1xf32>
    %298 = arith.divf %296, %297 : vector<32x1xf32>
    %cst_117 = arith.constant 9.99999974E-6 : f32
    %299 = vector.broadcast %cst_117 : f32 to vector<32x1xf32>
    %300 = arith.addf %298, %299 : vector<32x1xf32>
    %301 = math.rsqrt %300 : vector<32x1xf32>
    %302 = vector.broadcast %301 : vector<32x1xf32> to vector<32x32xf32>
    %303 = arith.mulf %293, %302 : vector<32x32xf32>
    %c25 = arith.constant 25 : index
    %c0_118 = arith.constant 0 : index
    %304 = vector.load %arg2[%c25, %c0_118] : memref<32x128xf32, #tpu.memory_space<vmem>>, vector<1x32xf32>
    %305 = vector.broadcast %304 : vector<1x32xf32> to vector<32x32xf32>
    %306 = arith.mulf %303, %305 : vector<32x32xf32>
    %c26 = arith.constant 26 : index
    %c0_119 = arith.constant 0 : index
    %307 = vector.load %arg2[%c26, %c0_119] : memref<32x128xf32, #tpu.memory_space<vmem>>, vector<1x32xf32>
    %308 = vector.broadcast %307 : vector<1x32xf32> to vector<32x32xf32>
    %309 = arith.addf %306, %308 : vector<32x32xf32>
    %310 = arith.truncf %309 : vector<32x32xf32> to vector<32x32xbf16>
    %c656 = arith.constant 656 : index
    %c0_120 = arith.constant 0 : index
    %311 = vector.load %arg1[%c656, %c0_120] : memref<848x128xbf16, #tpu.memory_space<vmem>>, vector<32x128xbf16>
    %cst_121 = arith.constant dense<0.000000e+00> : vector<32x128xf32>
    %312 = tpu.matmul %310, %311, %cst_121 {dimension_numbers = #tpu.dot_dimension_numbers<[1], [0], [0], [1], [0, 0, 1, 1], [], []>} : vector<32x32xbf16>, vector<32x128xbf16>, vector<32x128xf32> -> vector<32x128xf32>
    %c27 = arith.constant 27 : index
    %c0_122 = arith.constant 0 : index
    %313 = vector.load %arg2[%c27, %c0_122] : memref<32x128xf32, #tpu.memory_space<vmem>>, vector<1x128xf32>
    %314 = vector.broadcast %313 : vector<1x128xf32> to vector<32x128xf32>
    %315 = arith.addf %312, %314 : vector<32x128xf32>
    %316 = arith.mulf %315, %315 : vector<32x128xf32>
    %317 = arith.mulf %315, %316 : vector<32x128xf32>
    %cst_123 = arith.constant 4.471500e-02 : f32
    %318 = vector.broadcast %cst_123 : f32 to vector<32x128xf32>
    %319 = arith.mulf %318, %317 : vector<32x128xf32>
    %320 = arith.addf %315, %319 : vector<32x128xf32>
    %cst_124 = arith.constant 0.797884583 : f32
    %321 = vector.broadcast %cst_124 : f32 to vector<32x128xf32>
    %322 = arith.mulf %321, %320 : vector<32x128xf32>
    %323 = math.tanh %322 : vector<32x128xf32>
    %cst_125 = arith.constant 1.000000e+00 : f32
    %324 = vector.broadcast %cst_125 : f32 to vector<32x128xf32>
    %325 = arith.addf %324, %323 : vector<32x128xf32>
    %cst_126 = arith.constant 5.000000e-01 : f32
    %326 = vector.broadcast %cst_126 : f32 to vector<32x128xf32>
    %327 = arith.mulf %326, %325 : vector<32x128xf32>
    %328 = arith.mulf %315, %327 : vector<32x128xf32>
    %329 = arith.truncf %328 : vector<32x128xf32> to vector<32x128xbf16>
    %c688 = arith.constant 688 : index
    %c0_127 = arith.constant 0 : index
    %330 = vector.load %arg1[%c688, %c0_127] : memref<848x128xbf16, #tpu.memory_space<vmem>>, vector<128x32xbf16>
    %cst_128 = arith.constant dense<0.000000e+00> : vector<32x32xf32>
    %331 = tpu.matmul %329, %330, %cst_128 {dimension_numbers = #tpu.dot_dimension_numbers<[1], [0], [0], [1], [0, 0, 1, 1], [], []>} : vector<32x128xbf16>, vector<128x32xbf16>, vector<32x32xf32> -> vector<32x32xf32>
    %332 = arith.addf %287, %331 : vector<32x32xf32>
    %c28 = arith.constant 28 : index
    %c0_129 = arith.constant 0 : index
    %333 = vector.load %arg2[%c28, %c0_129] : memref<32x128xf32, #tpu.memory_space<vmem>>, vector<1x32xf32>
    %334 = vector.broadcast %333 : vector<1x32xf32> to vector<32x32xf32>
    %335 = arith.addf %332, %334 : vector<32x32xf32>
    %cst_130 = arith.constant dense<0.000000e+00> : vector<32xf32>
    %336 = vector.multi_reduction <add>, %335, %cst_130 [1] : vector<32x32xf32> to vector<32xf32>
    %337 = vector.shape_cast %336 : vector<32xf32> to vector<32x1xf32>
    %cst_131 = arith.constant 3.200000e+01 : f32
    %338 = vector.broadcast %cst_131 : f32 to vector<32x1xf32>
    %339 = arith.divf %337, %338 : vector<32x1xf32>
    %340 = vector.broadcast %339 : vector<32x1xf32> to vector<32x32xf32>
    %341 = arith.subf %335, %340 : vector<32x32xf32>
    %342 = arith.mulf %341, %341 : vector<32x32xf32>
    %cst_132 = arith.constant dense<0.000000e+00> : vector<32xf32>
    %343 = vector.multi_reduction <add>, %342, %cst_132 [1] : vector<32x32xf32> to vector<32xf32>
    %344 = vector.shape_cast %343 : vector<32xf32> to vector<32x1xf32>
    %cst_133 = arith.constant 3.200000e+01 : f32
    %345 = vector.broadcast %cst_133 : f32 to vector<32x1xf32>
    %346 = arith.divf %344, %345 : vector<32x1xf32>
    %cst_134 = arith.constant 9.99999974E-6 : f32
    %347 = vector.broadcast %cst_134 : f32 to vector<32x1xf32>
    %348 = arith.addf %346, %347 : vector<32x1xf32>
    %349 = math.rsqrt %348 : vector<32x1xf32>
    %350 = vector.broadcast %349 : vector<32x1xf32> to vector<32x32xf32>
    %351 = arith.mulf %341, %350 : vector<32x32xf32>
    %c29 = arith.constant 29 : index
    %c0_135 = arith.constant 0 : index
    %352 = vector.load %arg2[%c29, %c0_135] : memref<32x128xf32, #tpu.memory_space<vmem>>, vector<1x32xf32>
    %353 = vector.broadcast %352 : vector<1x32xf32> to vector<32x32xf32>
    %354 = arith.mulf %351, %353 : vector<32x32xf32>
    %c30 = arith.constant 30 : index
    %c0_136 = arith.constant 0 : index
    %355 = vector.load %arg2[%c30, %c0_136] : memref<32x128xf32, #tpu.memory_space<vmem>>, vector<1x32xf32>
    %356 = vector.broadcast %355 : vector<1x32xf32> to vector<32x32xf32>
    %357 = arith.addf %354, %356 : vector<32x32xf32>
    %358 = vector.shape_cast %357 : vector<32x32xf32> to vector<2x16x32xf32>
    %cst_137 = arith.constant dense<0.000000e+00> : vector<2x32xf32>
    %359 = vector.multi_reduction <add>, %358, %cst_137 [1] : vector<2x16x32xf32> to vector<2x32xf32>
    %cst_138 = arith.constant 1.600000e+01 : f32
    %360 = vector.broadcast %cst_138 : f32 to vector<2x32xf32>
    %361 = arith.divf %359, %360 : vector<2x32xf32>
    %362 = arith.truncf %361 : vector<2x32xf32> to vector<2x32xbf16>
    %c816 = arith.constant 816 : index
    %c0_139 = arith.constant 0 : index
    %363 = vector.load %arg1[%c816, %c0_139] : memref<848x128xbf16, #tpu.memory_space<vmem>>, vector<32x32xbf16>
    %cst_140 = arith.constant dense<0.000000e+00> : vector<2x32xf32>
    %364 = tpu.matmul %362, %363, %cst_140 {dimension_numbers = #tpu.dot_dimension_numbers<[1], [0], [0], [1], [0, 0, 1, 1], [], []>} : vector<2x32xbf16>, vector<32x32xbf16>, vector<2x32xf32> -> vector<2x32xf32>
    %c31 = arith.constant 31 : index
    %c0_141 = arith.constant 0 : index
    %365 = vector.load %arg2[%c31, %c0_141] : memref<32x128xf32, #tpu.memory_space<vmem>>, vector<1x32xf32>
    %366 = vector.broadcast %365 : vector<1x32xf32> to vector<2x32xf32>
    %367 = arith.addf %364, %366 : vector<2x32xf32>
    %368 = vector.extract_strided_slice %367 {offsets = [0, 0], sizes = [2, 8], strides = [1, 1]} : vector<2x32xf32> to vector<2x8xf32>
    %c0_142 = arith.constant 0 : index
    %c0_143 = arith.constant 0 : index
    %369 = vector.load %arg4[%c0_142, %c0_143] : memref<2x8xf32, #tpu.memory_space<vmem>>, vector<2x8xf32>
    tpu.vector_store %arg4[%c0_142, %c0_143], %368 {strides = array<i32>} : memref<2x8xf32, #tpu.memory_space<vmem>>, vector<2x8xf32>,
    return
  }
}

</mosaic_0001>

<llo_original>
// kernel: swin_forward.1
$region0: #{swin_forward.1}
  #allocation0 [shape = 'u32[]', space=smem, size = 0x4, offset = 0x4, fixed_abs, tag = 'smem constant byte address 0x4 - core index']
  #allocation1 [shape = 'u32[144,128]{1,0:T(1,128)}', space=vmem, size = 0x12000, scoped, tag = 'internal scratch']
  %s0 = inlined_call_operand.vmem [shape: bf16[32,48], index: 0, kind: input, shape index: {}]
  %s1 = inlined_call_operand.vmem [shape: bf16[848,128], index: 1, kind: input, shape index: {}]
  %s2 = inlined_call_operand.vmem [shape: f32[32,128], index: 2, kind: input, shape index: {}]
  %s3 = inlined_call_operand.vmem [shape: f32[4,16,16], index: 3, kind: input, shape index: {}]
  %s4 = inlined_call_operand.hbm [shape: f32[2,8], index: 4, kind: output, shape index: {}]
  %s5 = sld [smem:[#allocation0]]
  $region26: #{swin_forward.1} parent=0
    _
  %s7 = ssub.s32 1, %s5
  %s8 = scalar_select 0, %s7, %s5
  $region1: #{swin_forward.1} parent=0
    #allocation2 [shape = 'u8[1024]{0}', space=vmem, size = 0x400, scoped, tag = 'output window, operand 0, single buffered']
    #allocation3 [shape = 's32[1]{0}', space=sflag, size = 0x4, scoped, tag = 'scoped memory for swin_forward.1']
    %9 = vsyncpa [#allocation3], 0
    // Predicated region
    $region2: #{swin_forward.1} parent=1 // pred_check
      _
    $region3: #{swin_forward.1} parent=1 // pred_check_branch
      %11 = sbr.rel (0) target = $region5
    $region4: #{swin_forward.1} parent=1 // pred_region
      _
    $region5: #{swin_forward.1} parent=1 // pred_fallthru
      _
    // Predicated region
    $region6: #{swin_forward.1} parent=1 // pred_check
      _
    $region7: #{swin_forward.1} parent=1 // pred_check_branch
      %13 = sbr.rel (0) target = $region9
    $region8: #{swin_forward.1} parent=1 // pred_region
      _
    $region9: #{swin_forward.1} parent=1 // pred_fallthru
      _
    // Predicated region
    $region10: #{swin_forward.1} parent=1 // pred_check
      _
    $region11: #{swin_forward.1} parent=1 // pred_check_branch
      %15 = sbr.rel (0) target = $region13
    $region12: #{swin_forward.1} parent=1 // pred_region
      _
    $region13: #{swin_forward.1} parent=1 // pred_fallthru
      _
    // Predicated region
    $region14: #{swin_forward.1} parent=1 // pred_check
      _
    $region15: #{swin_forward.1} parent=1 // pred_check_branch
      %17 = sbr.rel (0) target = $region17
    $region16: #{swin_forward.1} parent=1 // pred_region
      _
    $region17: #{swin_forward.1} parent=1 // pred_fallthru
      _
    %v19 = vld [vmem:[%s0] sm:$0xf]
    %v20 = vld [vmem:[%s0 + $0x4] sm:$0xf]
    %v21 = vld [vmem:[%s0 + $0x8] sm:$0xf]
    %v22 = vld [vmem:[%s0 + $0xc] sm:$0xf]
    %v23 = vld [vmem:[%s1] sm:$0xf]
    %v24 = vld [vmem:[%s1 + $0x4] sm:$0xf]
    %v25 = vld [vmem:[%s1 + $0x8] sm:$0xf]
    %v26 = vld [vmem:[%s1 + $0xc] sm:$0xf]
    %v27 = vld [vmem:[%s1 + $0x10] sm:$0xf]
    %v28 = vld [vmem:[%s1 + $0x14] sm:$0xf]
    %v29 = vld [vmem:[%s2] sm:$0x1]
    %v30 = vlaneseq
    %v31 = vshrl.u32 %v30, 7
    %v32 = vsub.s32 0, %v31
    %v33 = vrot.slane %v29, %v32
    %v38 = vunpack.c.l.b16 %v19
    %v39 = vunpack.c.l.b16 %v20
    %v40 = vunpack.c.l.b16 %v21
    %v41 = vunpack.c.l.b16 %v22
    %v42 = vpack.c.b16 %v39, %v38
    %v43 = vpack.c.b16 %v41, %v40
    %v50 = vunpack.c.l.b16 %v23
    %v51 = vunpack.c.l.b16 %v24
    %v52 = vunpack.c.l.b16 %v25
    %v53 = vunpack.c.l.b16 %v26
    %v54 = vunpack.c.l.b16 %v27
    %v55 = vunpack.c.l.b16 %v28
    %v56 = vpack.c.b16 %v51, %v50
    %v57 = vpack.c.b16 %v53, %v52
    %v58 = vpack.c.b16 %v55, %v54
    %vm62 = vcmask 392192
    %v64 = vsel %vm62, %v42, 0
    %v67 = vsel %vm62, %v43, 0
    %69 = vmatprep.subr.bf16.mxu0 0
    %70 = vmatpush1.bf16.msra.mxu0 %v56
    %71 = vmatprep.subr.bf16.mxu0 0
    %72 = vmatpush1.bf16.msra.mxu0 %v57
    %73 = vmatprep.subr.bf16.mxu0 0
    %74 = vmatpush1.bf16.msra.mxu0 %v58
    %75 = vmatprep.subr.bf16.mxu0 0
    %76 = vmatpush1.bf16.msra.mxu0 0
    %77 = vmatprep.subr.bf16.mxu0 0
    %78 = vmatpush1.bf16.msra.mxu0 0
    %79 = vmatprep.subr.bf16.mxu0 0
    %80 = vmatpush1.bf16.msra.mxu0 0
    %81 = vmatprep.subr.bf16.mxu0 0
    %82 = vmatpush1.bf16.msra.mxu0 0
    %83 = vmatprep.subr.bf16.mxu0 0
    %84 = vmatpush1.bf16.msra.mxu0 0
    %85 = vmatprep.subr.bf16.mxu0 0
    %86 = vmatpush1.bf16.msra.mxu0 0
    %87 = vmatprep.subr.bf16.mxu0 0
    %88 = vmatpush1.bf16.msra.mxu0 0
    %89 = vmatprep.subr.bf16.mxu0 0
    %90 = vmatpush1.bf16.msra.mxu0 0
    %91 = vmatprep.subr.bf16.mxu0 0
    %92 = vmatpush1.bf16.msra.mxu0 0
    %93 = vmatprep.subr.bf16.mxu0 0
    %94 = vmatpush1.bf16.msra.mxu0 0
    %95 = vmatprep.subr.bf16.mxu0 0
    %96 = vmatpush1.bf16.msra.mxu0 0
    %97 = vmatprep.subr.bf16.mxu0 0
    %98 = vmatpush1.bf16.msra.mxu0 0
    %99 = vmatprep.subr.bf16.mxu0 0
    %100 = vmatpush1.bf16.msra.mxu0 0
    %101 = vmatprep.mubr.bf16.mxu0 0
    %102 = vmatmul.mubr.bf16.gmra.mrb[0].mxu0 %v64
    %v103 = vpop.f32.mrb[0].mxu0
    %v104 = vadd.f32 %v33, %v103
    %v105 = vpop.f32.mrb[0].mxu0
    %v106 = vpop.f32.mrb[0].mxu0
    %v107 = vadd.f32 %v33, %v106
    %v108 = vpop.f32.mrb[0].mxu0
    %109 = vmatprep.mubr.bf16.mxu0 0
    %110 = vmatmul.mubr.bf16.gmra.mrb[0].mxu0 %v67
    %v111 = vpop.f32.mrb[0].mxu0
    %v112 = vadd.f32 %v33, %v111
    %v113 = vpop.f32.mrb[0].mxu0
    %v114 = vpop.f32.mrb[0].mxu0
    %v115 = vadd.f32 %v33, %v114
    %v116 = vpop.f32.mrb[0].mxu0
    %117 = vdwg.mxu0
    %vm118 = vcmask 261120
    %v119 = vsel %vm118, %v104, 0.0
    %120 = vadd.xlane.f32.xlu0 %v119
    %v121 = vpop.xlane.xlu0 %120
    %v122 = vsel %vm118, %v107, 0.0
    %123 = vadd.xlane.f32.xlu0 %v122
    %v124 = vpop.xlane.xlu0 %123
    %v125 = vsel %vm118, %v112, 0.0
    %126 = vadd.xlane.f32.xlu0 %v125
    %v127 = vpop.xlane.xlu0 %126
    %v128 = vsel %vm118, %v115, 0.0
    %129 = vadd.xlane.f32.xlu0 %v128
    %v130 = vpop.xlane.xlu0 %129
    %v131 = vrcp.pop 32.0
    %v132 = vmul.f32 %v121, %v131
    %v133 = vmul.f32 %v124, %v131
    %v134 = vmul.f32 %v127, %v131
    %v135 = vmul.f32 %v130, %v131
    %v136 = vsub.f32 %v104, %v132
    %v137 = vsub.f32 %v107, %v133
    %v138 = vsub.f32 %v112, %v134
    %v139 = vsub.f32 %v115, %v135
    %v140 = vmul.f32 %v136, %v136
    %v141 = vmul.f32 %v137, %v137
    %v142 = vmul.f32 %v138, %v138
    %v143 = vmul.f32 %v139, %v139
    %v144 = vsel %vm118, %v140, 0.0
    %145 = vadd.xlane.f32.xlu0 %v144
    %v146 = vpop.xlane.xlu0 %145
    %v147 = vsel %vm118, %v141, 0.0
    %148 = vadd.xlane.f32.xlu0 %v147
    %v149 = vpop.xlane.xlu0 %148
    %v150 = vsel %vm118, %v142, 0.0
    %151 = vadd.xlane.f32.xlu0 %v150
    %v152 = vpop.xlane.xlu0 %151
    %v153 = vsel %vm118, %v143, 0.0
    %154 = vadd.xlane.f32.xlu0 %v153
    %v155 = vpop.xlane.xlu0 %154
    %v156 = vmul.f32 %v146, %v131
    %v157 = vmul.f32 %v149, %v131
    %v158 = vmul.f32 %v152, %v131
    %v159 = vmul.f32 %v155, %v131
    %v160 = vadd.f32 %v156, 1e-05
    %v161 = vadd.f32 %v157, 1e-05
    %v162 = vadd.f32 %v158, 1e-05
    %v163 = vadd.f32 %v159, 1e-05
    %v164 = vrsqrt.pop %v160
    %v165 = vrsqrt.pop %v161
    %v166 = vrsqrt.pop %v162
    %v167 = vrsqrt.pop %v163
    %v168 = vmul.f32 %v136, %v164
    %v169 = vmul.f32 %v137, %v165
    %v170 = vmul.f32 %v138, %v166
    %v171 = vmul.f32 %v139, %v167
    %v172 = vld [vmem:[%s2 + $0x1] sm:$0x1]
    %v173 = vlaneseq
    %v174 = vshrl.u32 %v173, 7
    %v175 = vsub.s32 0, %v174
    %v176 = vrot.slane %v172, %v175
    %v177 = vmul.f32 %v168, %v176
    %v178 = vmul.f32 %v169, %v176
    %v179 = vmul.f32 %v170, %v176
    %v180 = vmul.f32 %v171, %v176
    %v181 = vld [vmem:[%s2 + $0x2] sm:$0x1]
    %v182 = vlaneseq
    %v183 = vshrl.u32 %v182, 7
    %v184 = vsub.s32 0, %v183
    %v185 = vrot.slane %v181, %v184
    %v186 = vadd.f32 %v177, %v185
    %v187 = vadd.f32 %v178, %v185
    %v188 = vadd.f32 %v179, %v185
    %v189 = vadd.f32 %v180, %v185
    %v190 = vsel %vm118, %v186, 0.0
    %191 = vadd.xlane.f32.xlu0 %v190
    %v192 = vpop.xlane.xlu0 %191
    %v193 = vsel %vm118, %v187, 0.0
    %194 = vadd.xlane.f32.xlu0 %v193
    %v195 = vpop.xlane.xlu0 %194
    %v196 = vsel %vm118, %v188, 0.0
    %197 = vadd.xlane.f32.xlu0 %v196
    %v198 = vpop.xlane.xlu0 %197
    %v199 = vsel %vm118, %v189, 0.0
    %200 = vadd.xlane.f32.xlu0 %v199
    %v201 = vpop.xlane.xlu0 %200
    %v202 = vmul.f32 %v192, %v131
    %v203 = vmul.f32 %v195, %v131
    %v204 = vmul.f32 %v198, %v131
    %v205 = vmul.f32 %v201, %v131
    %v206 = vsub.f32 %v186, %v202
    %v207 = vsub.f32 %v187, %v203
    %v208 = vsub.f32 %v188, %v204
    %v209 = vsub.f32 %v189, %v205
    %v210 = vmul.f32 %v206, %v206
    %v211 = vmul.f32 %v207, %v207
    %v212 = vmul.f32 %v208, %v208
    %v213 = vmul.f32 %v209, %v209
    %v214 = vsel %vm118, %v210, 0.0
    %215 = vadd.xlane.f32.xlu0 %v214
    %v216 = vpop.xlane.xlu0 %215
    %v217 = vsel %vm118, %v211, 0.0
    %218 = vadd.xlane.f32.xlu0 %v217
    %v219 = vpop.xlane.xlu0 %218
    %v220 = vsel %vm118, %v212, 0.0
    %221 = vadd.xlane.f32.xlu0 %v220
    %v222 = vpop.xlane.xlu0 %221
    %v223 = vsel %vm118, %v213, 0.0
    %224 = vadd.xlane.f32.xlu0 %v223
    %v225 = vpop.xlane.xlu0 %224
    %v226 = vmul.f32 %v216, %v131
    %v227 = vmul.f32 %v219, %v131
    %v228 = vmul.f32 %v222, %v131
    %v229 = vmul.f32 %v225, %v131
    %v230 = vadd.f32 %v226, 1e-05
    %v231 = vadd.f32 %v227, 1e-05
    %v232 = vadd.f32 %v228, 1e-05
    %v233 = vadd.f32 %v229, 1e-05
    %v234 = vrsqrt.pop %v230
    %v235 = vrsqrt.pop %v231
    %v236 = vrsqrt.pop %v232
    %v237 = vrsqrt.pop %v233
    %v238 = vmul.f32 %v206, %v234
    %v239 = vmul.f32 %v207, %v235
    %v240 = vmul.f32 %v208, %v236
    %v241 = vmul.f32 %v209, %v237
    %v242 = vld [vmem:[%s2 + $0x3] sm:$0x1]
    %v243 = vlaneseq
    %v244 = vshrl.u32 %v243, 7
    %v245 = vsub.s32 0, %v244
    %v246 = vrot.slane %v242, %v245
    %v247 = vmul.f32 %v238, %v246
    %v248 = vmul.f32 %v239, %v246
    %v249 = vmul.f32 %v240, %v246
    %v250 = vmul.f32 %v241, %v246
    %v251 = vld [vmem:[%s2 + $0x4] sm:$0x1]
    %v252 = vlaneseq
    %v253 = vshrl.u32 %v252, 7
    %v254 = vsub.s32 0, %v253
    %v255 = vrot.slane %v251, %v254
    %v256 = vadd.f32 %v247, %v255
    %v257 = vadd.f32 %v248, %v255
    %v258 = vadd.f32 %v249, %v255
    %v259 = vadd.f32 %v250, %v255
    %v260 = vpack.c.bf16 %v257, %v256
    %v261 = vpack.c.bf16 %v259, %v258
    %v262 = vld [vmem:[%s1 + $0x18] sm:$0xf]
    %v263 = vld [vmem:[%s1 + $0x1c] sm:$0xf]
    %v264 = vld [vmem:[%s1 + $0x20] sm:$0xf]
    %v265 = vld [vmem:[%s1 + $0x24] sm:$0xf]
    %v266 = vld [vmem:[%s2 + $0x5] sm:$0x1]
    %v267 = vlaneseq
    %v268 = vshrl.u32 %v267, 7
    %v269 = vsub.s32 0, %v268
    %v270 = vrot.slane %v266, %v269
    %v275 = vunpack.c.l.b16 %v262
    %v276 = vunpack.c.l.b16 %v263
    %v277 = vunpack.c.l.b16 %v264
    %v278 = vunpack.c.l.b16 %v265
    %v279 = vpack.c.b16 %v276, %v275
    %v280 = vpack.c.b16 %v278, %v277
    %v284 = vsel %vm118, %v260, 0
    %v287 = vsel %vm118, %v261, 0
    %289 = vmatprep.subr.bf16.mxu0 0
    %290 = vmatpush1.bf16.msra.mxu0 %v279
    %291 = vmatprep.subr.bf16.mxu0 0
    %292 = vmatpush1.bf16.msra.mxu0 %v280
    %293 = vmatprep.subr.bf16.mxu0 0
    %294 = vmatpush1.bf16.msra.mxu0 0
    %295 = vmatprep.subr.bf16.mxu0 0
    %296 = vmatpush1.bf16.msra.mxu0 0
    %297 = vmatprep.subr.bf16.mxu0 0
    %298 = vmatpush1.bf16.msra.mxu0 0
    %299 = vmatprep.subr.bf16.mxu0 0
    %300 = vmatpush1.bf16.msra.mxu0 0
    %301 = vmatprep.subr.bf16.mxu0 0
    %302 = vmatpush1.bf16.msra.mxu0 0
    %303 = vmatprep.subr.bf16.mxu0 0
    %304 = vmatpush1.bf16.msra.mxu0 0
    %305 = vmatprep.subr.bf16.mxu0 0
    %306 = vmatpush1.bf16.msra.mxu0 0
    %307 = vmatprep.subr.bf16.mxu0 0
    %308 = vmatpush1.bf16.msra.mxu0 0
    %309 = vmatprep.subr.bf16.mxu0 0
    %310 = vmatpush1.bf16.msra.mxu0 0
    %311 = vmatprep.subr.bf16.mxu0 0
    %312 = vmatpush1.bf16.msra.mxu0 0
    %313 = vmatprep.subr.bf16.mxu0 0
    %314 = vmatpush1.bf16.msra.mxu0 0
    %315 = vmatprep.subr.bf16.mxu0 0
    %316 = vmatpush1.bf16.msra.mxu0 0
    %317 = vmatprep.subr.bf16.mxu0 0
    %318 = vmatpush1.bf16.msra.mxu0 0
    %319 = vmatprep.subr.bf16.mxu0 0
    %320 = vmatpush1.bf16.msra.mxu0 0
    %321 = vmatprep.mubr.bf16.mxu0 0
    %322 = vmatmul.mubr.bf16.gmra.mrb[0].mxu0 %v284
    %v323 = vpop.f32.mrb[0].mxu0
    %v324 = vadd.f32 %v270, %v323
    %v325 = vpop.f32.mrb[0].mxu0
    %v326 = vpop.f32.mrb[0].mxu0
    %v327 = vadd.f32 %v270, %v326
    %v328 = vpop.f32.mrb[0].mxu0
    %329 = vmatprep.mubr.bf16.mxu0 0
    %330 = vmatmul.mubr.bf16.gmra.mrb[0].mxu0 %v287
    %v331 = vpop.f32.mrb[0].mxu0
    %v332 = vadd.f32 %v270, %v331
    %v333 = vpop.f32.mrb[0].mxu0
    %v334 = vpop.f32.mrb[0].mxu0
    %v335 = vadd.f32 %v270, %v334
    %v336 = vpop.f32.mrb[0].mxu0
    %337 = vdwg.mxu0
    %v338 = vpack.c.bf16 %v327, %v324
    %v339 = vpack.c.bf16 %v335, %v332
    %v340 = vld [vmem:[%s1 + $0x28] sm:$0xf]
    %v341 = vld [vmem:[%s1 + $0x2c] sm:$0xf]
    %v342 = vld [vmem:[%s1 + $0x30] sm:$0xf]
    %v343 = vld [vmem:[%s1 + $0x34] sm:$0xf]
    %v344 = vld [vmem:[%s2 + $0x6] sm:$0x1]
    %v345 = vlaneseq
    %v346 = vshrl.u32 %v345, 7
    %v347 = vsub.s32 0, %v346
    %v348 = vrot.slane %v344, %v347
    %v353 = vunpack.c.l.b16 %v340
    %v354 = vunpack.c.l.b16 %v341
    %v355 = vunpack.c.l.b16 %v342
    %v356 = vunpack.c.l.b16 %v343
    %v357 = vpack.c.b16 %v354, %v353
    %v358 = vpack.c.b16 %v356, %v355
    %361 = vmatprep.subr.bf16.mxu0 0
    %362 = vmatpush1.bf16.msra.mxu0 %v357
    %363 = vmatprep.subr.bf16.mxu0 0
    %364 = vmatpush1.bf16.msra.mxu0 %v358
    %365 = vmatprep.subr.bf16.mxu0 0
    %366 = vmatpush1.bf16.msra.mxu0 0
    %367 = vmatprep.subr.bf16.mxu0 0
    %368 = vmatpush1.bf16.msra.mxu0 0
    %369 = vmatprep.subr.bf16.mxu0 0
    %370 = vmatpush1.bf16.msra.mxu0 0
    %371 = vmatprep.subr.bf16.mxu0 0
    %372 = vmatpush1.bf16.msra.mxu0 0
    %373 = vmatprep.subr.bf16.mxu0 0
    %374 = vmatpush1.bf16.msra.mxu0 0
    %375 = vmatprep.subr.bf16.mxu0 0
    %376 = vmatpush1.bf16.msra.mxu0 0
    %377 = vmatprep.subr.bf16.mxu0 0
    %378 = vmatpush1.bf16.msra.mxu0 0
    %379 = vmatprep.subr.bf16.mxu0 0
    %380 = vmatpush1.bf16.msra.mxu0 0
    %381 = vmatprep.subr.bf16.mxu0 0
    %382 = vmatpush1.bf16.msra.mxu0 0
    %383 = vmatprep.subr.bf16.mxu0 0
    %384 = vmatpush1.bf16.msra.mxu0 0
    %385 = vmatprep.subr.bf16.mxu0 0
    %386 = vmatpush1.bf16.msra.mxu0 0
    %387 = vmatprep.subr.bf16.mxu0 0
    %388 = vmatpush1.bf16.msra.mxu0 0
    %389 = vmatprep.subr.bf16.mxu0 0
    %390 = vmatpush1.bf16.msra.mxu0 0
    %391 = vmatprep.subr.bf16.mxu0 0
    %392 = vmatpush1.bf16.msra.mxu0 0
    %393 = vmatprep.mubr.bf16.mxu0 0
    %394 = vmatmul.mubr.bf16.gmra.mrb[0].mxu0 %v284
    %v395 = vpop.f32.mrb[0].mxu0
    %v396 = vadd.f32 %v348, %v395
    %v397 = vpop.f32.mrb[0].mxu0
    %v398 = vpop.f32.mrb[0].mxu0
    %v399 = vadd.f32 %v348, %v398
    %v400 = vpop.f32.mrb[0].mxu0
    %401 = vmatprep.mubr.bf16.mxu0 0
    %402 = vmatmul.mubr.bf16.gmra.mrb[0].mxu0 %v287
    %v403 = vpop.f32.mrb[0].mxu0
    %v404 = vadd.f32 %v348, %v403
    %v405 = vpop.f32.mrb[0].mxu0
    %v406 = vpop.f32.mrb[0].mxu0
    %v407 = vadd.f32 %v348, %v406
    %v408 = vpop.f32.mrb[0].mxu0
    %409 = vdwg.mxu0
    %v410 = vpack.c.bf16 %v399, %v396
    %v411 = vpack.c.bf16 %v407, %v404
    %v412 = vld [vmem:[%s1 + $0x38] sm:$0xf]
    %v413 = vld [vmem:[%s1 + $0x3c] sm:$0xf]
    %v414 = vld [vmem:[%s1 + $0x40] sm:$0xf]
    %v415 = vld [vmem:[%s1 + $0x44] sm:$0xf]
    %v416 = vld [vmem:[%s2 + $0x7] sm:$0x1]
    %v417 = vlaneseq
    %v418 = vshrl.u32 %v417, 7
    %v419 = vsub.s32 0, %v418
    %v420 = vrot.slane %v416, %v419
    %v425 = vunpack.c.l.b16 %v412
    %v426 = vunpack.c.l.b16 %v413
    %v427 = vunpack.c.l.b16 %v414
    %v428 = vunpack.c.l.b16 %v415
    %v429 = vpack.c.b16 %v426, %v425
    %v430 = vpack.c.b16 %v428, %v427
    %433 = vmatprep.subr.bf16.mxu0 0
    %434 = vmatpush1.bf16.msra.mxu0 %v429
    %435 = vmatprep.subr.bf16.mxu0 0
    %436 = vmatpush1.bf16.msra.mxu0 %v430
    %437 = vmatprep.subr.bf16.mxu0 0
    %438 = vmatpush1.bf16.msra.mxu0 0
    %439 = vmatprep.subr.bf16.mxu0 0
    %440 = vmatpush1.bf16.msra.mxu0 0
    %441 = vmatprep.subr.bf16.mxu0 0
    %442 = vmatpush1.bf16.msra.mxu0 0
    %443 = vmatprep.subr.bf16.mxu0 0
    %444 = vmatpush1.bf16.msra.mxu0 0
    %445 = vmatprep.subr.bf16.mxu0 0
    %446 = vmatpush1.bf16.msra.mxu0 0
    %447 = vmatprep.subr.bf16.mxu0 0
    %448 = vmatpush1.bf16.msra.mxu0 0
    %449 = vmatprep.subr.bf16.mxu0 0
    %450 = vmatpush1.bf16.msra.mxu0 0
    %451 = vmatprep.subr.bf16.mxu0 0
    %452 = vmatpush1.bf16.msra.mxu0 0
    %453 = vmatprep.subr.bf16.mxu0 0
    %454 = vmatpush1.bf16.msra.mxu0 0
    %455 = vmatprep.subr.bf16.mxu0 0
    %456 = vmatpush1.bf16.msra.mxu0 0
    %457 = vmatprep.subr.bf16.mxu0 0
    %458 = vmatpush1.bf16.msra.mxu0 0
    %459 = vmatprep.subr.bf16.mxu0 0
    %460 = vmatpush1.bf16.msra.mxu0 0
    %461 = vmatprep.subr.bf16.mxu0 0
    %462 = vmatpush1.bf16.msra.mxu0 0
    %463 = vmatprep.subr.bf16.mxu0 0
    %464 = vmatpush1.bf16.msra.mxu0 0
    %465 = vmatprep.mubr.bf16.mxu0 0
    %466 = vmatmul.mubr.bf16.gmra.mrb[0].mxu0 %v284
    %v467 = vpop.f32.mrb[0].mxu0
    %v468 = vadd.f32 %v420, %v467
    %v469 = vpop.f32.mrb[0].mxu0
    %v470 = vpop.f32.mrb[0].mxu0
    %v471 = vadd.f32 %v420, %v470
    %v472 = vpop.f32.mrb[0].mxu0
    %473 = vmatprep.mubr.bf16.mxu0 0
    %474 = vmatmul.mubr.bf16.gmra.mrb[0].mxu0 %v287
    %v475 = vpop.f32.mrb[0].mxu0
    %v476 = vadd.f32 %v420, %v475
    %v477 = vpop.f32.mrb[0].mxu0
    %v478 = vpop.f32.mrb[0].mxu0
    %v479 = vadd.f32 %v420, %v478
    %v480 = vpop.f32.mrb[0].mxu0
    %481 = vdwg.mxu0
    %v482 = vpack.c.bf16 %v471, %v468
    %v483 = vpack.c.bf16 %v479, %v476
    %v484 = vld [vmem:[%s3] sm:$0xff]
    %v485 = vld [vmem:[%s3 + $0x8] sm:$0xff]
    %vm486 = vcmask 130048
    %v488 = vsel %vm486, %v338, 0
    %v491 = vsel %vm486, %v410, 0
    %493 = vmatprep.subr.bf16.mxu0 0
    %494 = vmatpush1.bf16.xpose.msra.mxu0 %v491
    %495 = vmatprep.subr.bf16.mxu0 0
    %496 = vmatpush1.bf16.xpose.msra.mxu0 0
    %497 = vmatprep.subr.bf16.mxu0 0
    %498 = vmatpush1.bf16.xpose.msra.mxu0 0
    %499 = vmatprep.subr.bf16.mxu0 0
    %500 = vmatpush1.bf16.xpose.msra.mxu0 0
    %501 = vmatprep.subr.bf16.mxu0 0
    %502 = vmatpush1.bf16.xpose.msra.mxu0 0
    %503 = vmatprep.subr.bf16.mxu0 0
    %504 = vmatpush1.bf16.xpose.msra.mxu0 0
    %505 = vmatprep.subr.bf16.mxu0 0
    %506 = vmatpush1.bf16.xpose.msra.mxu0 0
    %507 = vmatprep.subr.bf16.mxu0 0
    %508 = vmatpush1.bf16.xpose.msra.mxu0 0
    %509 = vmatprep.subr.bf16.mxu0 0
    %510 = vmatpush1.bf16.xpose.msra.mxu0 0
    %511 = vmatprep.subr.bf16.mxu0 0
    %512 = vmatpush1.bf16.xpose.msra.mxu0 0
    %513 = vmatprep.subr.bf16.mxu0 0
    %514 = vmatpush1.bf16.xpose.msra.mxu0 0
    %515 = vmatprep.subr.bf16.mxu0 0
    %516 = vmatpush1.bf16.xpose.msra.mxu0 0
    %517 = vmatprep.subr.bf16.mxu0 0
    %518 = vmatpush1.bf16.xpose.msra.mxu0 0
    %519 = vmatprep.subr.bf16.mxu0 0
    %520 = vmatpush1.bf16.xpose.msra.mxu0 0
    %521 = vmatprep.subr.bf16.mxu0 0
    %522 = vmatpush1.bf16.xpose.msra.mxu0 0
    %523 = vmatprep.subr.bf16.mxu0 0
    %524 = vmatpush1.bf16.xpose.msra.mxu0 0
    %525 = vmatprep.mubr.bf16.mxu0 0
    %526 = vmatmul.mubr.bf16.gmra.mrb[0].mxu0 %v488
    %v527 = vpop.f32.mrb[0].mxu0
    %v528 = vadd.f32 %v484, %v527
    %v529 = vpop.f32.mrb[0].mxu0
    %v530 = vpop.f32.mrb[0].mxu0
    %v531 = vadd.f32 %v485, %v530
    %v532 = vpop.f32.mrb[0].mxu0
    %533 = vdwg.mxu0
    %v535 = vsel %vm486, %v339, 0
    %v538 = vsel %vm486, %v411, 0
    %540 = vmatprep.subr.bf16.mxu0 0
    %541 = vmatpush1.bf16.xpose.msra.mxu0 %v538
    %542 = vmatprep.subr.bf16.mxu0 0
    %543 = vmatpush1.bf16.xpose.msra.mxu0 0
    %544 = vmatprep.subr.bf16.mxu0 0
    %545 = vmatpush1.bf16.xpose.msra.mxu0 0
    %546 = vmatprep.subr.bf16.mxu0 0
    %547 = vmatpush1.bf16.xpose.msra.mxu0 0
    %548 = vmatprep.subr.bf16.mxu0 0
    %549 = vmatpush1.bf16.xpose.msra.mxu0 0
    %550 = vmatprep.subr.bf16.mxu0 0
    %551 = vmatpush1.bf16.xpose.msra.mxu0 0
    %552 = vmatprep.subr.bf16.mxu0 0
    %553 = vmatpush1.bf16.xpose.msra.mxu0 0
    %554 = vmatprep.subr.bf16.mxu0 0
    %555 = vmatpush1.bf16.xpose.msra.mxu0 0
    %556 = vmatprep.subr.bf16.mxu0 0
    %557 = vmatpush1.bf16.xpose.msra.mxu0 0
    %558 = vmatprep.subr.bf16.mxu0 0
    %559 = vmatpush1.bf16.xpose.msra.mxu0 0
    %560 = vmatprep.subr.bf16.mxu0 0
    %561 = vmatpush1.bf16.xpose.msra.mxu0 0
    %562 = vmatprep.subr.bf16.mxu0 0
    %563 = vmatpush1.bf16.xpose.msra.mxu0 0
    %564 = vmatprep.subr.bf16.mxu0 0
    %565 = vmatpush1.bf16.xpose.msra.mxu0 0
    %566 = vmatprep.subr.bf16.mxu0 0
    %567 = vmatpush1.bf16.xpose.msra.mxu0 0
    %568 = vmatprep.subr.bf16.mxu0 0
    %569 = vmatpush1.bf16.xpose.msra.mxu0 0
    %570 = vmatprep.subr.bf16.mxu0 0
    %571 = vmatpush1.bf16.xpose.msra.mxu0 0
    %572 = vmatprep.mubr.bf16.mxu0 0
    %573 = vmatmul.mubr.bf16.gmra.mrb[0].mxu0 %v535
    %v574 = vpop.f32.mrb[0].mxu0
    %v575 = vadd.f32 %v484, %v574
    %v576 = vpop.f32.mrb[0].mxu0
    %v577 = vpop.f32.mrb[0].mxu0
    %v578 = vadd.f32 %v485, %v577
    %v579 = vpop.f32.mrb[0].mxu0
    %580 = vdwg.mxu0
    %v581 = vmul.f32 %v528, 1.442695
    %v582 = vpow.pop %v581
    %v583 = vmul.f32 %v531, 1.442695
    %v584 = vpow.pop %v583
    %v585 = vmul.f32 %v575, 1.442695
    %v586 = vpow.pop %v585
    %v587 = vmul.f32 %v578, 1.442695
    %v588 = vpow.pop %v587
    %v589 = vsel %vm486, %v582, 0.0
    %590 = vadd.xlane.f32.xlu0 %v589
    %v591 = vpop.xlane.xlu0 %590
    %v592 = vsel %vm486, %v584, 0.0
    %593 = vadd.xlane.f32.xlu0 %v592
    %v594 = vpop.xlane.xlu0 %593
    %v595 = vsel %vm486, %v586, 0.0
    %596 = vadd.xlane.f32.xlu0 %v595
    %v597 = vpop.xlane.xlu0 %596
    %v598 = vsel %vm486, %v588, 0.0
    %599 = vadd.xlane.f32.xlu0 %v598
    %v600 = vpop.xlane.xlu0 %599
    %v601 = vrcp.pop %v591
    %v602 = vrcp.pop %v594
    %v603 = vrcp.pop %v597
    %v604 = vrcp.pop %v600
    %v605 = vmul.f32 %v582, %v601
    %v606 = vmul.f32 %v584, %v602
    %v607 = vmul.f32 %v586, %v603
    %v608 = vmul.f32 %v588, %v604
    %v609 = vpack.c.bf16 %v606, %v605
    %v610 = vpack.c.bf16 %v608, %v607
    %v612 = vsel %vm486, %v609, 0
    %614 = vmatprep.subr.bf16.mxu0 0
    %615 = vmatpush1.bf16.msra.mxu0 %v482
    %616 = vmatprep.subr.bf16.mxu0 0
    %617 = vmatpush1.bf16.msra.mxu0 0
    %618 = vmatprep.subr.bf16.mxu0 0
    %619 = vmatpush1.bf16.msra.mxu0 0
    %620 = vmatprep.subr.bf16.mxu0 0
    %621 = vmatpush1.bf16.msra.mxu0 0
    %622 = vmatprep.subr.bf16.mxu0 0
    %623 = vmatpush1.bf16.msra.mxu0 0
    %624 = vmatprep.subr.bf16.mxu0 0
    %625 = vmatpush1.bf16.msra.mxu0 0
    %626 = vmatprep.subr.bf16.mxu0 0
    %627 = vmatpush1.bf16.msra.mxu0 0
    %628 = vmatprep.subr.bf16.mxu0 0
    %629 = vmatpush1.bf16.msra.mxu0 0
    %630 = vmatprep.subr.bf16.mxu0 0
    %631 = vmatpush1.bf16.msra.mxu0 0
    %632 = vmatprep.subr.bf16.mxu0 0
    %633 = vmatpush1.bf16.msra.mxu0 0
    %634 = vmatprep.subr.bf16.mxu0 0
    %635 = vmatpush1.bf16.msra.mxu0 0
    %636 = vmatprep.subr.bf16.mxu0 0
    %637 = vmatpush1.bf16.msra.mxu0 0
    %638 = vmatprep.subr.bf16.mxu0 0
    %639 = vmatpush1.bf16.msra.mxu0 0
    %640 = vmatprep.subr.bf16.mxu0 0
    %641 = vmatpush1.bf16.msra.mxu0 0
    %642 = vmatprep.subr.bf16.mxu0 0
    %643 = vmatpush1.bf16.msra.mxu0 0
    %644 = vmatprep.subr.bf16.mxu0 0
    %645 = vmatpush1.bf16.msra.mxu0 0
    %646 = vmatprep.mubr.bf16.mxu0 0
    %647 = vmatmul.mubr.bf16.gmra.mrb[0].mxu0 %v612
    %v648 = vpop.f32.mrb[0].mxu0
    %v649 = vadd.f32 0.0, %v648
    %v650 = vpop.f32.mrb[0].mxu0
    %v651 = vpop.f32.mrb[0].mxu0
    %v652 = vadd.f32 0.0, %v651
    %v653 = vpop.f32.mrb[0].mxu0
    %654 = vdwg.mxu0
    %v656 = vsel %vm486, %v610, 0
    %658 = vmatprep.subr.bf16.mxu0 0
    %659 = vmatpush1.bf16.msra.mxu0 %v483
    %660 = vmatprep.subr.bf16.mxu0 0
    %661 = vmatpush1.bf16.msra.mxu0 0
    %662 = vmatprep.subr.bf16.mxu0 0
    %663 = vmatpush1.bf16.msra.mxu0 0
    %664 = vmatprep.subr.bf16.mxu0 0
    %665 = vmatpush1.bf16.msra.mxu0 0
    %666 = vmatprep.subr.bf16.mxu0 0
    %667 = vmatpush1.bf16.msra.mxu0 0
    %668 = vmatprep.subr.bf16.mxu0 0
    %669 = vmatpush1.bf16.msra.mxu0 0
    %670 = vmatprep.subr.bf16.mxu0 0
    %671 = vmatpush1.bf16.msra.mxu0 0
    %672 = vmatprep.subr.bf16.mxu0 0
    %673 = vmatpush1.bf16.msra.mxu0 0
    %674 = vmatprep.subr.bf16.mxu0 0
    %675 = vmatpush1.bf16.msra.mxu0 0
    %676 = vmatprep.subr.bf16.mxu0 0
    %677 = vmatpush1.bf16.msra.mxu0 0
    %678 = vmatprep.subr.bf16.mxu0 0
    %679 = vmatpush1.bf16.msra.mxu0 0
    %680 = vmatprep.subr.bf16.mxu0 0
    %681 = vmatpush1.bf16.msra.mxu0 0
    %682 = vmatprep.subr.bf16.mxu0 0
    %683 = vmatpush1.bf16.msra.mxu0 0
    %684 = vmatprep.subr.bf16.mxu0 0
    %685 = vmatpush1.bf16.msra.mxu0 0
    %686 = vmatprep.subr.bf16.mxu0 0
    %687 = vmatpush1.bf16.msra.mxu0 0
    %688 = vmatprep.subr.bf16.mxu0 0
    %689 = vmatpush1.bf16.msra.mxu0 0
    %690 = vmatprep.mubr.bf16.mxu0 0
    %691 = vmatmul.mubr.bf16.gmra.mrb[0].mxu0 %v656
    %v692 = vpop.f32.mrb[0].mxu0
    %v693 = vadd.f32 0.0, %v692
    %v694 = vpop.f32.mrb[0].mxu0
    %v695 = vpop.f32.mrb[0].mxu0
    %v696 = vadd.f32 0.0, %v695
    %v697 = vpop.f32.mrb[0].mxu0
    %698 = vdwg.mxu0
    %v699 = vpack.c.bf16 %v652, %v649
    %v700 = vpack.c.bf16 %v696, %v693
    %v701 = vld [vmem:[%s1 + $0x78] sm:$0xf]
    %v702 = vld [vmem:[%s1 + $0x7c] sm:$0xf]
    %v703 = vld [vmem:[%s1 + $0x48] sm:$0xf]
    %v704 = vld [vmem:[%s1 + $0x4c] sm:$0xf]
    %v705 = vld [vmem:[%s1 + $0x50] sm:$0xf]
    %v706 = vld [vmem:[%s1 + $0x54] sm:$0xf]
    %v707 = vld [vmem:[%s2 + $0x8] sm:$0x1]
    %v708 = vlaneseq
    %v709 = vshrl.u32 %v708, 7
    %v710 = vsub.s32 0, %v709
    %v711 = vrot.slane %v707, %v710
    %v716 = vunpack.c.l.b16 %v703
    %v717 = vunpack.c.l.b16 %v704
    %v718 = vunpack.c.l.b16 %v705
    %v719 = vunpack.c.l.b16 %v706
    %v720 = vpack.c.b16 %v717, %v716
    %v721 = vpack.c.b16 %v719, %v718
    %724 = vmatprep.subr.bf16.mxu0 0
    %725 = vmatpush1.bf16.msra.mxu0 %v720
    %726 = vmatprep.subr.bf16.mxu0 0
    %727 = vmatpush1.bf16.msra.mxu0 %v721
    %728 = vmatprep.subr.bf16.mxu0 0
    %729 = vmatpush1.bf16.msra.mxu0 0
    %730 = vmatprep.subr.bf16.mxu0 0
    %731 = vmatpush1.bf16.msra.mxu0 0
    %732 = vmatprep.subr.bf16.mxu0 0
    %733 = vmatpush1.bf16.msra.mxu0 0
    %734 = vmatprep.subr.bf16.mxu0 0
    %735 = vmatpush1.bf16.msra.mxu0 0
    %736 = vmatprep.subr.bf16.mxu0 0
    %737 = vmatpush1.bf16.msra.mxu0 0
    %738 = vmatprep.subr.bf16.mxu0 0
    %739 = vmatpush1.bf16.msra.mxu0 0
    %740 = vmatprep.subr.bf16.mxu0 0
    %741 = vmatpush1.bf16.msra.mxu0 0
    %742 = vmatprep.subr.bf16.mxu0 0
    %743 = vmatpush1.bf16.msra.mxu0 0
    %744 = vmatprep.subr.bf16.mxu0 0
    %745 = vmatpush1.bf16.msra.mxu0 0
    %746 = vmatprep.subr.bf16.mxu0 0
    %747 = vmatpush1.bf16.msra.mxu0 0
    %748 = vmatprep.subr.bf16.mxu0 0
    %749 = vmatpush1.bf16.msra.mxu0 0
    %750 = vmatprep.subr.bf16.mxu0 0
    %751 = vmatpush1.bf16.msra.mxu0 0
    %752 = vmatprep.subr.bf16.mxu0 0
    %753 = vmatpush1.bf16.msra.mxu0 0
    %754 = vmatprep.subr.bf16.mxu0 0
    %755 = vmatpush1.bf16.msra.mxu0 0
    %756 = vmatprep.mubr.bf16.mxu0 0
    %757 = vmatmul.mubr.bf16.gmra.mrb[0].mxu0 %v284
    %v758 = vpop.f32.mrb[0].mxu0
    %v759 = vadd.f32 %v711, %v758
    %v760 = vpop.f32.mrb[0].mxu0
    %v761 = vpop.f32.mrb[0].mxu0
    %v762 = vadd.f32 %v711, %v761
    %v763 = vpop.f32.mrb[0].mxu0
    %764 = vmatprep.mubr.bf16.mxu0 0
    %765 = vmatmul.mubr.bf16.gmra.mrb[0].mxu0 %v287
    %v766 = vpop.f32.mrb[0].mxu0
    %v767 = vadd.f32 %v711, %v766
    %v768 = vpop.f32.mrb[0].mxu0
    %v769 = vpop.f32.mrb[0].mxu0
    %v770 = vadd.f32 %v711, %v769
    %v771 = vpop.f32.mrb[0].mxu0
    %772 = vdwg.mxu0
    %v773 = vpack.c.bf16 %v762, %v759
    %v774 = vpack.c.bf16 %v770, %v767
    %v775 = vld [vmem:[%s1 + $0x58] sm:$0xf]
    %v776 = vld [vmem:[%s1 + $0x5c] sm:$0xf]
    %v777 = vld [vmem:[%s1 + $0x60] sm:$0xf]
    %v778 = vld [vmem:[%s1 + $0x64] sm:$0xf]
    %v779 = vld [vmem:[%s2 + $0x9] sm:$0x1]
    %v780 = vlaneseq
    %v781 = vshrl.u32 %v780, 7
    %v782 = vsub.s32 0, %v781
    %v783 = vrot.slane %v779, %v782
    %v788 = vunpack.c.l.b16 %v775
    %v789 = vunpack.c.l.b16 %v776
    %v790 = vunpack.c.l.b16 %v777
    %v791 = vunpack.c.l.b16 %v778
    %v792 = vpack.c.b16 %v789, %v788
    %v793 = vpack.c.b16 %v791, %v790
    %796 = vmatprep.subr.bf16.mxu0 0
    %797 = vmatpush1.bf16.msra.mxu0 %v792
    %798 = vmatprep.subr.bf16.mxu0 0
    %799 = vmatpush1.bf16.msra.mxu0 %v793
    %800 = vmatprep.subr.bf16.mxu0 0
    %801 = vmatpush1.bf16.msra.mxu0 0
    %802 = vmatprep.subr.bf16.mxu0 0
    %803 = vmatpush1.bf16.msra.mxu0 0
    %804 = vmatprep.subr.bf16.mxu0 0
    %805 = vmatpush1.bf16.msra.mxu0 0
    %806 = vmatprep.subr.bf16.mxu0 0
    %807 = vmatpush1.bf16.msra.mxu0 0
    %808 = vmatprep.subr.bf16.mxu0 0
    %809 = vmatpush1.bf16.msra.mxu0 0
    %810 = vmatprep.subr.bf16.mxu0 0
    %811 = vmatpush1.bf16.msra.mxu0 0
    %812 = vmatprep.subr.bf16.mxu0 0
    %813 = vmatpush1.bf16.msra.mxu0 0
    %814 = vmatprep.subr.bf16.mxu0 0
    %815 = vmatpush1.bf16.msra.mxu0 0
    %816 = vmatprep.subr.bf16.mxu0 0
    %817 = vmatpush1.bf16.msra.mxu0 0
    %818 = vmatprep.subr.bf16.mxu0 0
    %819 = vmatpush1.bf16.msra.mxu0 0
    %820 = vmatprep.subr.bf16.mxu0 0
    %821 = vmatpush1.bf16.msra.mxu0 0
    %822 = vmatprep.subr.bf16.mxu0 0
    %823 = vmatpush1.bf16.msra.mxu0 0
    %824 = vmatprep.subr.bf16.mxu0 0
    %825 = vmatpush1.bf16.msra.mxu0 0
    %826 = vmatprep.subr.bf16.mxu0 0
    %827 = vmatpush1.bf16.msra.mxu0 0
    %828 = vmatprep.mubr.bf16.mxu0 0
    %829 = vmatmul.mubr.bf16.gmra.mrb[0].mxu0 %v284
    %v830 = vpop.f32.mrb[0].mxu0
    %v831 = vadd.f32 %v783, %v830
    %v832 = vpop.f32.mrb[0].mxu0
    %v833 = vpop.f32.mrb[0].mxu0
    %v834 = vadd.f32 %v783, %v833
    %v835 = vpop.f32.mrb[0].mxu0
    %836 = vmatprep.mubr.bf16.mxu0 0
    %837 = vmatmul.mubr.bf16.gmra.mrb[0].mxu0 %v287
    %v838 = vpop.f32.mrb[0].mxu0
    %v839 = vadd.f32 %v783, %v838
    %v840 = vpop.f32.mrb[0].mxu0
    %v841 = vpop.f32.mrb[0].mxu0
    %v842 = vadd.f32 %v783, %v841
    %v843 = vpop.f32.mrb[0].mxu0
    %844 = vdwg.mxu0
    %v845 = vpack.c.bf16 %v834, %v831
    %v846 = vpack.c.bf16 %v842, %v839
    %v847 = vld [vmem:[%s1 + $0x68] sm:$0xf]
    %v848 = vld [vmem:[%s1 + $0x6c] sm:$0xf]
    %v849 = vld [vmem:[%s1 + $0x70] sm:$0xf]
    %v850 = vld [vmem:[%s1 + $0x74] sm:$0xf]
    %v851 = vld [vmem:[%s2 + $0xa] sm:$0x1]
    %v852 = vlaneseq
    %v853 = vshrl.u32 %v852, 7
    %v854 = vsub.s32 0, %v853
    %v855 = vrot.slane %v851, %v854
    %v860 = vunpack.c.l.b16 %v847
    %v861 = vunpack.c.l.b16 %v848
    %v862 = vunpack.c.l.b16 %v849
    %v863 = vunpack.c.l.b16 %v850
    %v864 = vpack.c.b16 %v861, %v860
    %v865 = vpack.c.b16 %v863, %v862
    %868 = vmatprep.subr.bf16.mxu0 0
    %869 = vmatpush1.bf16.msra.mxu0 %v864
    %870 = vmatprep.subr.bf16.mxu0 0
    %871 = vmatpush1.bf16.msra.mxu0 %v865
    %872 = vmatprep.subr.bf16.mxu0 0
    %873 = vmatpush1.bf16.msra.mxu0 0
    %874 = vmatprep.subr.bf16.mxu0 0
    %875 = vmatpush1.bf16.msra.mxu0 0
    %876 = vmatprep.subr.bf16.mxu0 0
    %877 = vmatpush1.bf16.msra.mxu0 0
    %878 = vmatprep.subr.bf16.mxu0 0
    %879 = vmatpush1.bf16.msra.mxu0 0
    %880 = vmatprep.subr.bf16.mxu0 0
    %881 = vmatpush1.bf16.msra.mxu0 0
    %882 = vmatprep.subr.bf16.mxu0 0
    %883 = vmatpush1.bf16.msra.mxu0 0
    %884 = vmatprep.subr.bf16.mxu0 0
    %885 = vmatpush1.bf16.msra.mxu0 0
    %886 = vmatprep.subr.bf16.mxu0 0
    %887 = vmatpush1.bf16.msra.mxu0 0
    %888 = vmatprep.subr.bf16.mxu0 0
    %889 = vmatpush1.bf16.msra.mxu0 0
    %890 = vmatprep.subr.bf16.mxu0 0
    %891 = vmatpush1.bf16.msra.mxu0 0
    %892 = vmatprep.subr.bf16.mxu0 0
    %893 = vmatpush1.bf16.msra.mxu0 0
    %894 = vmatprep.subr.bf16.mxu0 0
    %895 = vmatpush1.bf16.msra.mxu0 0
    %896 = vmatprep.subr.bf16.mxu0 0
    %897 = vmatpush1.bf16.msra.mxu0 0
    %898 = vmatprep.subr.bf16.mxu0 0
    %899 = vmatpush1.bf16.msra.mxu0 0
    %900 = vmatprep.mubr.bf16.mxu0 0
    %901 = vmatmul.mubr.bf16.gmra.mrb[0].mxu0 %v284
    %v902 = vpop.f32.mrb[0].mxu0
    %v903 = vadd.f32 %v855, %v902
    %v904 = vpop.f32.mrb[0].mxu0
    %v905 = vpop.f32.mrb[0].mxu0
    %v906 = vadd.f32 %v855, %v905
    %v907 = vpop.f32.mrb[0].mxu0
    %908 = vmatprep.mubr.bf16.mxu0 0
    %909 = vmatmul.mubr.bf16.gmra.mrb[0].mxu0 %v287
    %v910 = vpop.f32.mrb[0].mxu0
    %v911 = vadd.f32 %v855, %v910
    %v912 = vpop.f32.mrb[0].mxu0
    %v913 = vpop.f32.mrb[0].mxu0
    %v914 = vadd.f32 %v855, %v913
    %v915 = vpop.f32.mrb[0].mxu0
    %916 = vdwg.mxu0
    %v917 = vpack.c.bf16 %v906, %v903
    %v918 = vpack.c.bf16 %v914, %v911
    %s919 = scalar_lea.vmem %s3, 16
    %v920 = vld [vmem:[%s919] sm:$0xff]
    %v921 = vld [vmem:[%s919 + $0x8] sm:$0xff]
    %v923 = vsel %vm486, %v773, 0
    %v926 = vsel %vm486, %v845, 0
    %928 = vmatprep.subr.bf16.mxu0 0
    %929 = vmatpush1.bf16.xpose.msra.mxu0 %v926
    %930 = vmatprep.subr.bf16.mxu0 0
    %931 = vmatpush1.bf16.xpose.msra.mxu0 0
    %932 = vmatprep.subr.bf16.mxu0 0
    %933 = vmatpush1.bf16.xpose.msra.mxu0 0
    %934 = vmatprep.subr.bf16.mxu0 0
    %935 = vmatpush1.bf16.xpose.msra.mxu0 0
    %936 = vmatprep.subr.bf16.mxu0 0
    %937 = vmatpush1.bf16.xpose.msra.mxu0 0
    %938 = vmatprep.subr.bf16.mxu0 0
    %939 = vmatpush1.bf16.xpose.msra.mxu0 0
    %940 = vmatprep.subr.bf16.mxu0 0
    %941 = vmatpush1.bf16.xpose.msra.mxu0 0
    %942 = vmatprep.subr.bf16.mxu0 0
    %943 = vmatpush1.bf16.xpose.msra.mxu0 0
    %944 = vmatprep.subr.bf16.mxu0 0
    %945 = vmatpush1.bf16.xpose.msra.mxu0 0
    %946 = vmatprep.subr.bf16.mxu0 0
    %947 = vmatpush1.bf16.xpose.msra.mxu0 0
    %948 = vmatprep.subr.bf16.mxu0 0
    %949 = vmatpush1.bf16.xpose.msra.mxu0 0
    %950 = vmatprep.subr.bf16.mxu0 0
    %951 = vmatpush1.bf16.xpose.msra.mxu0 0
    %952 = vmatprep.subr.bf16.mxu0 0
    %953 = vmatpush1.bf16.xpose.msra.mxu0 0
    %954 = vmatprep.subr.bf16.mxu0 0
    %955 = vmatpush1.bf16.xpose.msra.mxu0 0
    %956 = vmatprep.subr.bf16.mxu0 0
    %957 = vmatpush1.bf16.xpose.msra.mxu0 0
    %958 = vmatprep.subr.bf16.mxu0 0
    %959 = vmatpush1.bf16.xpose.msra.mxu0 0
    %960 = vmatprep.mubr.bf16.mxu0 0
    %961 = vmatmul.mubr.bf16.gmra.mrb[0].mxu0 %v923
    %v962 = vpop.f32.mrb[0].mxu0
    %v963 = vadd.f32 %v920, %v962
    %v964 = vpop.f32.mrb[0].mxu0
    %v965 = vpop.f32.mrb[0].mxu0
    %v966 = vadd.f32 %v921, %v965
    %v967 = vpop.f32.mrb[0].mxu0
    %968 = vdwg.mxu0
    %v970 = vsel %vm486, %v774, 0
    %v973 = vsel %vm486, %v846, 0
    %975 = vmatprep.subr.bf16.mxu0 0
    %976 = vmatpush1.bf16.xpose.msra.mxu0 %v973
    %977 = vmatprep.subr.bf16.mxu0 0
    %978 = vmatpush1.bf16.xpose.msra.mxu0 0
    %979 = vmatprep.subr.bf16.mxu0 0
    %980 = vmatpush1.bf16.xpose.msra.mxu0 0
    %981 = vmatprep.subr.bf16.mxu0 0
    %982 = vmatpush1.bf16.xpose.msra.mxu0 0
    %983 = vmatprep.subr.bf16.mxu0 0
    %984 = vmatpush1.bf16.xpose.msra.mxu0 0
    %985 = vmatprep.subr.bf16.mxu0 0
    %986 = vmatpush1.bf16.xpose.msra.mxu0 0
    %987 = vmatprep.subr.bf16.mxu0 0
    %988 = vmatpush1.bf16.xpose.msra.mxu0 0
    %989 = vmatprep.subr.bf16.mxu0 0
    %990 = vmatpush1.bf16.xpose.msra.mxu0 0
    %991 = vmatprep.subr.bf16.mxu0 0
    %992 = vmatpush1.bf16.xpose.msra.mxu0 0
    %993 = vmatprep.subr.bf16.mxu0 0
    %994 = vmatpush1.bf16.xpose.msra.mxu0 0
    %995 = vmatprep.subr.bf16.mxu0 0
    %996 = vmatpush1.bf16.xpose.msra.mxu0 0
    %997 = vmatprep.subr.bf16.mxu0 0
    %998 = vmatpush1.bf16.xpose.msra.mxu0 0
    %999 = vmatprep.subr.bf16.mxu0 0
    %1000 = vmatpush1.bf16.xpose.msra.mxu0 0
    %1001 = vmatprep.subr.bf16.mxu0 0
    %1002 = vmatpush1.bf16.xpose.msra.mxu0 0
    %1003 = vmatprep.subr.bf16.mxu0 0
    %1004 = vmatpush1.bf16.xpose.msra.mxu0 0
    %1005 = vmatprep.subr.bf16.mxu0 0
    %1006 = vmatpush1.bf16.xpose.msra.mxu0 0
    %1007 = vmatprep.mubr.bf16.mxu0 0
    %1008 = vmatmul.mubr.bf16.gmra.mrb[0].mxu0 %v970
    %v1009 = vpop.f32.mrb[0].mxu0
    %v1010 = vadd.f32 %v920, %v1009
    %v1011 = vpop.f32.mrb[0].mxu0
    %v1012 = vpop.f32.mrb[0].mxu0
    %v1013 = vadd.f32 %v921, %v1012
    %v1014 = vpop.f32.mrb[0].mxu0
    %1015 = vdwg.mxu0
    %v1016 = vmul.f32 %v963, 1.442695
    %v1017 = vpow.pop %v1016
    %v1018 = vmul.f32 %v966, 1.442695
    %v1019 = vpow.pop %v1018
    %v1020 = vmul.f32 %v1010, 1.442695
    %v1021 = vpow.pop %v1020
    %v1022 = vmul.f32 %v1013, 1.442695
    %v1023 = vpow.pop %v1022
    %v1024 = vsel %vm486, %v1017, 0.0
    %1025 = vadd.xlane.f32.xlu0 %v1024
    %v1026 = vpop.xlane.xlu0 %1025
    %v1027 = vsel %vm486, %v1019, 0.0
    %1028 = vadd.xlane.f32.xlu0 %v1027
    %v1029 = vpop.xlane.xlu0 %1028
    %v1030 = vsel %vm486, %v1021, 0.0
    %1031 = vadd.xlane.f32.xlu0 %v1030
    %v1032 = vpop.xlane.xlu0 %1031
    %v1033 = vsel %vm486, %v1023, 0.0
    %1034 = vadd.xlane.f32.xlu0 %v1033
    %v1035 = vpop.xlane.xlu0 %1034
    %v1036 = vrcp.pop %v1026
    %v1037 = vrcp.pop %v1029
    %v1038 = vrcp.pop %v1032
    %v1039 = vrcp.pop %v1035
    %v1040 = vmul.f32 %v1017, %v1036
    %v1041 = vmul.f32 %v1019, %v1037
    %v1042 = vmul.f32 %v1021, %v1038
    %v1043 = vmul.f32 %v1023, %v1039
    %v1044 = vpack.c.bf16 %v1041, %v1040
    %v1045 = vpack.c.bf16 %v1043, %v1042
    %v1047 = vsel %vm486, %v1044, 0
    %1049 = vmatprep.subr.bf16.mxu0 0
    %1050 = vmatpush1.bf16.msra.mxu0 %v917
    %1051 = vmatprep.subr.bf16.mxu0 0
    %1052 = vmatpush1.bf16.msra.mxu0 0
    %1053 = vmatprep.subr.bf16.mxu0 0
    %1054 = vmatpush1.bf16.msra.mxu0 0
    %1055 = vmatprep.subr.bf16.mxu0 0
    %1056 = vmatpush1.bf16.msra.mxu0 0
    %1057 = vmatprep.subr.bf16.mxu0 0
    %1058 = vmatpush1.bf16.msra.mxu0 0
    %1059 = vmatprep.subr.bf16.mxu0 0
    %1060 = vmatpush1.bf16.msra.mxu0 0
    %1061 = vmatprep.subr.bf16.mxu0 0
    %1062 = vmatpush1.bf16.msra.mxu0 0
    %1063 = vmatprep.subr.bf16.mxu0 0
    %1064 = vmatpush1.bf16.msra.mxu0 0
    %1065 = vmatprep.subr.bf16.mxu0 0
    %1066 = vmatpush1.bf16.msra.mxu0 0
    %1067 = vmatprep.subr.bf16.mxu0 0
    %1068 = vmatpush1.bf16.msra.mxu0 0
    %1069 = vmatprep.subr.bf16.mxu0 0
    %1070 = vmatpush1.bf16.msra.mxu0 0
    %1071 = vmatprep.subr.bf16.mxu0 0
    %1072 = vmatpush1.bf16.msra.mxu0 0
    %1073 = vmatprep.subr.bf16.mxu0 0
    %1074 = vmatpush1.bf16.msra.mxu0 0
    %1075 = vmatprep.subr.bf16.mxu0 0
    %1076 = vmatpush1.bf16.msra.mxu0 0
    %1077 = vmatprep.subr.bf16.mxu0 0
    %1078 = vmatpush1.bf16.msra.mxu0 0
    %1079 = vmatprep.subr.bf16.mxu0 0
    %1080 = vmatpush1.bf16.msra.mxu0 0
    %1081 = vmatprep.mubr.bf16.mxu0 0
    %1082 = vmatmul.mubr.bf16.gmra.mrb[0].mxu0 %v1047
    %v1083 = vpop.f32.mrb[0].mxu0
    %v1084 = vadd.f32 0.0, %v1083
    %v1085 = vpop.f32.mrb[0].mxu0
    %v1086 = vpop.f32.mrb[0].mxu0
    %v1087 = vadd.f32 0.0, %v1086
    %v1088 = vpop.f32.mrb[0].mxu0
    %1089 = vdwg.mxu0
    %v1091 = vsel %vm486, %v1045, 0
    %1093 = vmatprep.subr.bf16.mxu0 0
    %1094 = vmatpush1.bf16.msra.mxu0 %v918
    %1095 = vmatprep.subr.bf16.mxu0 0
    %1096 = vmatpush1.bf16.msra.mxu0 0
    %1097 = vmatprep.subr.bf16.mxu0 0
    %1098 = vmatpush1.bf16.msra.mxu0 0
    %1099 = vmatprep.subr.bf16.mxu0 0
    %1100 = vmatpush1.bf16.msra.mxu0 0
    %1101 = vmatprep.subr.bf16.mxu0 0
    %1102 = vmatpush1.bf16.msra.mxu0 0
    %1103 = vmatprep.subr.bf16.mxu0 0
    %1104 = vmatpush1.bf16.msra.mxu0 0
    %1105 = vmatprep.subr.bf16.mxu0 0
    %1106 = vmatpush1.bf16.msra.mxu0 0
    %1107 = vmatprep.subr.bf16.mxu0 0
    %1108 = vmatpush1.bf16.msra.mxu0 0
    %1109 = vmatprep.subr.bf16.mxu0 0
    %1110 = vmatpush1.bf16.msra.mxu0 0
    %1111 = vmatprep.subr.bf16.mxu0 0
    %1112 = vmatpush1.bf16.msra.mxu0 0
    %1113 = vmatprep.subr.bf16.mxu0 0
    %1114 = vmatpush1.bf16.msra.mxu0 0
    %1115 = vmatprep.subr.bf16.mxu0 0
    %1116 = vmatpush1.bf16.msra.mxu0 0
    %1117 = vmatprep.subr.bf16.mxu0 0
    %1118 = vmatpush1.bf16.msra.mxu0 0
    %1119 = vmatprep.subr.bf16.mxu0 0
    %1120 = vmatpush1.bf16.msra.mxu0 0
    %1121 = vmatprep.subr.bf16.mxu0 0
    %1122 = vmatpush1.bf16.msra.mxu0 0
    %1123 = vmatprep.subr.bf16.mxu0 0
    %1124 = vmatpush1.bf16.msra.mxu0 0
    %1125 = vmatprep.mubr.bf16.mxu0 0
    %1126 = vmatmul.mubr.bf16.gmra.mrb[0].mxu0 %v1091
    %v1127 = vpop.f32.mrb[0].mxu0
    %v1128 = vadd.f32 0.0, %v1127
    %v1129 = vpop.f32.mrb[0].mxu0
    %v1130 = vpop.f32.mrb[0].mxu0
    %v1131 = vadd.f32 0.0, %v1130
    %v1132 = vpop.f32.mrb[0].mxu0
    %1133 = vdwg.mxu0
    %v1134 = vpack.c.bf16 %v1087, %v1084
    %v1135 = vpack.c.bf16 %v1131, %v1128
    %v1136 = vld [vmem:[%s1 + $0x80] sm:$0xf]
    %v1137 = vld [vmem:[%s1 + $0x84] sm:$0xf]
    %v1140 = vunpack.c.l.b16 %v1136
    %v1141 = vunpack.c.l.b16 %v1137
    %v1142 = vpack.c.b16 %v1141, %v1140
    %v1145 = vsel %vm486, %v1134, 0
    %v1148 = vsel %vm486, %v1135, 0
    %1150 = vmatprep.subr.bf16.mxu0 0
    %1151 = vmatpush1.bf16.msra.mxu0 %v1142
    %1152 = vmatprep.subr.bf16.mxu0 0
    %1153 = vmatpush1.bf16.msra.mxu0 0
    %1154 = vmatprep.subr.bf16.mxu0 0
    %1155 = vmatpush1.bf16.msra.mxu0 0
    %1156 = vmatprep.subr.bf16.mxu0 0
    %1157 = vmatpush1.bf16.msra.mxu0 0
    %1158 = vmatprep.subr.bf16.mxu0 0
    %1159 = vmatpush1.bf16.msra.mxu0 0
    %1160 = vmatprep.subr.bf16.mxu0 0
    %1161 = vmatpush1.bf16.msra.mxu0 0
    %1162 = vmatprep.subr.bf16.mxu0 0
    %1163 = vmatpush1.bf16.msra.mxu0 0
    %1164 = vmatprep.subr.bf16.mxu0 0
    %1165 = vmatpush1.bf16.msra.mxu0 0
    %1166 = vmatprep.subr.bf16.mxu0 0
    %1167 = vmatpush1.bf16.msra.mxu0 0
    %1168 = vmatprep.subr.bf16.mxu0 0
    %1169 = vmatpush1.bf16.msra.mxu0 0
    %1170 = vmatprep.subr.bf16.mxu0 0
    %1171 = vmatpush1.bf16.msra.mxu0 0
    %1172 = vmatprep.subr.bf16.mxu0 0
    %1173 = vmatpush1.bf16.msra.mxu0 0
    %1174 = vmatprep.subr.bf16.mxu0 0
    %1175 = vmatpush1.bf16.msra.mxu0 0
    %1176 = vmatprep.subr.bf16.mxu0 0
    %1177 = vmatpush1.bf16.msra.mxu0 0
    %1178 = vmatprep.subr.bf16.mxu0 0
    %1179 = vmatpush1.bf16.msra.mxu0 0
    %1180 = vmatprep.subr.bf16.mxu0 0
    %1181 = vmatpush1.bf16.msra.mxu0 0
    %1182 = vmatprep.mubr.bf16.mxu0 0
    %1183 = vmatmul.mubr.bf16.gmra.mrb[0].mxu0 %v1145
    %v1184 = vpop.f32.mrb[0].mxu0
    %v1185 = vadd.f32 0.0, %v1184
    %v1186 = vpop.f32.mrb[0].mxu0
    %v1187 = vpop.f32.mrb[0].mxu0
    %v1188 = vadd.f32 0.0, %v1187
    %v1189 = vpop.f32.mrb[0].mxu0
    %1190 = vmatprep.mubr.bf16.mxu0 0
    %1191 = vmatmul.mubr.bf16.gmra.mrb[0].mxu0 %v1148
    %v1192 = vpop.f32.mrb[0].mxu0
    %v1193 = vadd.f32 0.0, %v1192
    %v1194 = vpop.f32.mrb[0].mxu0
    %v1195 = vpop.f32.mrb[0].mxu0
    %v1196 = vadd.f32 0.0, %v1195
    %v1197 = vpop.f32.mrb[0].mxu0
    %1198 = vdwg.mxu0
    %v1201 = vunpack.c.l.b16 %v701
    %v1202 = vunpack.c.l.b16 %v702
    %v1203 = vpack.c.b16 %v1202, %v1201
    %v1206 = vsel %vm486, %v699, 0
    %v1209 = vsel %vm486, %v700, 0
    %1211 = vmatprep.subr.bf16.mxu0 0
    %1212 = vmatpush1.bf16.msra.mxu0 %v1203
    %1213 = vmatprep.subr.bf16.mxu0 0
    %1214 = vmatpush1.bf16.msra.mxu0 0
    %1215 = vmatprep.subr.bf16.mxu0 0
    %1216 = vmatpush1.bf16.msra.mxu0 0
    %1217 = vmatprep.subr.bf16.mxu0 0
    %1218 = vmatpush1.bf16.msra.mxu0 0
    %1219 = vmatprep.subr.bf16.mxu0 0
    %1220 = vmatpush1.bf16.msra.mxu0 0
    %1221 = vmatprep.subr.bf16.mxu0 0
    %1222 = vmatpush1.bf16.msra.mxu0 0
    %1223 = vmatprep.subr.bf16.mxu0 0
    %1224 = vmatpush1.bf16.msra.mxu0 0
    %1225 = vmatprep.subr.bf16.mxu0 0
    %1226 = vmatpush1.bf16.msra.mxu0 0
    %1227 = vmatprep.subr.bf16.mxu0 0
    %1228 = vmatpush1.bf16.msra.mxu0 0
    %1229 = vmatprep.subr.bf16.mxu0 0
    %1230 = vmatpush1.bf16.msra.mxu0 0
    %1231 = vmatprep.subr.bf16.mxu0 0
    %1232 = vmatpush1.bf16.msra.mxu0 0
    %1233 = vmatprep.subr.bf16.mxu0 0
    %1234 = vmatpush1.bf16.msra.mxu0 0
    %1235 = vmatprep.subr.bf16.mxu0 0
    %1236 = vmatpush1.bf16.msra.mxu0 0
    %1237 = vmatprep.subr.bf16.mxu0 0
    %1238 = vmatpush1.bf16.msra.mxu0 0
    %1239 = vmatprep.subr.bf16.mxu0 0
    %1240 = vmatpush1.bf16.msra.mxu0 0
    %1241 = vmatprep.subr.bf16.mxu0 0
    %1242 = vmatpush1.bf16.msra.mxu0 0
    %1243 = vmatprep.mubr.bf16.mxu0 0
    %1244 = vmatmul.mubr.bf16.gmra.mrb[0].mxu0 %v1206
    %v1245 = vpop.f32.mrb[0].mxu0
    %v1246 = vadd.f32 %v1185, %v1245
    %v1247 = vpop.f32.mrb[0].mxu0
    %v1248 = vpop.f32.mrb[0].mxu0
    %v1249 = vadd.f32 %v1188, %v1248
    %v1250 = vpop.f32.mrb[0].mxu0
    %1251 = vmatprep.mubr.bf16.mxu0 0
    %1252 = vmatmul.mubr.bf16.gmra.mrb[0].mxu0 %v1209
    %v1253 = vpop.f32.mrb[0].mxu0
    %v1254 = vadd.f32 %v1193, %v1253
    %v1255 = vpop.f32.mrb[0].mxu0
    %v1256 = vpop.f32.mrb[0].mxu0
    %v1257 = vadd.f32 %v1196, %v1256
    %v1258 = vpop.f32.mrb[0].mxu0
    %1259 = vdwg.mxu0
    %v1260 = vadd.f32 %v186, %v1246
    %v1261 = vadd.f32 %v187, %v1249
    %v1262 = vadd.f32 %v188, %v1254
    %v1263 = vadd.f32 %v189, %v1257
    %v1264 = vld [vmem:[%s2 + $0xb] sm:$0x1]
    %v1265 = vlaneseq
    %v1266 = vshrl.u32 %v1265, 7
    %v1267 = vsub.s32 0, %v1266
    %v1268 = vrot.slane %v1264, %v1267
    %v1269 = vadd.f32 %v1260, %v1268
    %v1270 = vadd.f32 %v1261, %v1268
    %v1271 = vadd.f32 %v1262, %v1268
    %v1272 = vadd.f32 %v1263, %v1268
    %v1273 = vsel %vm118, %v1269, 0.0
    %1274 = vadd.xlane.f32.xlu0 %v1273
    %v1275 = vpop.xlane.xlu0 %1274
    %v1276 = vsel %vm118, %v1270, 0.0
    %1277 = vadd.xlane.f32.xlu0 %v1276
    %v1278 = vpop.xlane.xlu0 %1277
    %v1279 = vsel %vm118, %v1271, 0.0
    %1280 = vadd.xlane.f32.xlu0 %v1279
    %v1281 = vpop.xlane.xlu0 %1280
    %v1282 = vsel %vm118, %v1272, 0.0
    %1283 = vadd.xlane.f32.xlu0 %v1282
    %v1284 = vpop.xlane.xlu0 %1283
    %v1285 = vmul.f32 %v1275, %v131
    %v1286 = vmul.f32 %v1278, %v131
    %v1287 = vmul.f32 %v1281, %v131
    %v1288 = vmul.f32 %v1284, %v131
    %v1289 = vsub.f32 %v1269, %v1285
    %v1290 = vsub.f32 %v1270, %v1286
    %v1291 = vsub.f32 %v1271, %v1287
    %v1292 = vsub.f32 %v1272, %v1288
    %v1293 = vmul.f32 %v1289, %v1289
    %v1294 = vmul.f32 %v1290, %v1290
    %v1295 = vmul.f32 %v1291, %v1291
    %v1296 = vmul.f32 %v1292, %v1292
    %v1297 = vsel %vm118, %v1293, 0.0
    %1298 = vadd.xlane.f32.xlu0 %v1297
    %v1299 = vpop.xlane.xlu0 %1298
    %v1300 = vsel %vm118, %v1294, 0.0
    %1301 = vadd.xlane.f32.xlu0 %v1300
    %v1302 = vpop.xlane.xlu0 %1301
    %v1303 = vsel %vm118, %v1295, 0.0
    %1304 = vadd.xlane.f32.xlu0 %v1303
    %v1305 = vpop.xlane.xlu0 %1304
    %v1306 = vsel %vm118, %v1296, 0.0
    %1307 = vadd.xlane.f32.xlu0 %v1306
    %v1308 = vpop.xlane.xlu0 %1307
    %v1309 = vmul.f32 %v1299, %v131
    %v1310 = vmul.f32 %v1302, %v131
    %v1311 = vmul.f32 %v1305, %v131
    %v1312 = vmul.f32 %v1308, %v131
    %v1313 = vadd.f32 %v1309, 1e-05
    %v1314 = vadd.f32 %v1310, 1e-05
    %v1315 = vadd.f32 %v1311, 1e-05
    %v1316 = vadd.f32 %v1312, 1e-05
    %v1317 = vrsqrt.pop %v1313
    %v1318 = vrsqrt.pop %v1314
    %v1319 = vrsqrt.pop %v1315
    %v1320 = vrsqrt.pop %v1316
    %v1321 = vmul.f32 %v1289, %v1317
    %v1322 = vmul.f32 %v1290, %v1318
    %v1323 = vmul.f32 %v1291, %v1319
    %v1324 = vmul.f32 %v1292, %v1320
    %v1325 = vld [vmem:[%s2 + $0xc] sm:$0x1]
    %v1326 = vlaneseq
    %v1327 = vshrl.u32 %v1326, 7
    %v1328 = vsub.s32 0, %v1327
    %v1329 = vrot.slane %v1325, %v1328
    %v1330 = vmul.f32 %v1321, %v1329
    %v1331 = vmul.f32 %v1322, %v1329
    %v1332 = vmul.f32 %v1323, %v1329
    %v1333 = vmul.f32 %v1324, %v1329
    %v1334 = vld [vmem:[%s2 + $0xd] sm:$0x1]
    %v1335 = vlaneseq
    %v1336 = vshrl.u32 %v1335, 7
    %v1337 = vsub.s32 0, %v1336
    %v1338 = vrot.slane %v1334, %v1337
    %v1339 = vadd.f32 %v1330, %v1338
    %v1340 = vadd.f32 %v1331, %v1338
    %v1341 = vadd.f32 %v1332, %v1338
    %v1342 = vadd.f32 %v1333, %v1338
    %v1343 = vpack.c.bf16 %v1340, %v1339
    %v1344 = vpack.c.bf16 %v1342, %v1341
    %v1345 = vld [vmem:[%s1 + $0x88] sm:$0xf]
    %v1346 = vld [vmem:[%s1 + $0x8c] sm:$0xf]
    %v1347 = vld [vmem:[%s1 + $0x90] sm:$0xf]
    %v1348 = vld [vmem:[%s1 + $0x94] sm:$0xf]
    %v1349 = vld [vmem:[%s2 + $0xe] sm:$0x1]
    %v1350 = vlaneseq
    %v1351 = vshrl.u32 %v1350, 7
    %v1352 = vsub.s32 0, %v1351
    %v1353 = vrot.slane %v1349, %v1352
    %v1358 = vunpack.c.l.b16 %v1345
    %v1359 = vunpack.c.l.b16 %v1346
    %v1360 = vunpack.c.l.b16 %v1347
    %v1361 = vunpack.c.l.b16 %v1348
    %v1362 = vpack.c.b16 %v1359, %v1358
    %v1363 = vpack.c.b16 %v1361, %v1360
    %v1367 = vsel %vm118, %v1343, 0
    %v1370 = vsel %vm118, %v1344, 0
    %1372 = vmatprep.subr.bf16.mxu0 0
    %1373 = vmatpush1.bf16.msra.mxu0 %v1362
    %1374 = vmatprep.subr.bf16.mxu0 0
    %1375 = vmatpush1.bf16.msra.mxu0 %v1363
    %1376 = vmatprep.subr.bf16.mxu0 0
    %1377 = vmatpush1.bf16.msra.mxu0 0
    %1378 = vmatprep.subr.bf16.mxu0 0
    %1379 = vmatpush1.bf16.msra.mxu0 0
    %1380 = vmatprep.subr.bf16.mxu0 0
    %1381 = vmatpush1.bf16.msra.mxu0 0
    %1382 = vmatprep.subr.bf16.mxu0 0
    %1383 = vmatpush1.bf16.msra.mxu0 0
    %1384 = vmatprep.subr.bf16.mxu0 0
    %1385 = vmatpush1.bf16.msra.mxu0 0
    %1386 = vmatprep.subr.bf16.mxu0 0
    %1387 = vmatpush1.bf16.msra.mxu0 0
    %1388 = vmatprep.subr.bf16.mxu0 0
    %1389 = vmatpush1.bf16.msra.mxu0 0
    %1390 = vmatprep.subr.bf16.mxu0 0
    %1391 = vmatpush1.bf16.msra.mxu0 0
    %1392 = vmatprep.subr.bf16.mxu0 0
    %1393 = vmatpush1.bf16.msra.mxu0 0
    %1394 = vmatprep.subr.bf16.mxu0 0
    %1395 = vmatpush1.bf16.msra.mxu0 0
    %1396 = vmatprep.subr.bf16.mxu0 0
    %1397 = vmatpush1.bf16.msra.mxu0 0
    %1398 = vmatprep.subr.bf16.mxu0 0
    %1399 = vmatpush1.bf16.msra.mxu0 0
    %1400 = vmatprep.subr.bf16.mxu0 0
    %1401 = vmatpush1.bf16.msra.mxu0 0
    %1402 = vmatprep.subr.bf16.mxu0 0
    %1403 = vmatpush1.bf16.msra.mxu0 0
    %1404 = vmatprep.mubr.bf16.mxu0 0
    %1405 = vmatmul.mubr.bf16.gmra.mrb[0].mxu0 %v1367
    %v1406 = vpop.f32.mrb[0].mxu0
    %v1407 = vadd.f32 %v1353, %v1406
    %v1408 = vpop.f32.mrb[0].mxu0
    %v1409 = vpop.f32.mrb[0].mxu0
    %v1410 = vadd.f32 %v1353, %v1409
    %v1411 = vpop.f32.mrb[0].mxu0
    %1412 = vmatprep.mubr.bf16.mxu0 0
    %1413 = vmatmul.mubr.bf16.gmra.mrb[0].mxu0 %v1370
    %v1414 = vpop.f32.mrb[0].mxu0
    %v1415 = vadd.f32 %v1353, %v1414
    %v1416 = vpop.f32.mrb[0].mxu0
    %v1417 = vpop.f32.mrb[0].mxu0
    %v1418 = vadd.f32 %v1353, %v1417
    %v1419 = vpop.f32.mrb[0].mxu0
    %1420 = vdwg.mxu0
    %v1421 = vmul.f32 %v1407, %v1407
    %v1422 = vmul.f32 %v1410, %v1410
    %v1423 = vmul.f32 %v1415, %v1415
    %v1424 = vmul.f32 %v1418, %v1418
    %v1425 = vmul.f32 %v1407, %v1421
    %v1426 = vmul.f32 %v1410, %v1422
    %v1427 = vmul.f32 %v1415, %v1423
    %v1428 = vmul.f32 %v1418, %v1424
    %v1429 = vmul.f32 %v1425, 0.044715
    %v1430 = vmul.f32 %v1426, 0.044715
    %v1431 = vmul.f32 %v1427, 0.044715
    %v1432 = vmul.f32 %v1428, 0.044715
    %v1433 = vadd.f32 %v1407, %v1429
    %v1434 = vadd.f32 %v1410, %v1430
    %v1435 = vadd.f32 %v1415, %v1431
    %v1436 = vadd.f32 %v1418, %v1432
    %v1437 = vmul.f32 %v1433, 0.7978846
    %v1438 = vmul.f32 %v1434, 0.7978846
    %v1439 = vmul.f32 %v1435, 0.7978846
    %v1440 = vmul.f32 %v1436, 0.7978846
    %v1441 = vtanh.pop %v1437
    %v1442 = vtanh.pop %v1438
    %v1443 = vtanh.pop %v1439
    %v1444 = vtanh.pop %v1440
    %v1445 = vadd.f32 %v1441, 1.0
    %v1446 = vadd.f32 %v1442, 1.0
    %v1447 = vadd.f32 %v1443, 1.0
    %v1448 = vadd.f32 %v1444, 1.0
    %v1449 = vmul.f32 %v1445, 0.5
    %v1450 = vmul.f32 %v1446, 0.5
    %v1451 = vmul.f32 %v1447, 0.5
    %v1452 = vmul.f32 %v1448, 0.5
    %v1453 = vmul.f32 %v1407, %v1449
    %v1454 = vmul.f32 %v1410, %v1450
    %v1455 = vmul.f32 %v1415, %v1451
    %v1456 = vmul.f32 %v1418, %v1452
    %v1457 = vpack.c.bf16 %v1454, %v1453
    %v1458 = vpack.c.bf16 %v1456, %v1455
    %v1459 = vld [vmem:[%s1 + $0x98] sm:$0xf]
    %v1460 = vld [vmem:[%s1 + $0x9c] sm:$0xf]
    %v1461 = vld [vmem:[%s1 + $0xa0] sm:$0xf]
    %v1462 = vld [vmem:[%s1 + $0xa4] sm:$0xf]
    %v1463 = vld [vmem:[%s1 + $0xa8] sm:$0xf]
    %v1464 = vld [vmem:[%s1 + $0xac] sm:$0xf]
    %v1465 = vld [vmem:[%s1 + $0xb0] sm:$0xf]
    %v1466 = vld [vmem:[%s1 + $0xb4] sm:$0xf]
    %v1467 = vld [vmem:[%s1 + $0xb8] sm:$0xf]
    %v1468 = vld [vmem:[%s1 + $0xbc] sm:$0xf]
    %v1469 = vld [vmem:[%s1 + $0xc0] sm:$0xf]
    %v1470 = vld [vmem:[%s1 + $0xc4] sm:$0xf]
    %v1471 = vld [vmem:[%s1 + $0xc8] sm:$0xf]
    %v1472 = vld [vmem:[%s1 + $0xcc] sm:$0xf]
    %v1473 = vld [vmem:[%s1 + $0xd0] sm:$0xf]
    %v1474 = vld [vmem:[%s1 + $0xd4] sm:$0xf]
    %v1491 = vunpack.c.l.b16 %v1459
    %v1492 = vunpack.c.l.b16 %v1460
    %v1493 = vunpack.c.l.b16 %v1461
    %v1494 = vunpack.c.l.b16 %v1462
    %v1495 = vunpack.c.l.b16 %v1463
    %v1496 = vunpack.c.l.b16 %v1464
    %v1497 = vunpack.c.l.b16 %v1465
    %v1498 = vunpack.c.l.b16 %v1466
    %v1499 = vunpack.c.l.b16 %v1467
    %v1500 = vunpack.c.l.b16 %v1468
    %v1501 = vunpack.c.l.b16 %v1469
    %v1502 = vunpack.c.l.b16 %v1470
    %v1503 = vunpack.c.l.b16 %v1471
    %v1504 = vunpack.c.l.b16 %v1472
    %v1505 = vunpack.c.l.b16 %v1473
    %v1506 = vunpack.c.l.b16 %v1474
    %v1507 = vpack.c.b16 %v1492, %v1491
    %v1508 = vpack.c.b16 %v1494, %v1493
    %v1509 = vpack.c.b16 %v1496, %v1495
    %v1510 = vpack.c.b16 %v1498, %v1497
    %v1511 = vpack.c.b16 %v1500, %v1499
    %v1512 = vpack.c.b16 %v1502, %v1501
    %v1513 = vpack.c.b16 %v1504, %v1503
    %v1514 = vpack.c.b16 %v1506, %v1505
    %1523 = vmatprep.subr.bf16.mxu0 0
    %1524 = vmatpush1.bf16.msra.mxu0 %v1507
    %1525 = vmatprep.subr.bf16.mxu0 0
    %1526 = vmatpush1.bf16.msra.mxu0 %v1508
    %1527 = vmatprep.subr.bf16.mxu0 0
    %1528 = vmatpush1.bf16.msra.mxu0 %v1509
    %1529 = vmatprep.subr.bf16.mxu0 0
    %1530 = vmatpush1.bf16.msra.mxu0 %v1510
    %1531 = vmatprep.subr.bf16.mxu0 0
    %1532 = vmatpush1.bf16.msra.mxu0 %v1511
    %1533 = vmatprep.subr.bf16.mxu0 0
    %1534 = vmatpush1.bf16.msra.mxu0 %v1512
    %1535 = vmatprep.subr.bf16.mxu0 0
    %1536 = vmatpush1.bf16.msra.mxu0 %v1513
    %1537 = vmatprep.subr.bf16.mxu0 0
    %1538 = vmatpush1.bf16.msra.mxu0 %v1514
    %1539 = vmatprep.subr.bf16.mxu0 0
    %1540 = vmatpush1.bf16.msra.mxu0 0
    %1541 = vmatprep.subr.bf16.mxu0 0
    %1542 = vmatpush1.bf16.msra.mxu0 0
    %1543 = vmatprep.subr.bf16.mxu0 0
    %1544 = vmatpush1.bf16.msra.mxu0 0
    %1545 = vmatprep.subr.bf16.mxu0 0
    %1546 = vmatpush1.bf16.msra.mxu0 0
    %1547 = vmatprep.subr.bf16.mxu0 0
    %1548 = vmatpush1.bf16.msra.mxu0 0
    %1549 = vmatprep.subr.bf16.mxu0 0
    %1550 = vmatpush1.bf16.msra.mxu0 0
    %1551 = vmatprep.subr.bf16.mxu0 0
    %1552 = vmatpush1.bf16.msra.mxu0 0
    %1553 = vmatprep.subr.bf16.mxu0 0
    %1554 = vmatpush1.bf16.msra.mxu0 0
    %1555 = vmatprep.mubr.bf16.mxu0 0
    %1556 = vmatmul.mubr.bf16.gmra.mrb[0].mxu0 %v1457
    %v1557 = vpop.f32.mrb[0].mxu0
    %v1558 = vadd.f32 0.0, %v1557
    %v1559 = vpop.f32.mrb[0].mxu0
    %v1560 = vpop.f32.mrb[0].mxu0
    %v1561 = vadd.f32 0.0, %v1560
    %v1562 = vpop.f32.mrb[0].mxu0
    %1563 = vmatprep.mubr.bf16.mxu0 0
    %1564 = vmatmul.mubr.bf16.gmra.mrb[0].mxu0 %v1458
    %v1565 = vpop.f32.mrb[0].mxu0
    %v1566 = vadd.f32 0.0, %v1565
    %v1567 = vpop.f32.mrb[0].mxu0
    %v1568 = vpop.f32.mrb[0].mxu0
    %v1569 = vadd.f32 0.0, %v1568
    %v1570 = vpop.f32.mrb[0].mxu0
    %1571 = vdwg.mxu0
    %v1572 = vadd.f32 %v1269, %v1558
    %v1573 = vadd.f32 %v1270, %v1561
    %v1574 = vadd.f32 %v1271, %v1566
    %v1575 = vadd.f32 %v1272, %v1569
    %v1576 = vld [vmem:[%s2 + $0xf] sm:$0x1]
    %v1577 = vlaneseq
    %v1578 = vshrl.u32 %v1577, 7
    %v1579 = vsub.s32 0, %v1578
    %v1580 = vrot.slane %v1576, %v1579
    %v1581 = vadd.f32 %v1572, %v1580
    %v1582 = vadd.f32 %v1573, %v1580
    %v1583 = vadd.f32 %v1574, %v1580
    %v1584 = vadd.f32 %v1575, %v1580
    %v1585 = vsel %vm118, %v1581, 0.0
    %1586 = vadd.xlane.f32.xlu0 %v1585
    %v1587 = vpop.xlane.xlu0 %1586
    %v1588 = vsel %vm118, %v1582, 0.0
    %1589 = vadd.xlane.f32.xlu0 %v1588
    %v1590 = vpop.xlane.xlu0 %1589
    %v1591 = vsel %vm118, %v1583, 0.0
    %1592 = vadd.xlane.f32.xlu0 %v1591
    %v1593 = vpop.xlane.xlu0 %1592
    %v1594 = vsel %vm118, %v1584, 0.0
    %1595 = vadd.xlane.f32.xlu0 %v1594
    %v1596 = vpop.xlane.xlu0 %1595
    %v1597 = vmul.f32 %v1587, %v131
    %v1598 = vmul.f32 %v1590, %v131
    %v1599 = vmul.f32 %v1593, %v131
    %v1600 = vmul.f32 %v1596, %v131
    %v1601 = vsub.f32 %v1581, %v1597
    %v1602 = vsub.f32 %v1582, %v1598
    %v1603 = vsub.f32 %v1583, %v1599
    %v1604 = vsub.f32 %v1584, %v1600
    %v1605 = vmul.f32 %v1601, %v1601
    %v1606 = vmul.f32 %v1602, %v1602
    %v1607 = vmul.f32 %v1603, %v1603
    %v1608 = vmul.f32 %v1604, %v1604
    %v1609 = vsel %vm118, %v1605, 0.0
    %1610 = vadd.xlane.f32.xlu0 %v1609
    %v1611 = vpop.xlane.xlu0 %1610
    %v1612 = vsel %vm118, %v1606, 0.0
    %1613 = vadd.xlane.f32.xlu0 %v1612
    %v1614 = vpop.xlane.xlu0 %1613
    %v1615 = vsel %vm118, %v1607, 0.0
    %1616 = vadd.xlane.f32.xlu0 %v1615
    %v1617 = vpop.xlane.xlu0 %1616
    %v1618 = vsel %vm118, %v1608, 0.0
    %1619 = vadd.xlane.f32.xlu0 %v1618
    %v1620 = vpop.xlane.xlu0 %1619
    %v1621 = vmul.f32 %v1611, %v131
    %v1622 = vmul.f32 %v1614, %v131
    %v1623 = vmul.f32 %v1617, %v131
    %v1624 = vmul.f32 %v1620, %v131
    %v1625 = vadd.f32 %v1621, 1e-05
    %v1626 = vadd.f32 %v1622, 1e-05
    %v1627 = vadd.f32 %v1623, 1e-05
    %v1628 = vadd.f32 %v1624, 1e-05
    %v1629 = vrsqrt.pop %v1625
    %v1630 = vrsqrt.pop %v1626
    %v1631 = vrsqrt.pop %v1627
    %v1632 = vrsqrt.pop %v1628
    %v1633 = vmul.f32 %v1601, %v1629
    %v1634 = vmul.f32 %v1602, %v1630
    %v1635 = vmul.f32 %v1603, %v1631
    %v1636 = vmul.f32 %v1604, %v1632
    %v1637 = vld [vmem:[%s2 + $0x10] sm:$0x1]
    %v1638 = vlaneseq
    %v1639 = vshrl.u32 %v1638, 7
    %v1640 = vsub.s32 0, %v1639
    %v1641 = vrot.slane %v1637, %v1640
    %v1642 = vmul.f32 %v1633, %v1641
    %v1643 = vmul.f32 %v1634, %v1641
    %v1644 = vmul.f32 %v1635, %v1641
    %v1645 = vmul.f32 %v1636, %v1641
    %v1646 = vld [vmem:[%s2 + $0x11] sm:$0x1]
    %v1647 = vlaneseq
    %v1648 = vshrl.u32 %v1647, 7
    %v1649 = vsub.s32 0, %v1648
    %v1650 = vrot.slane %v1646, %v1649
    %v1651 = vadd.f32 %v1642, %v1650
    %v1652 = vadd.f32 %v1643, %v1650
    %v1653 = vadd.f32 %v1644, %v1650
    %v1654 = vadd.f32 %v1645, %v1650
    %v1655 = vpack.c.bf16 %v1652, %v1651
    %v1656 = vpack.c.bf16 %v1654, %v1653
    %v1657 = vld [vmem:[%s1 + $0xd8] sm:$0xf]
    %v1658 = vld [vmem:[%s1 + $0xdc] sm:$0xf]
    %v1659 = vld [vmem:[%s1 + $0xe0] sm:$0xf]
    %v1660 = vld [vmem:[%s1 + $0xe4] sm:$0xf]
    %v1661 = vld [vmem:[%s2 + $0x12] sm:$0x1]
    %v1662 = vlaneseq
    %v1663 = vshrl.u32 %v1662, 7
    %v1664 = vsub.s32 0, %v1663
    %v1665 = vrot.slane %v1661, %v1664
    %v1670 = vunpack.c.l.b16 %v1657
    %v1671 = vunpack.c.l.b16 %v1658
    %v1672 = vunpack.c.l.b16 %v1659
    %v1673 = vunpack.c.l.b16 %v1660
    %v1674 = vpack.c.b16 %v1671, %v1670
    %v1675 = vpack.c.b16 %v1673, %v1672
    %v1679 = vsel %vm118, %v1655, 0
    %v1682 = vsel %vm118, %v1656, 0
    %1684 = vmatprep.subr.bf16.mxu0 0
    %1685 = vmatpush1.bf16.msra.mxu0 %v1674
    %1686 = vmatprep.subr.bf16.mxu0 0
    %1687 = vmatpush1.bf16.msra.mxu0 %v1675
    %1688 = vmatprep.subr.bf16.mxu0 0
    %1689 = vmatpush1.bf16.msra.mxu0 0
    %1690 = vmatprep.subr.bf16.mxu0 0
    %1691 = vmatpush1.bf16.msra.mxu0 0
    %1692 = vmatprep.subr.bf16.mxu0 0
    %1693 = vmatpush1.bf16.msra.mxu0 0
    %1694 = vmatprep.subr.bf16.mxu0 0
    %1695 = vmatpush1.bf16.msra.mxu0 0
    %1696 = vmatprep.subr.bf16.mxu0 0
    %1697 = vmatpush1.bf16.msra.mxu0 0
    %1698 = vmatprep.subr.bf16.mxu0 0
    %1699 = vmatpush1.bf16.msra.mxu0 0
    %1700 = vmatprep.subr.bf16.mxu0 0
    %1701 = vmatpush1.bf16.msra.mxu0 0
    %1702 = vmatprep.subr.bf16.mxu0 0
    %1703 = vmatpush1.bf16.msra.mxu0 0
    %1704 = vmatprep.subr.bf16.mxu0 0
    %1705 = vmatpush1.bf16.msra.mxu0 0
    %1706 = vmatprep.subr.bf16.mxu0 0
    %1707 = vmatpush1.bf16.msra.mxu0 0
    %1708 = vmatprep.subr.bf16.mxu0 0
    %1709 = vmatpush1.bf16.msra.mxu0 0
    %1710 = vmatprep.subr.bf16.mxu0 0
    %1711 = vmatpush1.bf16.msra.mxu0 0
    %1712 = vmatprep.subr.bf16.mxu0 0
    %1713 = vmatpush1.bf16.msra.mxu0 0
    %1714 = vmatprep.subr.bf16.mxu0 0
    %1715 = vmatpush1.bf16.msra.mxu0 0
    %1716 = vmatprep.mubr.bf16.mxu0 0
    %1717 = vmatmul.mubr.bf16.gmra.mrb[0].mxu0 %v1679
    %v1718 = vpop.f32.mrb[0].mxu0
    %v1719 = vadd.f32 %v1665, %v1718
    %v1720 = vpop.f32.mrb[0].mxu0
    %v1721 = vpop.f32.mrb[0].mxu0
    %v1722 = vadd.f32 %v1665, %v1721
    %v1723 = vpop.f32.mrb[0].mxu0
    %1724 = vmatprep.mubr.bf16.mxu0 0
    %1725 = vmatmul.mubr.bf16.gmra.mrb[0].mxu0 %v1682
    %v1726 = vpop.f32.mrb[0].mxu0
    %v1727 = vadd.f32 %v1665, %v1726
    %v1728 = vpop.f32.mrb[0].mxu0
    %v1729 = vpop.f32.mrb[0].mxu0
    %v1730 = vadd.f32 %v1665, %v1729
    %v1731 = vpop.f32.mrb[0].mxu0
    %1732 = vdwg.mxu0
    %v1733 = vpack.c.bf16 %v1722, %v1719
    %v1734 = vpack.c.bf16 %v1730, %v1727
    %v1735 = vld [vmem:[%s1 + $0xe8] sm:$0xf]
    %v1736 = vld [vmem:[%s1 + $0xec] sm:$0xf]
    %v1737 = vld [vmem:[%s1 + $0xf0] sm:$0xf]
    %v1738 = vld [vmem:[%s1 + $0xf4] sm:$0xf]
    %v1739 = vld [vmem:[%s2 + $0x13] sm:$0x1]
    %v1740 = vlaneseq
    %v1741 = vshrl.u32 %v1740, 7
    %v1742 = vsub.s32 0, %v1741
    %v1743 = vrot.slane %v1739, %v1742
    %v1748 = vunpack.c.l.b16 %v1735
    %v1749 = vunpack.c.l.b16 %v1736
    %v1750 = vunpack.c.l.b16 %v1737
    %v1751 = vunpack.c.l.b16 %v1738
    %v1752 = vpack.c.b16 %v1749, %v1748
    %v1753 = vpack.c.b16 %v1751, %v1750
    %1756 = vmatprep.subr.bf16.mxu0 0
    %1757 = vmatpush1.bf16.msra.mxu0 %v1752
    %1758 = vmatprep.subr.bf16.mxu0 0
    %1759 = vmatpush1.bf16.msra.mxu0 %v1753
    %1760 = vmatprep.subr.bf16.mxu0 0
    %1761 = vmatpush1.bf16.msra.mxu0 0
    %1762 = vmatprep.subr.bf16.mxu0 0
    %1763 = vmatpush1.bf16.msra.mxu0 0
    %1764 = vmatprep.subr.bf16.mxu0 0
    %1765 = vmatpush1.bf16.msra.mxu0 0
    %1766 = vmatprep.subr.bf16.mxu0 0
    %1767 = vmatpush1.bf16.msra.mxu0 0
    %1768 = vmatprep.subr.bf16.mxu0 0
    %1769 = vmatpush1.bf16.msra.mxu0 0
    %1770 = vmatprep.subr.bf16.mxu0 0
    %1771 = vmatpush1.bf16.msra.mxu0 0
    %1772 = vmatprep.subr.bf16.mxu0 0
    %1773 = vmatpush1.bf16.msra.mxu0 0
    %1774 = vmatprep.subr.bf16.mxu0 0
    %1775 = vmatpush1.bf16.msra.mxu0 0
    %1776 = vmatprep.subr.bf16.mxu0 0
    %1777 = vmatpush1.bf16.msra.mxu0 0
    %1778 = vmatprep.subr.bf16.mxu0 0
    %1779 = vmatpush1.bf16.msra.mxu0 0
    %1780 = vmatprep.subr.bf16.mxu0 0
    %1781 = vmatpush1.bf16.msra.mxu0 0
    %1782 = vmatprep.subr.bf16.mxu0 0
    %1783 = vmatpush1.bf16.msra.mxu0 0
    %1784 = vmatprep.subr.bf16.mxu0 0
    %1785 = vmatpush1.bf16.msra.mxu0 0
    %1786 = vmatprep.subr.bf16.mxu0 0
    %1787 = vmatpush1.bf16.msra.mxu0 0
    %1788 = vmatprep.mubr.bf16.mxu0 0
    %1789 = vmatmul.mubr.bf16.gmra.mrb[0].mxu0 %v1679
    %v1790 = vpop.f32.mrb[0].mxu0
    %v1791 = vadd.f32 %v1743, %v1790
    %v1792 = vpop.f32.mrb[0].mxu0
    %v1793 = vpop.f32.mrb[0].mxu0
    %v1794 = vadd.f32 %v1743, %v1793
    %v1795 = vpop.f32.mrb[0].mxu0
    %1796 = vmatprep.mubr.bf16.mxu0 0
    %1797 = vmatmul.mubr.bf16.gmra.mrb[0].mxu0 %v1682
    %v1798 = vpop.f32.mrb[0].mxu0
    %v1799 = vadd.f32 %v1743, %v1798
    %v1800 = vpop.f32.mrb[0].mxu0
    %v1801 = vpop.f32.mrb[0].mxu0
    %v1802 = vadd.f32 %v1743, %v1801
    %v1803 = vpop.f32.mrb[0].mxu0
    %1804 = vdwg.mxu0
    %v1805 = vpack.c.bf16 %v1794, %v1791
    %v1806 = vpack.c.bf16 %v1802, %v1799
    %v1807 = vld [vmem:[%s1 + $0xf8] sm:$0xf]
    %v1808 = vld [vmem:[%s1 + $0xfc] sm:$0xf]
    %v1809 = vld [vmem:[%s1 + $0x100] sm:$0xf]
    %v1810 = vld [vmem:[%s1 + $0x104] sm:$0xf]
    %v1811 = vld [vmem:[%s2 + $0x14] sm:$0x1]
    %v1812 = vlaneseq
    %v1813 = vshrl.u32 %v1812, 7
    %v1814 = vsub.s32 0, %v1813
    %v1815 = vrot.slane %v1811, %v1814
    %v1820 = vunpack.c.l.b16 %v1807
    %v1821 = vunpack.c.l.b16 %v1808
    %v1822 = vunpack.c.l.b16 %v1809
    %v1823 = vunpack.c.l.b16 %v1810
    %v1824 = vpack.c.b16 %v1821, %v1820
    %v1825 = vpack.c.b16 %v1823, %v1822
    %1828 = vmatprep.subr.bf16.mxu0 0
    %1829 = vmatpush1.bf16.msra.mxu0 %v1824
    %1830 = vmatprep.subr.bf16.mxu0 0
    %1831 = vmatpush1.bf16.msra.mxu0 %v1825
    %1832 = vmatprep.subr.bf16.mxu0 0
    %1833 = vmatpush1.bf16.msra.mxu0 0
    %1834 = vmatprep.subr.bf16.mxu0 0
    %1835 = vmatpush1.bf16.msra.mxu0 0
    %1836 = vmatprep.subr.bf16.mxu0 0
    %1837 = vmatpush1.bf16.msra.mxu0 0
    %1838 = vmatprep.subr.bf16.mxu0 0
    %1839 = vmatpush1.bf16.msra.mxu0 0
    %1840 = vmatprep.subr.bf16.mxu0 0
    %1841 = vmatpush1.bf16.msra.mxu0 0
    %1842 = vmatprep.subr.bf16.mxu0 0
    %1843 = vmatpush1.bf16.msra.mxu0 0
    %1844 = vmatprep.subr.bf16.mxu0 0
    %1845 = vmatpush1.bf16.msra.mxu0 0
    %1846 = vmatprep.subr.bf16.mxu0 0
    %1847 = vmatpush1.bf16.msra.mxu0 0
    %1848 = vmatprep.subr.bf16.mxu0 0
    %1849 = vmatpush1.bf16.msra.mxu0 0
    %1850 = vmatprep.subr.bf16.mxu0 0
    %1851 = vmatpush1.bf16.msra.mxu0 0
    %1852 = vmatprep.subr.bf16.mxu0 0
    %1853 = vmatpush1.bf16.msra.mxu0 0
    %1854 = vmatprep.subr.bf16.mxu0 0
    %1855 = vmatpush1.bf16.msra.mxu0 0
    %1856 = vmatprep.subr.bf16.mxu0 0
    %1857 = vmatpush1.bf16.msra.mxu0 0
    %1858 = vmatprep.subr.bf16.mxu0 0
    %1859 = vmatpush1.bf16.msra.mxu0 0
    %1860 = vmatprep.mubr.bf16.mxu0 0
    %1861 = vmatmul.mubr.bf16.gmra.mrb[0].mxu0 %v1679
    %v1862 = vpop.f32.mrb[0].mxu0
    %v1863 = vadd.f32 %v1815, %v1862
    %v1864 = vpop.f32.mrb[0].mxu0
    %v1865 = vpop.f32.mrb[0].mxu0
    %v1866 = vadd.f32 %v1815, %v1865
    %v1867 = vpop.f32.mrb[0].mxu0
    %1868 = vmatprep.mubr.bf16.mxu0 0
    %1869 = vmatmul.mubr.bf16.gmra.mrb[0].mxu0 %v1682
    %v1870 = vpop.f32.mrb[0].mxu0
    %v1871 = vadd.f32 %v1815, %v1870
    %v1872 = vpop.f32.mrb[0].mxu0
    %v1873 = vpop.f32.mrb[0].mxu0
    %v1874 = vadd.f32 %v1815, %v1873
    %v1875 = vpop.f32.mrb[0].mxu0
    %1876 = vdwg.mxu0
    %v1877 = vpack.c.bf16 %v1866, %v1863
    %v1878 = vpack.c.bf16 %v1874, %v1871
    %s1879 = scalar_lea.vmem %s3, 32
    %v1880 = vld [vmem:[%s1879] sm:$0xff]
    %v1881 = vld [vmem:[%s1879 + $0x8] sm:$0xff]
    %v1883 = vsel %vm486, %v1733, 0
    %v1886 = vsel %vm486, %v1805, 0
    %1888 = vmatprep.subr.bf16.mxu0 0
    %1889 = vmatpush1.bf16.xpose.msra.mxu0 %v1886
    %1890 = vmatprep.subr.bf16.mxu0 0
    %1891 = vmatpush1.bf16.xpose.msra.mxu0 0
    %1892 = vmatprep.subr.bf16.mxu0 0
    %1893 = vmatpush1.bf16.xpose.msra.mxu0 0
    %1894 = vmatprep.subr.bf16.mxu0 0
    %1895 = vmatpush1.bf16.xpose.msra.mxu0 0
    %1896 = vmatprep.subr.bf16.mxu0 0
    %1897 = vmatpush1.bf16.xpose.msra.mxu0 0
    %1898 = vmatprep.subr.bf16.mxu0 0
    %1899 = vmatpush1.bf16.xpose.msra.mxu0 0
    %1900 = vmatprep.subr.bf16.mxu0 0
    %1901 = vmatpush1.bf16.xpose.msra.mxu0 0
    %1902 = vmatprep.subr.bf16.mxu0 0
    %1903 = vmatpush1.bf16.xpose.msra.mxu0 0
    %1904 = vmatprep.subr.bf16.mxu0 0
    %1905 = vmatpush1.bf16.xpose.msra.mxu0 0
    %1906 = vmatprep.subr.bf16.mxu0 0
    %1907 = vmatpush1.bf16.xpose.msra.mxu0 0
    %1908 = vmatprep.subr.bf16.mxu0 0
    %1909 = vmatpush1.bf16.xpose.msra.mxu0 0
    %1910 = vmatprep.subr.bf16.mxu0 0
    %1911 = vmatpush1.bf16.xpose.msra.mxu0 0
    %1912 = vmatprep.subr.bf16.mxu0 0
    %1913 = vmatpush1.bf16.xpose.msra.mxu0 0
    %1914 = vmatprep.subr.bf16.mxu0 0
    %1915 = vmatpush1.bf16.xpose.msra.mxu0 0
    %1916 = vmatprep.subr.bf16.mxu0 0
    %1917 = vmatpush1.bf16.xpose.msra.mxu0 0
    %1918 = vmatprep.subr.bf16.mxu0 0
    %1919 = vmatpush1.bf16.xpose.msra.mxu0 0
    %1920 = vmatprep.mubr.bf16.mxu0 0
    %1921 = vmatmul.mubr.bf16.gmra.mrb[0].mxu0 %v1883
    %v1922 = vpop.f32.mrb[0].mxu0
    %v1923 = vadd.f32 %v1880, %v1922
    %v1924 = vpop.f32.mrb[0].mxu0
    %v1925 = vpop.f32.mrb[0].mxu0
    %v1926 = vadd.f32 %v1881, %v1925
    %v1927 = vpop.f32.mrb[0].mxu0
    %1928 = vdwg.mxu0
    %v1930 = vsel %vm486, %v1734, 0
    %v1933 = vsel %vm486, %v1806, 0
    %1935 = vmatprep.subr.bf16.mxu0 0
    %1936 = vmatpush1.bf16.xpose.msra.mxu0 %v1933
    %1937 = vmatprep.subr.bf16.mxu0 0
    %1938 = vmatpush1.bf16.xpose.msra.mxu0 0
    %1939 = vmatprep.subr.bf16.mxu0 0
    %1940 = vmatpush1.bf16.xpose.msra.mxu0 0
    %1941 = vmatprep.subr.bf16.mxu0 0
    %1942 = vmatpush1.bf16.xpose.msra.mxu0 0
    %1943 = vmatprep.subr.bf16.mxu0 0
    %1944 = vmatpush1.bf16.xpose.msra.mxu0 0
    %1945 = vmatprep.subr.bf16.mxu0 0
    %1946 = vmatpush1.bf16.xpose.msra.mxu0 0
    %1947 = vmatprep.subr.bf16.mxu0 0
    %1948 = vmatpush1.bf16.xpose.msra.mxu0 0
    %1949 = vmatprep.subr.bf16.mxu0 0
    %1950 = vmatpush1.bf16.xpose.msra.mxu0 0
    %1951 = vmatprep.subr.bf16.mxu0 0
    %1952 = vmatpush1.bf16.xpose.msra.mxu0 0
    %1953 = vmatprep.subr.bf16.mxu0 0
    %1954 = vmatpush1.bf16.xpose.msra.mxu0 0
    %1955 = vmatprep.subr.bf16.mxu0 0
    %1956 = vmatpush1.bf16.xpose.msra.mxu0 0
    %1957 = vmatprep.subr.bf16.mxu0 0
    %1958 = vmatpush1.bf16.xpose.msra.mxu0 0
    %1959 = vmatprep.subr.bf16.mxu0 0
    %1960 = vmatpush1.bf16.xpose.msra.mxu0 0
    %1961 = vmatprep.subr.bf16.mxu0 0
    %1962 = vmatpush1.bf16.xpose.msra.mxu0 0
    %1963 = vmatprep.subr.bf16.mxu0 0
    %1964 = vmatpush1.bf16.xpose.msra.mxu0 0
    %1965 = vmatprep.subr.bf16.mxu0 0
    %1966 = vmatpush1.bf16.xpose.msra.mxu0 0
    %1967 = vmatprep.mubr.bf16.mxu0 0
    %1968 = vmatmul.mubr.bf16.gmra.mrb[0].mxu0 %v1930
    %v1969 = vpop.f32.mrb[0].mxu0
    %v1970 = vadd.f32 %v1880, %v1969
    %v1971 = vpop.f32.mrb[0].mxu0
    %v1972 = vpop.f32.mrb[0].mxu0
    %v1973 = vadd.f32 %v1881, %v1972
    %v1974 = vpop.f32.mrb[0].mxu0
    %1975 = vdwg.mxu0
    %v1976 = vmul.f32 %v1923, 1.442695
    %v1977 = vpow.pop %v1976
    %v1978 = vmul.f32 %v1926, 1.442695
    %v1979 = vpow.pop %v1978
    %v1980 = vmul.f32 %v1970, 1.442695
    %v1981 = vpow.pop %v1980
    %v1982 = vmul.f32 %v1973, 1.442695
    %v1983 = vpow.pop %v1982
    %v1984 = vsel %vm486, %v1977, 0.0
    %1985 = vadd.xlane.f32.xlu0 %v1984
    %v1986 = vpop.xlane.xlu0 %1985
    %v1987 = vsel %vm486, %v1979, 0.0
    %1988 = vadd.xlane.f32.xlu0 %v1987
    %v1989 = vpop.xlane.xlu0 %1988
    %v1990 = vsel %vm486, %v1981, 0.0
    %1991 = vadd.xlane.f32.xlu0 %v1990
    %v1992 = vpop.xlane.xlu0 %1991
    %v1993 = vsel %vm486, %v1983, 0.0
    %1994 = vadd.xlane.f32.xlu0 %v1993
    %v1995 = vpop.xlane.xlu0 %1994
    %v1996 = vrcp.pop %v1986
    %v1997 = vrcp.pop %v1989
    %v1998 = vrcp.pop %v1992
    %v1999 = vrcp.pop %v1995
    %v2000 = vmul.f32 %v1977, %v1996
    %v2001 = vmul.f32 %v1979, %v1997
    %v2002 = vmul.f32 %v1981, %v1998
    %v2003 = vmul.f32 %v1983, %v1999
    %v2004 = vpack.c.bf16 %v2001, %v2000
    %v2005 = vpack.c.bf16 %v2003, %v2002
    %v2007 = vsel %vm486, %v2004, 0
    %2009 = vmatprep.subr.bf16.mxu0 0
    %2010 = vmatpush1.bf16.msra.mxu0 %v1877
    %2011 = vmatprep.subr.bf16.mxu0 0
    %2012 = vmatpush1.bf16.msra.mxu0 0
    %2013 = vmatprep.subr.bf16.mxu0 0
    %2014 = vmatpush1.bf16.msra.mxu0 0
    %2015 = vmatprep.subr.bf16.mxu0 0
    %2016 = vmatpush1.bf16.msra.mxu0 0
    %2017 = vmatprep.subr.bf16.mxu0 0
    %2018 = vmatpush1.bf16.msra.mxu0 0
    %2019 = vmatprep.subr.bf16.mxu0 0
    %2020 = vmatpush1.bf16.msra.mxu0 0
    %2021 = vmatprep.subr.bf16.mxu0 0
    %2022 = vmatpush1.bf16.msra.mxu0 0
    %2023 = vmatprep.subr.bf16.mxu0 0
    %2024 = vmatpush1.bf16.msra.mxu0 0
    %2025 = vmatprep.subr.bf16.mxu0 0
    %2026 = vmatpush1.bf16.msra.mxu0 0
    %2027 = vmatprep.subr.bf16.mxu0 0
    %2028 = vmatpush1.bf16.msra.mxu0 0
    %2029 = vmatprep.subr.bf16.mxu0 0
    %2030 = vmatpush1.bf16.msra.mxu0 0
    %2031 = vmatprep.subr.bf16.mxu0 0
    %2032 = vmatpush1.bf16.msra.mxu0 0
    %2033 = vmatprep.subr.bf16.mxu0 0
    %2034 = vmatpush1.bf16.msra.mxu0 0
    %2035 = vmatprep.subr.bf16.mxu0 0
    %2036 = vmatpush1.bf16.msra.mxu0 0
    %2037 = vmatprep.subr.bf16.mxu0 0
    %2038 = vmatpush1.bf16.msra.mxu0 0
    %2039 = vmatprep.subr.bf16.mxu0 0
    %2040 = vmatpush1.bf16.msra.mxu0 0
    %2041 = vmatprep.mubr.bf16.mxu0 0
    %2042 = vmatmul.mubr.bf16.gmra.mrb[0].mxu0 %v2007
    %v2043 = vpop.f32.mrb[0].mxu0
    %v2044 = vadd.f32 0.0, %v2043
    %v2045 = vpop.f32.mrb[0].mxu0
    %v2046 = vpop.f32.mrb[0].mxu0
    %v2047 = vadd.f32 0.0, %v2046
    %v2048 = vpop.f32.mrb[0].mxu0
    %2049 = vdwg.mxu0
    %v2051 = vsel %vm486, %v2005, 0
    %2053 = vmatprep.subr.bf16.mxu0 0
    %2054 = vmatpush1.bf16.msra.mxu0 %v1878
    %2055 = vmatprep.subr.bf16.mxu0 0
    %2056 = vmatpush1.bf16.msra.mxu0 0
    %2057 = vmatprep.subr.bf16.mxu0 0
    %2058 = vmatpush1.bf16.msra.mxu0 0
    %2059 = vmatprep.subr.bf16.mxu0 0
    %2060 = vmatpush1.bf16.msra.mxu0 0
    %2061 = vmatprep.subr.bf16.mxu0 0
    %2062 = vmatpush1.bf16.msra.mxu0 0
    %2063 = vmatprep.subr.bf16.mxu0 0
    %2064 = vmatpush1.bf16.msra.mxu0 0
    %2065 = vmatprep.subr.bf16.mxu0 0
    %2066 = vmatpush1.bf16.msra.mxu0 0
    %2067 = vmatprep.subr.bf16.mxu0 0
    %2068 = vmatpush1.bf16.msra.mxu0 0
    %2069 = vmatprep.subr.bf16.mxu0 0
    %2070 = vmatpush1.bf16.msra.mxu0 0
    %2071 = vmatprep.subr.bf16.mxu0 0
    %2072 = vmatpush1.bf16.msra.mxu0 0
    %2073 = vmatprep.subr.bf16.mxu0 0
    %2074 = vmatpush1.bf16.msra.mxu0 0
    %2075 = vmatprep.subr.bf16.mxu0 0
    %2076 = vmatpush1.bf16.msra.mxu0 0
    %2077 = vmatprep.subr.bf16.mxu0 0
    %2078 = vmatpush1.bf16.msra.mxu0 0
    %2079 = vmatprep.subr.bf16.mxu0 0
    %2080 = vmatpush1.bf16.msra.mxu0 0
    %2081 = vmatprep.subr.bf16.mxu0 0
    %2082 = vmatpush1.bf16.msra.mxu0 0
    %2083 = vmatprep.subr.bf16.mxu0 0
    %2084 = vmatpush1.bf16.msra.mxu0 0
    %2085 = vmatprep.mubr.bf16.mxu0 0
    %2086 = vmatmul.mubr.bf16.gmra.mrb[0].mxu0 %v2051
    %v2087 = vpop.f32.mrb[0].mxu0
    %v2088 = vadd.f32 0.0, %v2087
    %v2089 = vpop.f32.mrb[0].mxu0
    %v2090 = vpop.f32.mrb[0].mxu0
    %v2091 = vadd.f32 0.0, %v2090
    %v2092 = vpop.f32.mrb[0].mxu0
    %2093 = vdwg.mxu0
    %v2094 = vpack.c.bf16 %v2047, %v2044
    %v2095 = vpack.c.bf16 %v2091, %v2088
    %v2096 = vld [vmem:[%s1 + $0x138] sm:$0xf]
    %v2097 = vld [vmem:[%s1 + $0x13c] sm:$0xf]
    %v2098 = vld [vmem:[%s1 + $0x108] sm:$0xf]
    %v2099 = vld [vmem:[%s1 + $0x10c] sm:$0xf]
    %v2100 = vld [vmem:[%s1 + $0x110] sm:$0xf]
    %v2101 = vld [vmem:[%s1 + $0x114] sm:$0xf]
    %v2102 = vld [vmem:[%s2 + $0x15] sm:$0x1]
    %v2103 = vlaneseq
    %v2104 = vshrl.u32 %v2103, 7
    %v2105 = vsub.s32 0, %v2104
    %v2106 = vrot.slane %v2102, %v2105
    %v2111 = vunpack.c.l.b16 %v2098
    %v2112 = vunpack.c.l.b16 %v2099
    %v2113 = vunpack.c.l.b16 %v2100
    %v2114 = vunpack.c.l.b16 %v2101
    %v2115 = vpack.c.b16 %v2112, %v2111
    %v2116 = vpack.c.b16 %v2114, %v2113
    %2119 = vmatprep.subr.bf16.mxu0 0
    %2120 = vmatpush1.bf16.msra.mxu0 %v2115
    %2121 = vmatprep.subr.bf16.mxu0 0
    %2122 = vmatpush1.bf16.msra.mxu0 %v2116
    %2123 = vmatprep.subr.bf16.mxu0 0
    %2124 = vmatpush1.bf16.msra.mxu0 0
    %2125 = vmatprep.subr.bf16.mxu0 0
    %2126 = vmatpush1.bf16.msra.mxu0 0
    %2127 = vmatprep.subr.bf16.mxu0 0
    %2128 = vmatpush1.bf16.msra.mxu0 0
    %2129 = vmatprep.subr.bf16.mxu0 0
    %2130 = vmatpush1.bf16.msra.mxu0 0
    %2131 = vmatprep.subr.bf16.mxu0 0
    %2132 = vmatpush1.bf16.msra.mxu0 0
    %2133 = vmatprep.subr.bf16.mxu0 0
    %2134 = vmatpush1.bf16.msra.mxu0 0
    %2135 = vmatprep.subr.bf16.mxu0 0
    %2136 = vmatpush1.bf16.msra.mxu0 0
    %2137 = vmatprep.subr.bf16.mxu0 0
    %2138 = vmatpush1.bf16.msra.mxu0 0
    %2139 = vmatprep.subr.bf16.mxu0 0
    %2140 = vmatpush1.bf16.msra.mxu0 0
    %2141 = vmatprep.subr.bf16.mxu0 0
    %2142 = vmatpush1.bf16.msra.mxu0 0
    %2143 = vmatprep.subr.bf16.mxu0 0
    %2144 = vmatpush1.bf16.msra.mxu0 0
    %2145 = vmatprep.subr.bf16.mxu0 0
    %2146 = vmatpush1.bf16.msra.mxu0 0
    %2147 = vmatprep.subr.bf16.mxu0 0
    %2148 = vmatpush1.bf16.msra.mxu0 0
    %2149 = vmatprep.subr.bf16.mxu0 0
    %2150 = vmatpush1.bf16.msra.mxu0 0
    %2151 = vmatprep.mubr.bf16.mxu0 0
    %2152 = vmatmul.mubr.bf16.gmra.mrb[0].mxu0 %v1679
    %v2153 = vpop.f32.mrb[0].mxu0
    %v2154 = vadd.f32 %v2106, %v2153
    %v2155 = vpop.f32.mrb[0].mxu0
    %v2156 = vpop.f32.mrb[0].mxu0
    %v2157 = vadd.f32 %v2106, %v2156
    %v2158 = vpop.f32.mrb[0].mxu0
    %2159 = vmatprep.mubr.bf16.mxu0 0
    %2160 = vmatmul.mubr.bf16.gmra.mrb[0].mxu0 %v1682
    %v2161 = vpop.f32.mrb[0].mxu0
    %v2162 = vadd.f32 %v2106, %v2161
    %v2163 = vpop.f32.mrb[0].mxu0
    %v2164 = vpop.f32.mrb[0].mxu0
    %v2165 = vadd.f32 %v2106, %v2164
    %v2166 = vpop.f32.mrb[0].mxu0
    %2167 = vdwg.mxu0
    %v2168 = vpack.c.bf16 %v2157, %v2154
    %v2169 = vpack.c.bf16 %v2165, %v2162
    %v2170 = vld [vmem:[%s1 + $0x118] sm:$0xf]
    %v2171 = vld [vmem:[%s1 + $0x11c] sm:$0xf]
    %v2172 = vld [vmem:[%s1 + $0x120] sm:$0xf]
    %v2173 = vld [vmem:[%s1 + $0x124] sm:$0xf]
    %v2174 = vld [vmem:[%s2 + $0x16] sm:$0x1]
    %v2175 = vlaneseq
    %v2176 = vshrl.u32 %v2175, 7
    %v2177 = vsub.s32 0, %v2176
    %v2178 = vrot.slane %v2174, %v2177
    %v2183 = vunpack.c.l.b16 %v2170
    %v2184 = vunpack.c.l.b16 %v2171
    %v2185 = vunpack.c.l.b16 %v2172
    %v2186 = vunpack.c.l.b16 %v2173
    %v2187 = vpack.c.b16 %v2184, %v2183
    %v2188 = vpack.c.b16 %v2186, %v2185
    %2191 = vmatprep.subr.bf16.mxu0 0
    %2192 = vmatpush1.bf16.msra.mxu0 %v2187
    %2193 = vmatprep.subr.bf16.mxu0 0
    %2194 = vmatpush1.bf16.msra.mxu0 %v2188
    %2195 = vmatprep.subr.bf16.mxu0 0
    %2196 = vmatpush1.bf16.msra.mxu0 0
    %2197 = vmatprep.subr.bf16.mxu0 0
    %2198 = vmatpush1.bf16.msra.mxu0 0
    %2199 = vmatprep.subr.bf16.mxu0 0
    %2200 = vmatpush1.bf16.msra.mxu0 0
    %2201 = vmatprep.subr.bf16.mxu0 0
    %2202 = vmatpush1.bf16.msra.mxu0 0
    %2203 = vmatprep.subr.bf16.mxu0 0
    %2204 = vmatpush1.bf16.msra.mxu0 0
    %2205 = vmatprep.subr.bf16.mxu0 0
    %2206 = vmatpush1.bf16.msra.mxu0 0
    %2207 = vmatprep.subr.bf16.mxu0 0
    %2208 = vmatpush1.bf16.msra.mxu0 0
    %2209 = vmatprep.subr.bf16.mxu0 0
    %2210 = vmatpush1.bf16.msra.mxu0 0
    %2211 = vmatprep.subr.bf16.mxu0 0
    %2212 = vmatpush1.bf16.msra.mxu0 0
    %2213 = vmatprep.subr.bf16.mxu0 0
    %2214 = vmatpush1.bf16.msra.mxu0 0
    %2215 = vmatprep.subr.bf16.mxu0 0
    %2216 = vmatpush1.bf16.msra.mxu0 0
    %2217 = vmatprep.subr.bf16.mxu0 0
    %2218 = vmatpush1.bf16.msra.mxu0 0
    %2219 = vmatprep.subr.bf16.mxu0 0
    %2220 = vmatpush1.bf16.msra.mxu0 0
    %2221 = vmatprep.subr.bf16.mxu0 0
    %2222 = vmatpush1.bf16.msra.mxu0 0
    %2223 = vmatprep.mubr.bf16.mxu0 0
    %2224 = vmatmul.mubr.bf16.gmra.mrb[0].mxu0 %v1679
    %v2225 = vpop.f32.mrb[0].mxu0
    %v2226 = vadd.f32 %v2178, %v2225
    %v2227 = vpop.f32.mrb[0].mxu0
    %v2228 = vpop.f32.mrb[0].mxu0
    %v2229 = vadd.f32 %v2178, %v2228
    %v2230 = vpop.f32.mrb[0].mxu0
    %2231 = vmatprep.mubr.bf16.mxu0 0
    %2232 = vmatmul.mubr.bf16.gmra.mrb[0].mxu0 %v1682
    %v2233 = vpop.f32.mrb[0].mxu0
    %v2234 = vadd.f32 %v2178, %v2233
    %v2235 = vpop.f32.mrb[0].mxu0
    %v2236 = vpop.f32.mrb[0].mxu0
    %v2237 = vadd.f32 %v2178, %v2236
    %v2238 = vpop.f32.mrb[0].mxu0
    %2239 = vdwg.mxu0
    %v2240 = vpack.c.bf16 %v2229, %v2226
    %v2241 = vpack.c.bf16 %v2237, %v2234
    %v2242 = vld [vmem:[%s1 + $0x128] sm:$0xf]
    %v2243 = vld [vmem:[%s1 + $0x12c] sm:$0xf]
    %v2244 = vld [vmem:[%s1 + $0x130] sm:$0xf]
    %v2245 = vld [vmem:[%s1 + $0x134] sm:$0xf]
    %v2246 = vld [vmem:[%s2 + $0x17] sm:$0x1]
    %v2247 = vlaneseq
    %v2248 = vshrl.u32 %v2247, 7
    %v2249 = vsub.s32 0, %v2248
    %v2250 = vrot.slane %v2246, %v2249
    %v2255 = vunpack.c.l.b16 %v2242
    %v2256 = vunpack.c.l.b16 %v2243
    %v2257 = vunpack.c.l.b16 %v2244
    %v2258 = vunpack.c.l.b16 %v2245
    %v2259 = vpack.c.b16 %v2256, %v2255
    %v2260 = vpack.c.b16 %v2258, %v2257
    %2263 = vmatprep.subr.bf16.mxu0 0
    %2264 = vmatpush1.bf16.msra.mxu0 %v2259
    %2265 = vmatprep.subr.bf16.mxu0 0
    %2266 = vmatpush1.bf16.msra.mxu0 %v2260
    %2267 = vmatprep.subr.bf16.mxu0 0
    %2268 = vmatpush1.bf16.msra.mxu0 0
    %2269 = vmatprep.subr.bf16.mxu0 0
    %2270 = vmatpush1.bf16.msra.mxu0 0
    %2271 = vmatprep.subr.bf16.mxu0 0
    %2272 = vmatpush1.bf16.msra.mxu0 0
    %2273 = vmatprep.subr.bf16.mxu0 0
    %2274 = vmatpush1.bf16.msra.mxu0 0
    %2275 = vmatprep.subr.bf16.mxu0 0
    %2276 = vmatpush1.bf16.msra.mxu0 0
    %2277 = vmatprep.subr.bf16.mxu0 0
    %2278 = vmatpush1.bf16.msra.mxu0 0
    %2279 = vmatprep.subr.bf16.mxu0 0
    %2280 = vmatpush1.bf16.msra.mxu0 0
    %2281 = vmatprep.subr.bf16.mxu0 0
    %2282 = vmatpush1.bf16.msra.mxu0 0
    %2283 = vmatprep.subr.bf16.mxu0 0
    %2284 = vmatpush1.bf16.msra.mxu0 0
    %2285 = vmatprep.subr.bf16.mxu0 0
    %2286 = vmatpush1.bf16.msra.mxu0 0
    %2287 = vmatprep.subr.bf16.mxu0 0
    %2288 = vmatpush1.bf16.msra.mxu0 0
    %2289 = vmatprep.subr.bf16.mxu0 0
    %2290 = vmatpush1.bf16.msra.mxu0 0
    %2291 = vmatprep.subr.bf16.mxu0 0
    %2292 = vmatpush1.bf16.msra.mxu0 0
    %2293 = vmatprep.subr.bf16.mxu0 0
    %2294 = vmatpush1.bf16.msra.mxu0 0
    %2295 = vmatprep.mubr.bf16.mxu0 0
    %2296 = vmatmul.mubr.bf16.gmra.mrb[0].mxu0 %v1679
    %v2297 = vpop.f32.mrb[0].mxu0
    %v2298 = vadd.f32 %v2250, %v2297
    %v2299 = vpop.f32.mrb[0].mxu0
    %v2300 = vpop.f32.mrb[0].mxu0
    %v2301 = vadd.f32 %v2250, %v2300
    %v2302 = vpop.f32.mrb[0].mxu0
    %2303 = vmatprep.mubr.bf16.mxu0 0
    %2304 = vmatmul.mubr.bf16.gmra.mrb[0].mxu0 %v1682
    %v2305 = vpop.f32.mrb[0].mxu0
    %v2306 = vadd.f32 %v2250, %v2305
    %v2307 = vpop.f32.mrb[0].mxu0
    %v2308 = vpop.f32.mrb[0].mxu0
    %v2309 = vadd.f32 %v2250, %v2308
    %v2310 = vpop.f32.mrb[0].mxu0
    %2311 = vdwg.mxu0
    %v2312 = vpack.c.bf16 %v2301, %v2298
    %v2313 = vpack.c.bf16 %v2309, %v2306
    %s2314 = scalar_lea.vmem %s3, 48
    %v2315 = vld [vmem:[%s2314] sm:$0xff]
    %v2316 = vld [vmem:[%s2314 + $0x8] sm:$0xff]
    %v2318 = vsel %vm486, %v2168, 0
    %v2321 = vsel %vm486, %v2240, 0
    %2323 = vmatprep.subr.bf16.mxu0 0
    %2324 = vmatpush1.bf16.xpose.msra.mxu0 %v2321
    %2325 = vmatprep.subr.bf16.mxu0 0
    %2326 = vmatpush1.bf16.xpose.msra.mxu0 0
    %2327 = vmatprep.subr.bf16.mxu0 0
    %2328 = vmatpush1.bf16.xpose.msra.mxu0 0
    %2329 = vmatprep.subr.bf16.mxu0 0
    %2330 = vmatpush1.bf16.xpose.msra.mxu0 0
    %2331 = vmatprep.subr.bf16.mxu0 0
    %2332 = vmatpush1.bf16.xpose.msra.mxu0 0
    %2333 = vmatprep.subr.bf16.mxu0 0
    %2334 = vmatpush1.bf16.xpose.msra.mxu0 0
    %2335 = vmatprep.subr.bf16.mxu0 0
    %2336 = vmatpush1.bf16.xpose.msra.mxu0 0
    %2337 = vmatprep.subr.bf16.mxu0 0
    %2338 = vmatpush1.bf16.xpose.msra.mxu0 0
    %2339 = vmatprep.subr.bf16.mxu0 0
    %2340 = vmatpush1.bf16.xpose.msra.mxu0 0
    %2341 = vmatprep.subr.bf16.mxu0 0
    %2342 = vmatpush1.bf16.xpose.msra.mxu0 0
    %2343 = vmatprep.subr.bf16.mxu0 0
    %2344 = vmatpush1.bf16.xpose.msra.mxu0 0
    %2345 = vmatprep.subr.bf16.mxu0 0
    %2346 = vmatpush1.bf16.xpose.msra.mxu0 0
    %2347 = vmatprep.subr.bf16.mxu0 0
    %2348 = vmatpush1.bf16.xpose.msra.mxu0 0
    %2349 = vmatprep.subr.bf16.mxu0 0
    %2350 = vmatpush1.bf16.xpose.msra.mxu0 0
    %2351 = vmatprep.subr.bf16.mxu0 0
    %2352 = vmatpush1.bf16.xpose.msra.mxu0 0
    %2353 = vmatprep.subr.bf16.mxu0 0
    %2354 = vmatpush1.bf16.xpose.msra.mxu0 0
    %2355 = vmatprep.mubr.bf16.mxu0 0
    %2356 = vmatmul.mubr.bf16.gmra.mrb[0].mxu0 %v2318
    %v2357 = vpop.f32.mrb[0].mxu0
    %v2358 = vadd.f32 %v2315, %v2357
    %v2359 = vpop.f32.mrb[0].mxu0
    %v2360 = vpop.f32.mrb[0].mxu0
    %v2361 = vadd.f32 %v2316, %v2360
    %v2362 = vpop.f32.mrb[0].mxu0
    %2363 = vdwg.mxu0
    %v2365 = vsel %vm486, %v2169, 0
    %v2368 = vsel %vm486, %v2241, 0
    %2370 = vmatprep.subr.bf16.mxu0 0
    %2371 = vmatpush1.bf16.xpose.msra.mxu0 %v2368
    %2372 = vmatprep.subr.bf16.mxu0 0
    %2373 = vmatpush1.bf16.xpose.msra.mxu0 0
    %2374 = vmatprep.subr.bf16.mxu0 0
    %2375 = vmatpush1.bf16.xpose.msra.mxu0 0
    %2376 = vmatprep.subr.bf16.mxu0 0
    %2377 = vmatpush1.bf16.xpose.msra.mxu0 0
    %2378 = vmatprep.subr.bf16.mxu0 0
    %2379 = vmatpush1.bf16.xpose.msra.mxu0 0
    %2380 = vmatprep.subr.bf16.mxu0 0
    %2381 = vmatpush1.bf16.xpose.msra.mxu0 0
    %2382 = vmatprep.subr.bf16.mxu0 0
    %2383 = vmatpush1.bf16.xpose.msra.mxu0 0
    %2384 = vmatprep.subr.bf16.mxu0 0
    %2385 = vmatpush1.bf16.xpose.msra.mxu0 0
    %2386 = vmatprep.subr.bf16.mxu0 0
    %2387 = vmatpush1.bf16.xpose.msra.mxu0 0
    %2388 = vmatprep.subr.bf16.mxu0 0
    %2389 = vmatpush1.bf16.xpose.msra.mxu0 0
    %2390 = vmatprep.subr.bf16.mxu0 0
    %2391 = vmatpush1.bf16.xpose.msra.mxu0 0
    %2392 = vmatprep.subr.bf16.mxu0 0
    %2393 = vmatpush1.bf16.xpose.msra.mxu0 0
    %2394 = vmatprep.subr.bf16.mxu0 0
    %2395 = vmatpush1.bf16.xpose.msra.mxu0 0
    %2396 = vmatprep.subr.bf16.mxu0 0
    %2397 = vmatpush1.bf16.xpose.msra.mxu0 0
    %2398 = vmatprep.subr.bf16.mxu0 0
    %2399 = vmatpush1.bf16.xpose.msra.mxu0 0
    %2400 = vmatprep.subr.bf16.mxu0 0
    %2401 = vmatpush1.bf16.xpose.msra.mxu0 0
    %2402 = vmatprep.mubr.bf16.mxu0 0
    %2403 = vmatmul.mubr.bf16.gmra.mrb[0].mxu0 %v2365
    %v2404 = vpop.f32.mrb[0].mxu0
    %v2405 = vadd.f32 %v2315, %v2404
    %v2406 = vpop.f32.mrb[0].mxu0
    %v2407 = vpop.f32.mrb[0].mxu0
    %v2408 = vadd.f32 %v2316, %v2407
    %v2409 = vpop.f32.mrb[0].mxu0
    %2410 = vdwg.mxu0
    %v2411 = vmul.f32 %v2358, 1.442695
    %v2412 = vpow.pop %v2411
    %v2413 = vmul.f32 %v2361, 1.442695
    %v2414 = vpow.pop %v2413
    %v2415 = vmul.f32 %v2405, 1.442695
    %v2416 = vpow.pop %v2415
    %v2417 = vmul.f32 %v2408, 1.442695
    %v2418 = vpow.pop %v2417
    %v2419 = vsel %vm486, %v2412, 0.0
    %2420 = vadd.xlane.f32.xlu0 %v2419
    %v2421 = vpop.xlane.xlu0 %2420
    %v2422 = vsel %vm486, %v2414, 0.0
    %2423 = vadd.xlane.f32.xlu0 %v2422
    %v2424 = vpop.xlane.xlu0 %2423
    %v2425 = vsel %vm486, %v2416, 0.0
    %2426 = vadd.xlane.f32.xlu0 %v2425
    %v2427 = vpop.xlane.xlu0 %2426
    %v2428 = vsel %vm486, %v2418, 0.0
    %2429 = vadd.xlane.f32.xlu0 %v2428
    %v2430 = vpop.xlane.xlu0 %2429
    %v2431 = vrcp.pop %v2421
    %v2432 = vrcp.pop %v2424
    %v2433 = vrcp.pop %v2427
    %v2434 = vrcp.pop %v2430
    %v2435 = vmul.f32 %v2412, %v2431
    %v2436 = vmul.f32 %v2414, %v2432
    %v2437 = vmul.f32 %v2416, %v2433
    %v2438 = vmul.f32 %v2418, %v2434
    %v2439 = vpack.c.bf16 %v2436, %v2435
    %v2440 = vpack.c.bf16 %v2438, %v2437
    %v2442 = vsel %vm486, %v2439, 0
    %2444 = vmatprep.subr.bf16.mxu0 0
    %2445 = vmatpush1.bf16.msra.mxu0 %v2312
    %2446 = vmatprep.subr.bf16.mxu0 0
    %2447 = vmatpush1.bf16.msra.mxu0 0
    %2448 = vmatprep.subr.bf16.mxu0 0
    %2449 = vmatpush1.bf16.msra.mxu0 0
    %2450 = vmatprep.subr.bf16.mxu0 0
    %2451 = vmatpush1.bf16.msra.mxu0 0
    %2452 = vmatprep.subr.bf16.mxu0 0
    %2453 = vmatpush1.bf16.msra.mxu0 0
    %2454 = vmatprep.subr.bf16.mxu0 0
    %2455 = vmatpush1.bf16.msra.mxu0 0
    %2456 = vmatprep.subr.bf16.mxu0 0
    %2457 = vmatpush1.bf16.msra.mxu0 0
    %2458 = vmatprep.subr.bf16.mxu0 0
    %2459 = vmatpush1.bf16.msra.mxu0 0
    %2460 = vmatprep.subr.bf16.mxu0 0
    %2461 = vmatpush1.bf16.msra.mxu0 0
    %2462 = vmatprep.subr.bf16.mxu0 0
    %2463 = vmatpush1.bf16.msra.mxu0 0
    %2464 = vmatprep.subr.bf16.mxu0 0
    %2465 = vmatpush1.bf16.msra.mxu0 0
    %2466 = vmatprep.subr.bf16.mxu0 0
    %2467 = vmatpush1.bf16.msra.mxu0 0
    %2468 = vmatprep.subr.bf16.mxu0 0
    %2469 = vmatpush1.bf16.msra.mxu0 0
    %2470 = vmatprep.subr.bf16.mxu0 0
    %2471 = vmatpush1.bf16.msra.mxu0 0
    %2472 = vmatprep.subr.bf16.mxu0 0
    %2473 = vmatpush1.bf16.msra.mxu0 0
    %2474 = vmatprep.subr.bf16.mxu0 0
    %2475 = vmatpush1.bf16.msra.mxu0 0
    %2476 = vmatprep.mubr.bf16.mxu0 0
    %2477 = vmatmul.mubr.bf16.gmra.mrb[0].mxu0 %v2442
    %v2478 = vpop.f32.mrb[0].mxu0
    %v2479 = vadd.f32 0.0, %v2478
    %v2480 = vpop.f32.mrb[0].mxu0
    %v2481 = vpop.f32.mrb[0].mxu0
    %v2482 = vadd.f32 0.0, %v2481
    %v2483 = vpop.f32.mrb[0].mxu0
    %2484 = vdwg.mxu0
    %v2486 = vsel %vm486, %v2440, 0
    %2488 = vmatprep.subr.bf16.mxu0 0
    %2489 = vmatpush1.bf16.msra.mxu0 %v2313
    %2490 = vmatprep.subr.bf16.mxu0 0
    %2491 = vmatpush1.bf16.msra.mxu0 0
    %2492 = vmatprep.subr.bf16.mxu0 0
    %2493 = vmatpush1.bf16.msra.mxu0 0
    %2494 = vmatprep.subr.bf16.mxu0 0
    %2495 = vmatpush1.bf16.msra.mxu0 0
    %2496 = vmatprep.subr.bf16.mxu0 0
    %2497 = vmatpush1.bf16.msra.mxu0 0
    %2498 = vmatprep.subr.bf16.mxu0 0
    %2499 = vmatpush1.bf16.msra.mxu0 0
    %2500 = vmatprep.subr.bf16.mxu0 0
    %2501 = vmatpush1.bf16.msra.mxu0 0
    %2502 = vmatprep.subr.bf16.mxu0 0
    %2503 = vmatpush1.bf16.msra.mxu0 0
    %2504 = vmatprep.subr.bf16.mxu0 0
    %2505 = vmatpush1.bf16.msra.mxu0 0
    %2506 = vmatprep.subr.bf16.mxu0 0
    %2507 = vmatpush1.bf16.msra.mxu0 0
    %2508 = vmatprep.subr.bf16.mxu0 0
    %2509 = vmatpush1.bf16.msra.mxu0 0
    %2510 = vmatprep.subr.bf16.mxu0 0
    %2511 = vmatpush1.bf16.msra.mxu0 0
    %2512 = vmatprep.subr.bf16.mxu0 0
    %2513 = vmatpush1.bf16.msra.mxu0 0
    %2514 = vmatprep.subr.bf16.mxu0 0
    %2515 = vmatpush1.bf16.msra.mxu0 0
    %2516 = vmatprep.subr.bf16.mxu0 0
    %2517 = vmatpush1.bf16.msra.mxu0 0
    %2518 = vmatprep.subr.bf16.mxu0 0
    %2519 = vmatpush1.bf16.msra.mxu0 0
    %2520 = vmatprep.mubr.bf16.mxu0 0
    %2521 = vmatmul.mubr.bf16.gmra.mrb[0].mxu0 %v2486
    %v2522 = vpop.f32.mrb[0].mxu0
    %v2523 = vadd.f32 0.0, %v2522
    %v2524 = vpop.f32.mrb[0].mxu0
    %v2525 = vpop.f32.mrb[0].mxu0
    %v2526 = vadd.f32 0.0, %v2525
    %v2527 = vpop.f32.mrb[0].mxu0
    %2528 = vdwg.mxu0
    %v2529 = vpack.c.bf16 %v2482, %v2479
    %v2530 = vpack.c.bf16 %v2526, %v2523
    %v2531 = vld [vmem:[%s1 + $0x140] sm:$0xf]
    %v2532 = vld [vmem:[%s1 + $0x144] sm:$0xf]
    %v2535 = vunpack.c.l.b16 %v2531
    %v2536 = vunpack.c.l.b16 %v2532
    %v2537 = vpack.c.b16 %v2536, %v2535
    %v2540 = vsel %vm486, %v2529, 0
    %v2543 = vsel %vm486, %v2530, 0
    %2545 = vmatprep.subr.bf16.mxu0 0
    %2546 = vmatpush1.bf16.msra.mxu0 %v2537
    %2547 = vmatprep.subr.bf16.mxu0 0
    %2548 = vmatpush1.bf16.msra.mxu0 0
    %2549 = vmatprep.subr.bf16.mxu0 0
    %2550 = vmatpush1.bf16.msra.mxu0 0
    %2551 = vmatprep.subr.bf16.mxu0 0
    %2552 = vmatpush1.bf16.msra.mxu0 0
    %2553 = vmatprep.subr.bf16.mxu0 0
    %2554 = vmatpush1.bf16.msra.mxu0 0
    %2555 = vmatprep.subr.bf16.mxu0 0
    %2556 = vmatpush1.bf16.msra.mxu0 0
    %2557 = vmatprep.subr.bf16.mxu0 0
    %2558 = vmatpush1.bf16.msra.mxu0 0
    %2559 = vmatprep.subr.bf16.mxu0 0
    %2560 = vmatpush1.bf16.msra.mxu0 0
    %2561 = vmatprep.subr.bf16.mxu0 0
    %2562 = vmatpush1.bf16.msra.mxu0 0
    %2563 = vmatprep.subr.bf16.mxu0 0
    %2564 = vmatpush1.bf16.msra.mxu0 0
    %2565 = vmatprep.subr.bf16.mxu0 0
    %2566 = vmatpush1.bf16.msra.mxu0 0
    %2567 = vmatprep.subr.bf16.mxu0 0
    %2568 = vmatpush1.bf16.msra.mxu0 0
    %2569 = vmatprep.subr.bf16.mxu0 0
    %2570 = vmatpush1.bf16.msra.mxu0 0
    %2571 = vmatprep.subr.bf16.mxu0 0
    %2572 = vmatpush1.bf16.msra.mxu0 0
    %2573 = vmatprep.subr.bf16.mxu0 0
    %2574 = vmatpush1.bf16.msra.mxu0 0
    %2575 = vmatprep.subr.bf16.mxu0 0
    %2576 = vmatpush1.bf16.msra.mxu0 0
    %2577 = vmatprep.mubr.bf16.mxu0 0
    %2578 = vmatmul.mubr.bf16.gmra.mrb[0].mxu0 %v2540
    %v2579 = vpop.f32.mrb[0].mxu0
    %v2580 = vadd.f32 0.0, %v2579
    %v2581 = vpop.f32.mrb[0].mxu0
    %v2582 = vpop.f32.mrb[0].mxu0
    %v2583 = vadd.f32 0.0, %v2582
    %v2584 = vpop.f32.mrb[0].mxu0
    %2585 = vmatprep.mubr.bf16.mxu0 0
    %2586 = vmatmul.mubr.bf16.gmra.mrb[0].mxu0 %v2543
    %v2587 = vpop.f32.mrb[0].mxu0
    %v2588 = vadd.f32 0.0, %v2587
    %v2589 = vpop.f32.mrb[0].mxu0
    %v2590 = vpop.f32.mrb[0].mxu0
    %v2591 = vadd.f32 0.0, %v2590
    %v2592 = vpop.f32.mrb[0].mxu0
    %2593 = vdwg.mxu0
    %v2596 = vunpack.c.l.b16 %v2096
    %v2597 = vunpack.c.l.b16 %v2097
    %v2598 = vpack.c.b16 %v2597, %v2596
    %v2601 = vsel %vm486, %v2094, 0
    %v2604 = vsel %vm486, %v2095, 0
    %2606 = vmatprep.subr.bf16.mxu0 0
    %2607 = vmatpush1.bf16.msra.mxu0 %v2598
    %2608 = vmatprep.subr.bf16.mxu0 0
    %2609 = vmatpush1.bf16.msra.mxu0 0
    %2610 = vmatprep.subr.bf16.mxu0 0
    %2611 = vmatpush1.bf16.msra.mxu0 0
    %2612 = vmatprep.subr.bf16.mxu0 0
    %2613 = vmatpush1.bf16.msra.mxu0 0
    %2614 = vmatprep.subr.bf16.mxu0 0
    %2615 = vmatpush1.bf16.msra.mxu0 0
    %2616 = vmatprep.subr.bf16.mxu0 0
    %2617 = vmatpush1.bf16.msra.mxu0 0
    %2618 = vmatprep.subr.bf16.mxu0 0
    %2619 = vmatpush1.bf16.msra.mxu0 0
    %2620 = vmatprep.subr.bf16.mxu0 0
    %2621 = vmatpush1.bf16.msra.mxu0 0
    %2622 = vmatprep.subr.bf16.mxu0 0
    %2623 = vmatpush1.bf16.msra.mxu0 0
    %2624 = vmatprep.subr.bf16.mxu0 0
    %2625 = vmatpush1.bf16.msra.mxu0 0
    %2626 = vmatprep.subr.bf16.mxu0 0
    %2627 = vmatpush1.bf16.msra.mxu0 0
    %2628 = vmatprep.subr.bf16.mxu0 0
    %2629 = vmatpush1.bf16.msra.mxu0 0
    %2630 = vmatprep.subr.bf16.mxu0 0
    %2631 = vmatpush1.bf16.msra.mxu0 0
    %2632 = vmatprep.subr.bf16.mxu0 0
    %2633 = vmatpush1.bf16.msra.mxu0 0
    %2634 = vmatprep.subr.bf16.mxu0 0
    %2635 = vmatpush1.bf16.msra.mxu0 0
    %2636 = vmatprep.subr.bf16.mxu0 0
    %2637 = vmatpush1.bf16.msra.mxu0 0
    %2638 = vmatprep.mubr.bf16.mxu0 0
    %2639 = vmatmul.mubr.bf16.gmra.mrb[0].mxu0 %v2601
    %v2640 = vpop.f32.mrb[0].mxu0
    %v2641 = vadd.f32 %v2580, %v2640
    %v2642 = vpop.f32.mrb[0].mxu0
    %v2643 = vpop.f32.mrb[0].mxu0
    %v2644 = vadd.f32 %v2583, %v2643
    %v2645 = vpop.f32.mrb[0].mxu0
    %2646 = vmatprep.mubr.bf16.mxu0 0
    %2647 = vmatmul.mubr.bf16.gmra.mrb[0].mxu0 %v2604
    %v2648 = vpop.f32.mrb[0].mxu0
    %v2649 = vadd.f32 %v2588, %v2648
    %v2650 = vpop.f32.mrb[0].mxu0
    %v2651 = vpop.f32.mrb[0].mxu0
    %v2652 = vadd.f32 %v2591, %v2651
    %v2653 = vpop.f32.mrb[0].mxu0
    %2654 = vdwg.mxu0
    %v2655 = vadd.f32 %v1581, %v2641
    %v2656 = vadd.f32 %v1582, %v2644
    %v2657 = vadd.f32 %v1583, %v2649
    %v2658 = vadd.f32 %v1584, %v2652
    %v2659 = vld [vmem:[%s2 + $0x18] sm:$0x1]
    %v2660 = vlaneseq
    %v2661 = vshrl.u32 %v2660, 7
    %v2662 = vsub.s32 0, %v2661
    %v2663 = vrot.slane %v2659, %v2662
    %v2664 = vadd.f32 %v2655, %v2663
    %v2665 = vadd.f32 %v2656, %v2663
    %v2666 = vadd.f32 %v2657, %v2663
    %v2667 = vadd.f32 %v2658, %v2663
    %v2668 = vsel %vm118, %v2664, 0.0
    %2669 = vadd.xlane.f32.xlu0 %v2668
    %v2670 = vpop.xlane.xlu0 %2669
    %v2671 = vsel %vm118, %v2665, 0.0
    %2672 = vadd.xlane.f32.xlu0 %v2671
    %v2673 = vpop.xlane.xlu0 %2672
    %v2674 = vsel %vm118, %v2666, 0.0
    %2675 = vadd.xlane.f32.xlu0 %v2674
    %v2676 = vpop.xlane.xlu0 %2675
    %v2677 = vsel %vm118, %v2667, 0.0
    %2678 = vadd.xlane.f32.xlu0 %v2677
    %v2679 = vpop.xlane.xlu0 %2678
    %v2680 = vmul.f32 %v2670, %v131
    %v2681 = vmul.f32 %v2673, %v131
    %v2682 = vmul.f32 %v2676, %v131
    %v2683 = vmul.f32 %v2679, %v131
    %v2684 = vsub.f32 %v2664, %v2680
    %v2685 = vsub.f32 %v2665, %v2681
    %v2686 = vsub.f32 %v2666, %v2682
    %v2687 = vsub.f32 %v2667, %v2683
    %v2688 = vmul.f32 %v2684, %v2684
    %v2689 = vmul.f32 %v2685, %v2685
    %v2690 = vmul.f32 %v2686, %v2686
    %v2691 = vmul.f32 %v2687, %v2687
    %v2692 = vsel %vm118, %v2688, 0.0
    %2693 = vadd.xlane.f32.xlu0 %v2692
    %v2694 = vpop.xlane.xlu0 %2693
    %v2695 = vsel %vm118, %v2689, 0.0
    %2696 = vadd.xlane.f32.xlu0 %v2695
    %v2697 = vpop.xlane.xlu0 %2696
    %v2698 = vsel %vm118, %v2690, 0.0
    %2699 = vadd.xlane.f32.xlu0 %v2698
    %v2700 = vpop.xlane.xlu0 %2699
    %v2701 = vsel %vm118, %v2691, 0.0
    %2702 = vadd.xlane.f32.xlu0 %v2701
    %v2703 = vpop.xlane.xlu0 %2702
    %v2704 = vmul.f32 %v2694, %v131
    %v2705 = vmul.f32 %v2697, %v131
    %v2706 = vmul.f32 %v2700, %v131
    %v2707 = vmul.f32 %v2703, %v131
    %v2708 = vadd.f32 %v2704, 1e-05
    %v2709 = vadd.f32 %v2705, 1e-05
    %v2710 = vadd.f32 %v2706, 1e-05
    %v2711 = vadd.f32 %v2707, 1e-05
    %v2712 = vrsqrt.pop %v2708
    %v2713 = vrsqrt.pop %v2709
    %v2714 = vrsqrt.pop %v2710
    %v2715 = vrsqrt.pop %v2711
    %v2716 = vmul.f32 %v2684, %v2712
    %v2717 = vmul.f32 %v2685, %v2713
    %v2718 = vmul.f32 %v2686, %v2714
    %v2719 = vmul.f32 %v2687, %v2715
    %v2720 = vld [vmem:[%s2 + $0x19] sm:$0x1]
    %v2721 = vlaneseq
    %v2722 = vshrl.u32 %v2721, 7
    %v2723 = vsub.s32 0, %v2722
    %v2724 = vrot.slane %v2720, %v2723
    %v2725 = vmul.f32 %v2716, %v2724
    %v2726 = vmul.f32 %v2717, %v2724
    %v2727 = vmul.f32 %v2718, %v2724
    %v2728 = vmul.f32 %v2719, %v2724
    %v2729 = vld [vmem:[%s2 + $0x1a] sm:$0x1]
    %v2730 = vlaneseq
    %v2731 = vshrl.u32 %v2730, 7
    %v2732 = vsub.s32 0, %v2731
    %v2733 = vrot.slane %v2729, %v2732
    %v2734 = vadd.f32 %v2725, %v2733
    %v2735 = vadd.f32 %v2726, %v2733
    %v2736 = vadd.f32 %v2727, %v2733
    %v2737 = vadd.f32 %v2728, %v2733
    %v2738 = vpack.c.bf16 %v2735, %v2734
    %v2739 = vpack.c.bf16 %v2737, %v2736
    %v2740 = vld [vmem:[%s1 + $0x148] sm:$0xf]
    %v2741 = vld [vmem:[%s1 + $0x14c] sm:$0xf]
    %v2742 = vld [vmem:[%s1 + $0x150] sm:$0xf]
    %v2743 = vld [vmem:[%s1 + $0x154] sm:$0xf]
    %v2744 = vld [vmem:[%s2 + $0x1b] sm:$0x1]
    %v2745 = vlaneseq
    %v2746 = vshrl.u32 %v2745, 7
    %v2747 = vsub.s32 0, %v2746
    %v2748 = vrot.slane %v2744, %v2747
    %v2753 = vunpack.c.l.b16 %v2740
    %v2754 = vunpack.c.l.b16 %v2741
    %v2755 = vunpack.c.l.b16 %v2742
    %v2756 = vunpack.c.l.b16 %v2743
    %v2757 = vpack.c.b16 %v2754, %v2753
    %v2758 = vpack.c.b16 %v2756, %v2755
    %v2762 = vsel %vm118, %v2738, 0
    %v2765 = vsel %vm118, %v2739, 0
    %2767 = vmatprep.subr.bf16.mxu0 0
    %2768 = vmatpush1.bf16.msra.mxu0 %v2757
    %2769 = vmatprep.subr.bf16.mxu0 0
    %2770 = vmatpush1.bf16.msra.mxu0 %v2758
    %2771 = vmatprep.subr.bf16.mxu0 0
    %2772 = vmatpush1.bf16.msra.mxu0 0
    %2773 = vmatprep.subr.bf16.mxu0 0
    %2774 = vmatpush1.bf16.msra.mxu0 0
    %2775 = vmatprep.subr.bf16.mxu0 0
    %2776 = vmatpush1.bf16.msra.mxu0 0
    %2777 = vmatprep.subr.bf16.mxu0 0
    %2778 = vmatpush1.bf16.msra.mxu0 0
    %2779 = vmatprep.subr.bf16.mxu0 0
    %2780 = vmatpush1.bf16.msra.mxu0 0
    %2781 = vmatprep.subr.bf16.mxu0 0
    %2782 = vmatpush1.bf16.msra.mxu0 0
    %2783 = vmatprep.subr.bf16.mxu0 0
    %2784 = vmatpush1.bf16.msra.mxu0 0
    %2785 = vmatprep.subr.bf16.mxu0 0
    %2786 = vmatpush1.bf16.msra.mxu0 0
    %2787 = vmatprep.subr.bf16.mxu0 0
    %2788 = vmatpush1.bf16.msra.mxu0 0
    %2789 = vmatprep.subr.bf16.mxu0 0
    %2790 = vmatpush1.bf16.msra.mxu0 0
    %2791 = vmatprep.subr.bf16.mxu0 0
    %2792 = vmatpush1.bf16.msra.mxu0 0
    %2793 = vmatprep.subr.bf16.mxu0 0
    %2794 = vmatpush1.bf16.msra.mxu0 0
    %2795 = vmatprep.subr.bf16.mxu0 0
    %2796 = vmatpush1.bf16.msra.mxu0 0
    %2797 = vmatprep.subr.bf16.mxu0 0
    %2798 = vmatpush1.bf16.msra.mxu0 0
    %2799 = vmatprep.mubr.bf16.mxu0 0
    %2800 = vmatmul.mubr.bf16.gmra.mrb[0].mxu0 %v2762
    %v2801 = vpop.f32.mrb[0].mxu0
    %v2802 = vadd.f32 %v2748, %v2801
    %v2803 = vpop.f32.mrb[0].mxu0
    %v2804 = vpop.f32.mrb[0].mxu0
    %v2805 = vadd.f32 %v2748, %v2804
    %v2806 = vpop.f32.mrb[0].mxu0
    %2807 = vmatprep.mubr.bf16.mxu0 0
    %2808 = vmatmul.mubr.bf16.gmra.mrb[0].mxu0 %v2765
    %v2809 = vpop.f32.mrb[0].mxu0
    %v2810 = vadd.f32 %v2748, %v2809
    %v2811 = vpop.f32.mrb[0].mxu0
    %v2812 = vpop.f32.mrb[0].mxu0
    %v2813 = vadd.f32 %v2748, %v2812
    %v2814 = vpop.f32.mrb[0].mxu0
    %2815 = vdwg.mxu0
    %v2816 = vmul.f32 %v2802, %v2802
    %v2817 = vmul.f32 %v2805, %v2805
    %v2818 = vmul.f32 %v2810, %v2810
    %v2819 = vmul.f32 %v2813, %v2813
    %v2820 = vmul.f32 %v2802, %v2816
    %v2821 = vmul.f32 %v2805, %v2817
    %v2822 = vmul.f32 %v2810, %v2818
    %v2823 = vmul.f32 %v2813, %v2819
    %v2824 = vmul.f32 %v2820, 0.044715
    %v2825 = vmul.f32 %v2821, 0.044715
    %v2826 = vmul.f32 %v2822, 0.044715
    %v2827 = vmul.f32 %v2823, 0.044715
    %v2828 = vadd.f32 %v2802, %v2824
    %v2829 = vadd.f32 %v2805, %v2825
    %v2830 = vadd.f32 %v2810, %v2826
    %v2831 = vadd.f32 %v2813, %v2827
    %v2832 = vmul.f32 %v2828, 0.7978846
    %v2833 = vmul.f32 %v2829, 0.7978846
    %v2834 = vmul.f32 %v2830, 0.7978846
    %v2835 = vmul.f32 %v2831, 0.7978846
    %v2836 = vtanh.pop %v2832
    %v2837 = vtanh.pop %v2833
    %v2838 = vtanh.pop %v2834
    %v2839 = vtanh.pop %v2835
    %v2840 = vadd.f32 %v2836, 1.0
    %v2841 = vadd.f32 %v2837, 1.0
    %v2842 = vadd.f32 %v2838, 1.0
    %v2843 = vadd.f32 %v2839, 1.0
    %v2844 = vmul.f32 %v2840, 0.5
    %v2845 = vmul.f32 %v2841, 0.5
    %v2846 = vmul.f32 %v2842, 0.5
    %v2847 = vmul.f32 %v2843, 0.5
    %v2848 = vmul.f32 %v2802, %v2844
    %v2849 = vmul.f32 %v2805, %v2845
    %v2850 = vmul.f32 %v2810, %v2846
    %v2851 = vmul.f32 %v2813, %v2847
    %v2852 = vpack.c.bf16 %v2849, %v2848
    %v2853 = vpack.c.bf16 %v2851, %v2850
    %v2854 = vld [vmem:[%s1 + $0x158] sm:$0xf]
    %v2855 = vld [vmem:[%s1 + $0x15c] sm:$0xf]
    %v2856 = vld [vmem:[%s1 + $0x160] sm:$0xf]
    %v2857 = vld [vmem:[%s1 + $0x164] sm:$0xf]
    %v2858 = vld [vmem:[%s1 + $0x168] sm:$0xf]
    %v2859 = vld [vmem:[%s1 + $0x16c] sm:$0xf]
    %v2860 = vld [vmem:[%s1 + $0x170] sm:$0xf]
    %v2861 = vld [vmem:[%s1 + $0x174] sm:$0xf]
    %v2862 = vld [vmem:[%s1 + $0x178] sm:$0xf]
    %v2863 = vld [vmem:[%s1 + $0x17c] sm:$0xf]
    %v2864 = vld [vmem:[%s1 + $0x180] sm:$0xf]
    %v2865 = vld [vmem:[%s1 + $0x184] sm:$0xf]
    %v2866 = vld [vmem:[%s1 + $0x188] sm:$0xf]
    %v2867 = vld [vmem:[%s1 + $0x18c] sm:$0xf]
    %v2868 = vld [vmem:[%s1 + $0x190] sm:$0xf]
    %v2869 = vld [vmem:[%s1 + $0x194] sm:$0xf]
    %v2886 = vunpack.c.l.b16 %v2854
    %v2887 = vunpack.c.l.b16 %v2855
    %v2888 = vunpack.c.l.b16 %v2856
    %v2889 = vunpack.c.l.b16 %v2857
    %v2890 = vunpack.c.l.b16 %v2858
    %v2891 = vunpack.c.l.b16 %v2859
    %v2892 = vunpack.c.l.b16 %v2860
    %v2893 = vunpack.c.l.b16 %v2861
    %v2894 = vunpack.c.l.b16 %v2862
    %v2895 = vunpack.c.l.b16 %v2863
    %v2896 = vunpack.c.l.b16 %v2864
    %v2897 = vunpack.c.l.b16 %v2865
    %v2898 = vunpack.c.l.b16 %v2866
    %v2899 = vunpack.c.l.b16 %v2867
    %v2900 = vunpack.c.l.b16 %v2868
    %v2901 = vunpack.c.l.b16 %v2869
    %v2902 = vpack.c.b16 %v2887, %v2886
    %v2903 = vpack.c.b16 %v2889, %v2888
    %v2904 = vpack.c.b16 %v2891, %v2890
    %v2905 = vpack.c.b16 %v2893, %v2892
    %v2906 = vpack.c.b16 %v2895, %v2894
    %v2907 = vpack.c.b16 %v2897, %v2896
    %v2908 = vpack.c.b16 %v2899, %v2898
    %v2909 = vpack.c.b16 %v2901, %v2900
    %2918 = vmatprep.subr.bf16.mxu0 0
    %2919 = vmatpush1.bf16.msra.mxu0 %v2902
    %2920 = vmatprep.subr.bf16.mxu0 0
    %2921 = vmatpush1.bf16.msra.mxu0 %v2903
    %2922 = vmatprep.subr.bf16.mxu0 0
    %2923 = vmatpush1.bf16.msra.mxu0 %v2904
    %2924 = vmatprep.subr.bf16.mxu0 0
    %2925 = vmatpush1.bf16.msra.mxu0 %v2905
    %2926 = vmatprep.subr.bf16.mxu0 0
    %2927 = vmatpush1.bf16.msra.mxu0 %v2906
    %2928 = vmatprep.subr.bf16.mxu0 0
    %2929 = vmatpush1.bf16.msra.mxu0 %v2907
    %2930 = vmatprep.subr.bf16.mxu0 0
    %2931 = vmatpush1.bf16.msra.mxu0 %v2908
    %2932 = vmatprep.subr.bf16.mxu0 0
    %2933 = vmatpush1.bf16.msra.mxu0 %v2909
    %2934 = vmatprep.subr.bf16.mxu0 0
    %2935 = vmatpush1.bf16.msra.mxu0 0
    %2936 = vmatprep.subr.bf16.mxu0 0
    %2937 = vmatpush1.bf16.msra.mxu0 0
    %2938 = vmatprep.subr.bf16.mxu0 0
    %2939 = vmatpush1.bf16.msra.mxu0 0
    %2940 = vmatprep.subr.bf16.mxu0 0
    %2941 = vmatpush1.bf16.msra.mxu0 0
    %2942 = vmatprep.subr.bf16.mxu0 0
    %2943 = vmatpush1.bf16.msra.mxu0 0
    %2944 = vmatprep.subr.bf16.mxu0 0
    %2945 = vmatpush1.bf16.msra.mxu0 0
    %2946 = vmatprep.subr.bf16.mxu0 0
    %2947 = vmatpush1.bf16.msra.mxu0 0
    %2948 = vmatprep.subr.bf16.mxu0 0
    %2949 = vmatpush1.bf16.msra.mxu0 0
    %2950 = vmatprep.mubr.bf16.mxu0 0
    %2951 = vmatmul.mubr.bf16.gmra.mrb[0].mxu0 %v2852
    %v2952 = vpop.f32.mrb[0].mxu0
    %v2953 = vadd.f32 0.0, %v2952
    %v2954 = vpop.f32.mrb[0].mxu0
    %v2955 = vpop.f32.mrb[0].mxu0
    %v2956 = vadd.f32 0.0, %v2955
    %v2957 = vpop.f32.mrb[0].mxu0
    %2958 = vmatprep.mubr.bf16.mxu0 0
    %2959 = vmatmul.mubr.bf16.gmra.mrb[0].mxu0 %v2853
    %v2960 = vpop.f32.mrb[0].mxu0
    %v2961 = vadd.f32 0.0, %v2960
    %v2962 = vpop.f32.mrb[0].mxu0
    %v2963 = vpop.f32.mrb[0].mxu0
    %v2964 = vadd.f32 0.0, %v2963
    %v2965 = vpop.f32.mrb[0].mxu0
    %2966 = vdwg.mxu0
    %v2967 = vadd.f32 %v2664, %v2953
    %v2968 = vadd.f32 %v2665, %v2956
    %v2969 = vadd.f32 %v2666, %v2961
    %v2970 = vadd.f32 %v2667, %v2964
    %v2971 = vld [vmem:[%s2 + $0x1c] sm:$0x1]
    %v2972 = vlaneseq
    %v2973 = vshrl.u32 %v2972, 7
    %v2974 = vsub.s32 0, %v2973
    %v2975 = vrot.slane %v2971, %v2974
    %v2976 = vadd.f32 %v2967, %v2975
    %v2977 = vadd.f32 %v2968, %v2975
    %v2978 = vadd.f32 %v2969, %v2975
    %v2979 = vadd.f32 %v2970, %v2975
    %v2980 = vsel %vm118, %v2976, 0.0
    %2981 = vadd.xlane.f32.xlu0 %v2980
    %v2982 = vpop.xlane.xlu0 %2981
    %v2983 = vsel %vm118, %v2977, 0.0
    %2984 = vadd.xlane.f32.xlu0 %v2983
    %v2985 = vpop.xlane.xlu0 %2984
    %v2986 = vsel %vm118, %v2978, 0.0
    %2987 = vadd.xlane.f32.xlu0 %v2986
    %v2988 = vpop.xlane.xlu0 %2987
    %v2989 = vsel %vm118, %v2979, 0.0
    %2990 = vadd.xlane.f32.xlu0 %v2989
    %v2991 = vpop.xlane.xlu0 %2990
    %v2992 = vmul.f32 %v2982, %v131
    %v2993 = vmul.f32 %v2985, %v131
    %v2994 = vmul.f32 %v2988, %v131
    %v2995 = vmul.f32 %v2991, %v131
    %v2996 = vsub.f32 %v2976, %v2992
    %v2997 = vsub.f32 %v2977, %v2993
    %v2998 = vsub.f32 %v2978, %v2994
    %v2999 = vsub.f32 %v2979, %v2995
    %v3000 = vmul.f32 %v2996, %v2996
    %v3001 = vmul.f32 %v2997, %v2997
    %v3002 = vmul.f32 %v2998, %v2998
    %v3003 = vmul.f32 %v2999, %v2999
    %v3004 = vsel %vm118, %v3000, 0.0
    %3005 = vadd.xlane.f32.xlu0 %v3004
    %v3006 = vpop.xlane.xlu0 %3005
    %v3007 = vsel %vm118, %v3001, 0.0
    %3008 = vadd.xlane.f32.xlu0 %v3007
    %v3009 = vpop.xlane.xlu0 %3008
    %v3010 = vsel %vm118, %v3002, 0.0
    %3011 = vadd.xlane.f32.xlu0 %v3010
    %v3012 = vpop.xlane.xlu0 %3011
    %v3013 = vsel %vm118, %v3003, 0.0
    %3014 = vadd.xlane.f32.xlu0 %v3013
    %v3015 = vpop.xlane.xlu0 %3014
    %v3016 = vmul.f32 %v3006, %v131
    %v3017 = vmul.f32 %v3009, %v131
    %v3018 = vmul.f32 %v3012, %v131
    %v3019 = vmul.f32 %v3015, %v131
    %v3020 = vadd.f32 %v3016, 1e-05
    %v3021 = vadd.f32 %v3017, 1e-05
    %v3022 = vadd.f32 %v3018, 1e-05
    %v3023 = vadd.f32 %v3019, 1e-05
    %v3024 = vrsqrt.pop %v3020
    %v3025 = vrsqrt.pop %v3021
    %v3026 = vrsqrt.pop %v3022
    %v3027 = vrsqrt.pop %v3023
    %v3028 = vmul.f32 %v2996, %v3024
    %v3029 = vmul.f32 %v2997, %v3025
    %v3030 = vmul.f32 %v2998, %v3026
    %v3031 = vmul.f32 %v2999, %v3027
    %v3032 = vld [vmem:[%s2 + $0x1d] sm:$0x1]
    %v3033 = vlaneseq
    %v3034 = vshrl.u32 %v3033, 7
    %v3035 = vsub.s32 0, %v3034
    %v3036 = vrot.slane %v3032, %v3035
    %v3037 = vmul.f32 %v3028, %v3036
    %v3038 = vmul.f32 %v3029, %v3036
    %v3039 = vmul.f32 %v3030, %v3036
    %v3040 = vmul.f32 %v3031, %v3036
    %v3041 = vld [vmem:[%s2 + $0x1e] sm:$0x1]
    %v3042 = vlaneseq
    %v3043 = vshrl.u32 %v3042, 7
    %v3044 = vsub.s32 0, %v3043
    %v3045 = vrot.slane %v3041, %v3044
    %v3046 = vadd.f32 %v3037, %v3045
    %v3047 = vadd.f32 %v3038, %v3045
    %v3048 = vadd.f32 %v3039, %v3045
    %v3049 = vadd.f32 %v3040, %v3045
    %v3050 = vsel %vm118, %v3046, 0.0
    %v3051 = vsel %vm118, %v3047, 0.0
    %v3052 = vadd.f32 %v3050, %v3051
    %v3053 = vrot.slane %v3052, 4
    %v3054 = vadd.f32 %v3052, %v3053
    %v3055 = vrot.slane %v3054, 2
    %v3056 = vadd.f32 %v3054, %v3055
    %v3057 = vrot.slane %v3056, 1
    %v3058 = vadd.f32 %v3056, %v3057
    %v3059 = vsel %vm118, %v3048, 0.0
    %v3060 = vsel %vm118, %v3049, 0.0
    %v3061 = vadd.f32 %v3059, %v3060
    %v3062 = vrot.slane %v3061, 4
    %v3063 = vadd.f32 %v3061, %v3062
    %v3064 = vrot.slane %v3063, 2
    %v3065 = vadd.f32 %v3063, %v3064
    %v3066 = vrot.slane %v3065, 1
    %v3067 = vadd.f32 %v3065, %v3066
    %v3068 = vrcp.pop 16.0
    %v3069 = vmul.f32 %v3058, %v3068
    %v3070 = vmul.f32 %v3067, %v3068
    %v3071 = vpack.c.bf16 %v3069, %v3069
    %v3072 = vpack.c.bf16 %v3070, %v3070
    %v3073 = vld [vmem:[%s1 + $0x198] sm:$0xf]
    %v3074 = vld [vmem:[%s1 + $0x19c] sm:$0xf]
    %v3075 = vld [vmem:[%s1 + $0x1a0] sm:$0xf]
    %v3076 = vld [vmem:[%s1 + $0x1a4] sm:$0xf]
    %v3077 = vld [vmem:[%s2 + $0x1f] sm:$0x1]
    %v3078 = vlaneseq
    %v3079 = vshrl.u32 %v3078, 7
    %v3080 = vsub.s32 0, %v3079
    %v3081 = vrot.slane %v3077, %v3080
    %v3084 = vunpack.c.l.b16 %v3071
    %v3085 = vunpack.c.l.b16 %v3072
    %vm3086 = vcmask 1041409
    %v3087 = vsel %vm3086, %v3085, %v3084
    %v3088 = vpack.c.b16 %v3087, %v3087
    %v3093 = vunpack.c.l.b16 %v3073
    %v3094 = vunpack.c.l.b16 %v3074
    %v3095 = vunpack.c.l.b16 %v3075
    %v3096 = vunpack.c.l.b16 %v3076
    %v3097 = vpack.c.b16 %v3094, %v3093
    %v3098 = vpack.c.b16 %v3096, %v3095
    %v3102 = vsel %vm118, %v3088, 0
    %3104 = vmatprep.subr.bf16.mxu0 0
    %3105 = vmatpush1.bf16.msra.mxu0 %v3097
    %3106 = vmatprep.subr.bf16.mxu0 0
    %3107 = vmatpush1.bf16.msra.mxu0 %v3098
    %3108 = vmatprep.subr.bf16.mxu0 0
    %3109 = vmatpush1.bf16.msra.mxu0 0
    %3110 = vmatprep.subr.bf16.mxu0 0
    %3111 = vmatpush1.bf16.msra.mxu0 0
    %3112 = vmatprep.subr.bf16.mxu0 0
    %3113 = vmatpush1.bf16.msra.mxu0 0
    %3114 = vmatprep.subr.bf16.mxu0 0
    %3115 = vmatpush1.bf16.msra.mxu0 0
    %3116 = vmatprep.subr.bf16.mxu0 0
    %3117 = vmatpush1.bf16.msra.mxu0 0
    %3118 = vmatprep.subr.bf16.mxu0 0
    %3119 = vmatpush1.bf16.msra.mxu0 0
    %3120 = vmatprep.subr.bf16.mxu0 0
    %3121 = vmatpush1.bf16.msra.mxu0 0
    %3122 = vmatprep.subr.bf16.mxu0 0
    %3123 = vmatpush1.bf16.msra.mxu0 0
    %3124 = vmatprep.subr.bf16.mxu0 0
    %3125 = vmatpush1.bf16.msra.mxu0 0
    %3126 = vmatprep.subr.bf16.mxu0 0
    %3127 = vmatpush1.bf16.msra.mxu0 0
    %3128 = vmatprep.subr.bf16.mxu0 0
    %3129 = vmatpush1.bf16.msra.mxu0 0
    %3130 = vmatprep.subr.bf16.mxu0 0
    %3131 = vmatpush1.bf16.msra.mxu0 0
    %3132 = vmatprep.subr.bf16.mxu0 0
    %3133 = vmatpush1.bf16.msra.mxu0 0
    %3134 = vmatprep.subr.bf16.mxu0 0
    %3135 = vmatpush1.bf16.msra.mxu0 0
    %3136 = vmatprep.mubr.bf16.mxu0 0
    %3137 = vmatmul.mubr.bf16.gmra.mrb[0].mxu0 %v3102
    %v3138 = vpop.f32.mrb[0].mxu0
    %v3139 = vadd.f32 %v3081, %v3138
    %v3140 = vpop.f32.mrb[0].mxu0
    %v3141 = vpop.f32.mrb[0].mxu0
    %v3142 = vpop.f32.mrb[0].mxu0
    %3143 = vdwg.mxu0
    %vm3144 = vcmask 58368
    %3145 = vst.msk [vmem:[#allocation2] sm:$0x3] %vm3144, %v3139
    // Predicated region
    $region18: #{swin_forward.1} parent=1 // pred_check
      _
    $region19: #{swin_forward.1} parent=1 // pred_check_branch
      %3147 = sbr.rel (0) target = $region21
    $region20: #{swin_forward.1} parent=1 // pred_region
      %s3149 = ssub.s32 32, 32
      %3150 = vsyncadd [#allocation3], %s3149
      %s3152 = sshll.u32 [#allocation2], 4
      %s3153 = int_to_ptr.vmem [resolvable:$true] %s3152
      %3155 = dma.vmem_to_hbm [thread:$0]  %s3153, 32, %s4, [#allocation3]
    $region21: #{swin_forward.1} parent=1 // pred_fallthru
      _
    // Predicated region
    $region22: #{swin_forward.1} parent=1 // pred_check
      _
    $region23: #{swin_forward.1} parent=1 // pred_check_branch
      %3157 = sbr.rel (0) target = $region25
    $region24: #{swin_forward.1} parent=1 // pred_region
      %3158 = dma.done [#allocation3], 32
    $region25: #{swin_forward.1} parent=1 // pred_fallthru
      _
    %3159 = vsyncpa [#allocation3], 1

</llo_original>
